<compile_context>
chip_gen: v7x
topology: tpu7x:2x2x1
jax: 0.10.0
libtpu: 0.0.40
codegen_flags: <defaults>
</compile_context>

<pallas_src>
import functools
import math

import jax
import jax.numpy as jnp
from jax.experimental import pallas as pl
from jax.experimental.pallas import tpu as pltpu


def _ln_f32(x, scale=1.0, eps=1e-5):
    """Fp32LayerNorm (no affine, no bias); optional scale folded into rsqrt."""
    x = x.astype(jnp.float32)
    mean = jnp.mean(x, axis=-1, keepdims=True)
    xc = x - mean
    var = jnp.mean(xc * xc, axis=-1, keepdims=True)
    return xc * (jax.lax.rsqrt(var + eps) * scale)


def double_attention_kernel(cond_ref, lat_ref, w1qkv_ref, w2qkv_ref,
                            w1o_ref, w2o_ref, cond_out_ref, lat_out_ref,
                            qkv_ref, o_ref, *, n_heads, head_dim, b_blk,
                            cond_len, lat_len):
    D = n_heads * head_dim
    scale = 1.0 / math.sqrt(head_dim)

    # ---- fused QKV projections (bf16 in, f32 acc), written straight into the
    #      row-concatenated [b_blk, L, 3D] f32 scratch (no concat copy) ----
    c2 = cond_ref[...].reshape(b_blk * cond_len, D)          # bf16
    x2 = lat_ref[...].reshape(b_blk * lat_len, D)            # bf16
    qkv_ref[:, :cond_len, :] = jnp.dot(
        c2, w1qkv_ref[...], preferred_element_type=jnp.float32
    ).reshape(b_blk, cond_len, 3 * D)
    qkv_ref[:, cond_len:, :] = jnp.dot(
        x2, w2qkv_ref[...], preferred_element_type=jnp.float32
    ).reshape(b_blk, lat_len, 3 * D)

    # ---- per-head attention; heads stay in the lane axis (hd is a multiple
    #      of 128, so every slice below is lane-aligned; no transposes) ----
    for h in range(n_heads):
        lo = h * head_dim
        hi = lo + head_dim
        # per-head Fp32LayerNorm on q/k; 1/sqrt(hd) folded into q's rsqrt
        q_h = _ln_f32(qkv_ref[:, :, lo:hi], scale).astype(jnp.bfloat16)
        k_h = _ln_f32(qkv_ref[:, :, D + lo:D + hi]).astype(jnp.bfloat16)
        v_h = qkv_ref[:, :, 2 * D + lo:2 * D + hi].astype(jnp.bfloat16)

        s = jnp.einsum('bld,bmd->blm', q_h, k_h,
                       preferred_element_type=jnp.float32)     # [b, L, L] f32
        s = s - jnp.max(s, axis=-1, keepdims=True)
        p = jnp.exp(s)
        p = p * pl.reciprocal(jnp.sum(p, axis=-1, keepdims=True), approx=True)
        o_ref[:, :, lo:hi] = jnp.einsum(
            'blm,bmd->bld', p.astype(jnp.bfloat16), v_h,
            preferred_element_type=jnp.float32).astype(jnp.bfloat16)

    # ---- split back into (condition, latent) rows and project ----
    o = o_ref[...]                                             # [b, L, D] bf16
    cond_out_ref[...] = jnp.dot(
        o[:, :cond_len, :].reshape(b_blk * cond_len, D), w1o_ref[...],
        preferred_element_type=jnp.float32
    ).reshape(b_blk, cond_len, D).astype(cond_out_ref.dtype)
    lat_out_ref[...] = jnp.dot(
        o[:, cond_len:, :].reshape(b_blk * lat_len, D), w2o_ref[...],
        preferred_element_type=jnp.float32
    ).reshape(b_blk, lat_len, D).astype(lat_out_ref.dtype)


def double_attention(condition, latent, weights, n_heads, *, batch_block=None):
    """weights = (w1q, w1k, w1v, w1o, w2q, w2k, w2v, w2o), each [in, out]."""
    w1q, w1k, w1v, w1o, w2q, w2k, w2v, w2o = weights
    B, Lc, D = condition.shape
    _, Ll, _ = latent.shape
    head_dim = D // n_heads
    L = Lc + Ll

    assert n_heads * head_dim == D, "dim must be divisible by n_heads"
    assert head_dim % 128 == 0, "head_dim must be lane-aligned (multiple of 128)"
    # Sublane padding guarantee (bf16 packs 16 rows/vreg); the o[:Lc]/o[Lc:]
    # row splits and the per-batch output blocks rely on this.
    assert Lc % 16 == 0 and Ll % 16 == 0, "Lc/Ll must be padded to 16"

    if batch_block is None:
        # Keep >=2 grid steps so v7x's two TensorCores both get work; on a
        # single-TC chip the whole batch could be folded into one step.
        batch_block = B // 2 if (B % 2 == 0 and B >= 2) else B
    assert B % batch_block == 0
    n_steps = B // batch_block

    # Fuse qkv weights (one wide matmul per stream) and cast to bf16.
    w1qkv = jnp.concatenate([w1q, w1k, w1v], axis=1).astype(jnp.bfloat16)
    w2qkv = jnp.concatenate([w2q, w2k, w2v], axis=1).astype(jnp.bfloat16)
    w1o_b = w1o.astype(jnp.bfloat16)
    w2o_b = w2o.astype(jnp.bfloat16)

    # bf16 activations into the kernel (outputs stay in the input dtype).
    cond_bf = condition.astype(jnp.bfloat16)
    lat_bf = latent.astype(jnp.bfloat16)

    kernel = functools.partial(double_attention_kernel, n_heads=n_heads,
                               head_dim=head_dim, b_blk=batch_block,
                               cond_len=Lc, lat_len=Ll)

    # Weights: whole-array VMEM residents — single buffer, copied once, never
    # re-fetched across grid steps (their index would be constant anyway).
    w_spec = pl.BlockSpec(memory_space=pltpu.MemorySpace.VMEM)

    in_specs = [
        pl.BlockSpec((batch_block, Lc, D), lambda b: (b, 0, 0)),   # condition
        pl.BlockSpec((batch_block, Ll, D), lambda b: (b, 0, 0)),   # latent
        w_spec, w_spec, w_spec, w_spec,
    ]
    out_specs = (pl.BlockSpec((batch_block, Lc, D), lambda b: (b, 0, 0)),
                 pl.BlockSpec((batch_block, Ll, D), lambda b: (b, 0, 0)))
    out_shape = (jax.ShapeDtypeStruct((B, Lc, D), condition.dtype),
                 jax.ShapeDtypeStruct((B, Ll, D), latent.dtype))

    flops = 2 * B * (Lc * D * 3 * D + Ll * D * 3 * D       # qkv projections
                     + 2 * n_heads * L * L * head_dim      # scores + PV
                     + Lc * D * D + Ll * D * D)            # output projections
    bytes_accessed = (2 * B * L * D                          # bf16 activations in
                      + 4 * B * L * D                        # f32 outputs
                      + 2 * (2 * D * 3 * D + 2 * D * D))     # bf16 weights
    cost = pl.CostEstimate(flops=flops,
                           transcendentals=B * n_heads * L * L,
                           bytes_accessed=bytes_accessed)

    return pl.pallas_call(
        kernel,
        out_shape=out_shape,
        grid=(n_steps,),
        in_specs=in_specs,
        out_specs=out_specs,
        scratch_shapes=[
            pltpu.VMEM((batch_block, L, 3 * D), jnp.float32),   # qkv rows
            pltpu.VMEM((batch_block, L, D), jnp.bfloat16),      # attn output
        ],
        compiler_params=pltpu.CompilerParams(
            dimension_semantics=("parallel",)),
        cost_estimate=cost,
    )(cond_bf, lat_bf, w1qkv, w2qkv, w1o_b, w2o_b)


def double_attention_ref(condition, latent, weights, n_heads):
    """Pure-JAX f32 reference mirroring the PyTorch forward exactly."""
    w1q, w1k, w1v, w1o, w2q, w2k, w2v, w2o = weights
    B, Lc, D = condition.shape
    _, Ll, _ = latent.shape
    hd = D // n_heads

    cq = (condition @ w1q).reshape(B, Lc, n_heads, hd)
    ck = (condition @ w1k).reshape(B, Lc, n_heads, hd)
    cv = (condition @ w1v).reshape(B, Lc, n_heads, hd)
    lq = (latent @ w2q).reshape(B, Ll, n_heads, hd)
    lk = (latent @ w2k).reshape(B, Ll, n_heads, hd)
    lv = (latent @ w2v).reshape(B, Ll, n_heads, hd)
    cq, ck = _ln_f32(cq), _ln_f32(ck)
    lq, lk = _ln_f32(lq), _ln_f32(lk)

    q = jnp.concatenate([cq, lq], axis=1)
    k = jnp.concatenate([ck, lk], axis=1)
    v = jnp.concatenate([cv, lv], axis=1)
    q, k, v = (t.transpose(0, 2, 1, 3) for t in (q, k, v))     # B H L hd
    s = jnp.einsum('bhld,bhmd->bhlm', q, k) / (hd ** 0.5)
    p = jax.nn.softmax(s, axis=-1)
    o = jnp.einsum('bhlm,bhmd->bhld', p, v).transpose(0, 2, 1, 3)
    o = o.reshape(B, Lc + Ll, D)
    return o[:, :Lc] @ w1o, o[:, Lc:] @ w2o


if __name__ == "__main__":
    B, n_heads, head_dim = 2, 2, 128
    D = n_heads * head_dim           # 256 (lane-dense)
    Lc, Ll = 16, 112                 # total seq = 128, sublane-padded

    key = jax.random.PRNGKey(0)
    keys = jax.random.split(key, 10)
    init = lambda k, shape: jax.random.normal(k, shape, jnp.float32) * 0.02

    condition = jax.random.normal(keys[0], (B, Lc, D), jnp.float32)
    latent = jax.random.normal(keys[1], (B, Ll, D), jnp.float32)

    w1q = init(keys[2], (D, D))
    w1k = init(keys[3], (D, D))
    w1v = init(keys[4], (D, D))
    w1o = init(keys[5], (D, D))
    w2q = init(keys[6], (D, D))
    w2k = init(keys[7], (D, D))
    w2v = init(keys[8], (D, D))
    w2o = init(keys[9], (D, D))
    weights = (w1q, w1k, w1v, w1o, w2q, w2k, w2v, w2o)

    cond_out, lat_out = double_attention(condition, latent, weights, n_heads)
    jax.block_until_ready((cond_out, lat_out))

    cond_ref, lat_ref = double_attention_ref(condition, latent, weights, n_heads)
    err_c = float(jnp.max(jnp.abs(cond_out - cond_ref)))
    err_l = float(jnp.max(jnp.abs(lat_out - lat_ref)))
    # bf16 MXU inputs (f32 accumulation) + approx reciprocal => loosened
    # tolerance vs. the f32 reference.
    assert err_c < 2e-2 and err_l < 2e-2, f"max_err cond={err_c} latent={err_l}"

    print("KERNEL_OK")
</pallas_src>

<mosaic_0001>
module attributes {stable_mosaic.version = 11 : i64} {
  func.func @double_attention_kernel(%arg0: i32, %arg1: memref<1x16x256xbf16, #tpu.memory_space<vmem>>, %arg2: memref<1x112x256xbf16, #tpu.memory_space<vmem>>, %arg3: memref<256x768xbf16, #tpu.memory_space<vmem>>, %arg4: memref<256x768xbf16, #tpu.memory_space<vmem>>, %arg5: memref<256x256xbf16, #tpu.memory_space<vmem>>, %arg6: memref<256x256xbf16, #tpu.memory_space<vmem>>, %arg7: memref<1x16x256xf32, #tpu.memory_space<vmem>>, %arg8: memref<1x112x256xf32, #tpu.memory_space<vmem>>, %arg9: memref<1x128x768xf32, #tpu.memory_space<vmem>>, %arg10: memref<1x128x256xbf16, #tpu.memory_space<vmem>>) attributes {dimension_semantics = [#tpu.dimension_semantics<parallel>], iteration_bounds = array<i64: 2>, scalar_prefetch = 0 : i64, scratch_operands = 2 : i64, tpu.core_type = #tpu.core_type<tc>, window_params = [{transform_indices = @transform_0, window_bounds = array<i64: 1, 16, 256>}, {transform_indices = @transform_1, window_bounds = array<i64: 1, 112, 256>}, {pipeline_mode = #tpu.pipeline_mode<synchronous>, transform_indices = @transform_2, window_bounds = array<i64: 256, 768>}, {pipeline_mode = #tpu.pipeline_mode<synchronous>, transform_indices = @transform_3, window_bounds = array<i64: 256, 768>}, {pipeline_mode = #tpu.pipeline_mode<synchronous>, transform_indices = @transform_4, window_bounds = array<i64: 256, 256>}, {pipeline_mode = #tpu.pipeline_mode<synchronous>, transform_indices = @transform_5, window_bounds = array<i64: 256, 256>}, {transform_indices = @transform_6, window_bounds = array<i64: 1, 16, 256>}, {transform_indices = @transform_7, window_bounds = array<i64: 1, 112, 256>}]} {
    %c0 = arith.constant 0 : index
    %c0_0 = arith.constant 0 : index
    %c0_1 = arith.constant 0 : index
    %0 = vector.load %arg1[%c0, %c0_0, %c0_1] : memref<1x16x256xbf16, #tpu.memory_space<vmem>>, vector<1x16x256xbf16>
    %1 = vector.shape_cast %0 : vector<1x16x256xbf16> to vector<16x256xbf16>
    %c0_2 = arith.constant 0 : index
    %c0_3 = arith.constant 0 : index
    %c0_4 = arith.constant 0 : index
    %2 = vector.load %arg2[%c0_2, %c0_3, %c0_4] : memref<1x112x256xbf16, #tpu.memory_space<vmem>>, vector<1x112x256xbf16>
    %3 = vector.shape_cast %2 : vector<1x112x256xbf16> to vector<112x256xbf16>
    %c0_5 = arith.constant 0 : index
    %c0_6 = arith.constant 0 : index
    %4 = vector.load %arg3[%c0_5, %c0_6] : memref<256x768xbf16, #tpu.memory_space<vmem>>, vector<256x768xbf16>
    %cst = arith.constant dense<0.000000e+00> : vector<16x768xf32>
    %5 = tpu.matmul %1, %4, %cst {dimension_numbers = #tpu.dot_dimension_numbers<[1], [0], [0], [1], [0, 0, 1, 1], [], []>} : vector<16x256xbf16>, vector<256x768xbf16>, vector<16x768xf32> -> vector<16x768xf32>
    %6 = vector.shape_cast %5 : vector<16x768xf32> to vector<1x16x768xf32>
    %c0_7 = arith.constant 0 : index
    %c0_8 = arith.constant 0 : index
    %c0_9 = arith.constant 0 : index
    %7 = vector.load %arg9[%c0_7, %c0_8, %c0_9] : memref<1x128x768xf32, #tpu.memory_space<vmem>>, vector<1x16x768xf32>
    tpu.vector_store %arg9[%c0_7, %c0_8, %c0_9], %6 {strides = array<i32>} : memref<1x128x768xf32, #tpu.memory_space<vmem>>, vector<1x16x768xf32>,
    %c0_10 = arith.constant 0 : index
    %c0_11 = arith.constant 0 : index
    %8 = vector.load %arg4[%c0_10, %c0_11] : memref<256x768xbf16, #tpu.memory_space<vmem>>, vector<256x768xbf16>
    %cst_12 = arith.constant dense<0.000000e+00> : vector<112x768xf32>
    %9 = tpu.matmul %3, %8, %cst_12 {dimension_numbers = #tpu.dot_dimension_numbers<[1], [0], [0], [1], [0, 0, 1, 1], [], []>} : vector<112x256xbf16>, vector<256x768xbf16>, vector<112x768xf32> -> vector<112x768xf32>
    %10 = vector.shape_cast %9 : vector<112x768xf32> to vector<1x112x768xf32>
    %c0_13 = arith.constant 0 : index
    %c16 = arith.constant 16 : index
    %c0_14 = arith.constant 0 : index
    %11 = vector.load %arg9[%c0_13, %c16, %c0_14] : memref<1x128x768xf32, #tpu.memory_space<vmem>>, vector<1x112x768xf32>
    tpu.vector_store %arg9[%c0_13, %c16, %c0_14], %10 {strides = array<i32>} : memref<1x128x768xf32, #tpu.memory_space<vmem>>, vector<1x112x768xf32>,
    %c0_15 = arith.constant 0 : index
    %c0_16 = arith.constant 0 : index
    %c0_17 = arith.constant 0 : index
    %12 = vector.load %arg9[%c0_15, %c0_16, %c0_17] : memref<1x128x768xf32, #tpu.memory_space<vmem>>, vector<1x128x128xf32>
    %cst_18 = arith.constant dense<0.000000e+00> : vector<1x128xf32>
    %13 = vector.multi_reduction <add>, %12, %cst_18 [2] : vector<1x128x128xf32> to vector<1x128xf32>
    %14 = vector.shape_cast %13 : vector<1x128xf32> to vector<1x128x1xf32>
    %cst_19 = arith.constant 1.280000e+02 : f32
    %15 = vector.broadcast %cst_19 : f32 to vector<1x128x1xf32>
    %16 = arith.divf %14, %15 : vector<1x128x1xf32>
    %17 = vector.broadcast %16 : vector<1x128x1xf32> to vector<1x128x128xf32>
    %18 = arith.subf %12, %17 : vector<1x128x128xf32>
    %19 = arith.mulf %18, %18 : vector<1x128x128xf32>
    %cst_20 = arith.constant dense<0.000000e+00> : vector<1x128xf32>
    %20 = vector.multi_reduction <add>, %19, %cst_20 [2] : vector<1x128x128xf32> to vector<1x128xf32>
    %21 = vector.shape_cast %20 : vector<1x128xf32> to vector<1x128x1xf32>
    %cst_21 = arith.constant 1.280000e+02 : f32
    %22 = vector.broadcast %cst_21 : f32 to vector<1x128x1xf32>
    %23 = arith.divf %21, %22 : vector<1x128x1xf32>
    %cst_22 = arith.constant 9.99999974E-6 : f32
    %24 = vector.broadcast %cst_22 : f32 to vector<1x128x1xf32>
    %25 = arith.addf %23, %24 : vector<1x128x1xf32>
    %26 = math.rsqrt %25 : vector<1x128x1xf32>
    %cst_23 = arith.constant 0.0883883461 : f32
    %27 = vector.broadcast %cst_23 : f32 to vector<1x128x1xf32>
    %28 = arith.mulf %26, %27 : vector<1x128x1xf32>
    %29 = vector.broadcast %28 : vector<1x128x1xf32> to vector<1x128x128xf32>
    %30 = arith.mulf %18, %29 : vector<1x128x128xf32>
    %31 = arith.truncf %30 : vector<1x128x128xf32> to vector<1x128x128xbf16>
    %c0_24 = arith.constant 0 : index
    %c0_25 = arith.constant 0 : index
    %c256 = arith.constant 256 : index
    %32 = vector.load %arg9[%c0_24, %c0_25, %c256] : memref<1x128x768xf32, #tpu.memory_space<vmem>>, vector<1x128x128xf32>
    %cst_26 = arith.constant dense<0.000000e+00> : vector<1x128xf32>
    %33 = vector.multi_reduction <add>, %32, %cst_26 [2] : vector<1x128x128xf32> to vector<1x128xf32>
    %34 = vector.shape_cast %33 : vector<1x128xf32> to vector<1x128x1xf32>
    %cst_27 = arith.constant 1.280000e+02 : f32
    %35 = vector.broadcast %cst_27 : f32 to vector<1x128x1xf32>
    %36 = arith.divf %34, %35 : vector<1x128x1xf32>
    %37 = vector.broadcast %36 : vector<1x128x1xf32> to vector<1x128x128xf32>
    %38 = arith.subf %32, %37 : vector<1x128x128xf32>
    %39 = arith.mulf %38, %38 : vector<1x128x128xf32>
    %cst_28 = arith.constant dense<0.000000e+00> : vector<1x128xf32>
    %40 = vector.multi_reduction <add>, %39, %cst_28 [2] : vector<1x128x128xf32> to vector<1x128xf32>
    %41 = vector.shape_cast %40 : vector<1x128xf32> to vector<1x128x1xf32>
    %cst_29 = arith.constant 1.280000e+02 : f32
    %42 = vector.broadcast %cst_29 : f32 to vector<1x128x1xf32>
    %43 = arith.divf %41, %42 : vector<1x128x1xf32>
    %cst_30 = arith.constant 9.99999974E-6 : f32
    %44 = vector.broadcast %cst_30 : f32 to vector<1x128x1xf32>
    %45 = arith.addf %43, %44 : vector<1x128x1xf32>
    %46 = math.rsqrt %45 : vector<1x128x1xf32>
    %cst_31 = arith.constant 1.000000e+00 : f32
    %47 = vector.broadcast %cst_31 : f32 to vector<1x128x1xf32>
    %48 = arith.mulf %46, %47 : vector<1x128x1xf32>
    %49 = vector.broadcast %48 : vector<1x128x1xf32> to vector<1x128x128xf32>
    %50 = arith.mulf %38, %49 : vector<1x128x128xf32>
    %51 = arith.truncf %50 : vector<1x128x128xf32> to vector<1x128x128xbf16>
    %c0_32 = arith.constant 0 : index
    %c0_33 = arith.constant 0 : index
    %c512 = arith.constant 512 : index
    %52 = vector.load %arg9[%c0_32, %c0_33, %c512] : memref<1x128x768xf32, #tpu.memory_space<vmem>>, vector<1x128x128xf32>
    %53 = arith.truncf %52 : vector<1x128x128xf32> to vector<1x128x128xbf16>
    "tpu.trace_start"() <{level = 10 : i32, message = "bld,bmd->blm"}> : () -> ()
    %cst_34 = arith.constant dense<0.000000e+00> : vector<1x128x128xf32>
    %54 = tpu.matmul %31, %51, %cst_34 {dimension_numbers = #tpu.dot_dimension_numbers<[2], [2], [1], [1], [0, 0, 0, 1, 1, 1], [0], [0]>} : vector<1x128x128xbf16>, vector<1x128x128xbf16>, vector<1x128x128xf32> -> vector<1x128x128xf32>
    "tpu.trace_stop"() : () -> ()
    %cst_35 = arith.constant dense<0xFF800000> : vector<1x128xf32>
    %55 = vector.multi_reduction <maximumf>, %54, %cst_35 [2] : vector<1x128x128xf32> to vector<1x128xf32>
    %56 = vector.shape_cast %55 : vector<1x128xf32> to vector<1x128x1xf32>
    %57 = vector.broadcast %56 : vector<1x128x1xf32> to vector<1x128x128xf32>
    %58 = arith.subf %54, %57 : vector<1x128x128xf32>
    %59 = math.exp %58 : vector<1x128x128xf32>
    %cst_36 = arith.constant dense<0.000000e+00> : vector<1x128xf32>
    %60 = vector.multi_reduction <add>, %59, %cst_36 [2] : vector<1x128x128xf32> to vector<1x128xf32>
    %61 = vector.shape_cast %60 : vector<1x128xf32> to vector<1x128x1xf32>
    %62 = tpu.reciprocal %61 {approx = true} : vector<1x128x1xf32> -> vector<1x128x1xf32>
    %63 = vector.broadcast %62 : vector<1x128x1xf32> to vector<1x128x128xf32>
    %64 = arith.mulf %59, %63 : vector<1x128x128xf32>
    %65 = arith.truncf %64 : vector<1x128x128xf32> to vector<1x128x128xbf16>
    "tpu.trace_start"() <{level = 10 : i32, message = "blm,bmd->bld"}> : () -> ()
    %cst_37 = arith.constant dense<0.000000e+00> : vector<1x128x128xf32>
    %66 = tpu.matmul %65, %53, %cst_37 {dimension_numbers = #tpu.dot_dimension_numbers<[2], [1], [1], [2], [0, 0, 0, 1, 1, 2], [0], [0]>} : vector<1x128x128xbf16>, vector<1x128x128xbf16>, vector<1x128x128xf32> -> vector<1x128x128xf32>
    "tpu.trace_stop"() : () -> ()
    %67 = arith.truncf %66 : vector<1x128x128xf32> to vector<1x128x128xbf16>
    %c0_38 = arith.constant 0 : index
    %c0_39 = arith.constant 0 : index
    %c0_40 = arith.constant 0 : index
    %68 = vector.load %arg10[%c0_38, %c0_39, %c0_40] : memref<1x128x256xbf16, #tpu.memory_space<vmem>>, vector<1x128x128xbf16>
    tpu.vector_store %arg10[%c0_38, %c0_39, %c0_40], %67 {strides = array<i32>} : memref<1x128x256xbf16, #tpu.memory_space<vmem>>, vector<1x128x128xbf16>,
    %c0_41 = arith.constant 0 : index
    %c0_42 = arith.constant 0 : index
    %c128 = arith.constant 128 : index
    %69 = vector.load %arg9[%c0_41, %c0_42, %c128] : memref<1x128x768xf32, #tpu.memory_space<vmem>>, vector<1x128x128xf32>
    %cst_43 = arith.constant dense<0.000000e+00> : vector<1x128xf32>
    %70 = vector.multi_reduction <add>, %69, %cst_43 [2] : vector<1x128x128xf32> to vector<1x128xf32>
    %71 = vector.shape_cast %70 : vector<1x128xf32> to vector<1x128x1xf32>
    %cst_44 = arith.constant 1.280000e+02 : f32
    %72 = vector.broadcast %cst_44 : f32 to vector<1x128x1xf32>
    %73 = arith.divf %71, %72 : vector<1x128x1xf32>
    %74 = vector.broadcast %73 : vector<1x128x1xf32> to vector<1x128x128xf32>
    %75 = arith.subf %69, %74 : vector<1x128x128xf32>
    %76 = arith.mulf %75, %75 : vector<1x128x128xf32>
    %cst_45 = arith.constant dense<0.000000e+00> : vector<1x128xf32>
    %77 = vector.multi_reduction <add>, %76, %cst_45 [2] : vector<1x128x128xf32> to vector<1x128xf32>
    %78 = vector.shape_cast %77 : vector<1x128xf32> to vector<1x128x1xf32>
    %cst_46 = arith.constant 1.280000e+02 : f32
    %79 = vector.broadcast %cst_46 : f32 to vector<1x128x1xf32>
    %80 = arith.divf %78, %79 : vector<1x128x1xf32>
    %cst_47 = arith.constant 9.99999974E-6 : f32
    %81 = vector.broadcast %cst_47 : f32 to vector<1x128x1xf32>
    %82 = arith.addf %80, %81 : vector<1x128x1xf32>
    %83 = math.rsqrt %82 : vector<1x128x1xf32>
    %cst_48 = arith.constant 0.0883883461 : f32
    %84 = vector.broadcast %cst_48 : f32 to vector<1x128x1xf32>
    %85 = arith.mulf %83, %84 : vector<1x128x1xf32>
    %86 = vector.broadcast %85 : vector<1x128x1xf32> to vector<1x128x128xf32>
    %87 = arith.mulf %75, %86 : vector<1x128x128xf32>
    %88 = arith.truncf %87 : vector<1x128x128xf32> to vector<1x128x128xbf16>
    %c0_49 = arith.constant 0 : index
    %c0_50 = arith.constant 0 : index
    %c384 = arith.constant 384 : index
    %89 = vector.load %arg9[%c0_49, %c0_50, %c384] : memref<1x128x768xf32, #tpu.memory_space<vmem>>, vector<1x128x128xf32>
    %cst_51 = arith.constant dense<0.000000e+00> : vector<1x128xf32>
    %90 = vector.multi_reduction <add>, %89, %cst_51 [2] : vector<1x128x128xf32> to vector<1x128xf32>
    %91 = vector.shape_cast %90 : vector<1x128xf32> to vector<1x128x1xf32>
    %cst_52 = arith.constant 1.280000e+02 : f32
    %92 = vector.broadcast %cst_52 : f32 to vector<1x128x1xf32>
    %93 = arith.divf %91, %92 : vector<1x128x1xf32>
    %94 = vector.broadcast %93 : vector<1x128x1xf32> to vector<1x128x128xf32>
    %95 = arith.subf %89, %94 : vector<1x128x128xf32>
    %96 = arith.mulf %95, %95 : vector<1x128x128xf32>
    %cst_53 = arith.constant dense<0.000000e+00> : vector<1x128xf32>
    %97 = vector.multi_reduction <add>, %96, %cst_53 [2] : vector<1x128x128xf32> to vector<1x128xf32>
    %98 = vector.shape_cast %97 : vector<1x128xf32> to vector<1x128x1xf32>
    %cst_54 = arith.constant 1.280000e+02 : f32
    %99 = vector.broadcast %cst_54 : f32 to vector<1x128x1xf32>
    %100 = arith.divf %98, %99 : vector<1x128x1xf32>
    %cst_55 = arith.constant 9.99999974E-6 : f32
    %101 = vector.broadcast %cst_55 : f32 to vector<1x128x1xf32>
    %102 = arith.addf %100, %101 : vector<1x128x1xf32>
    %103 = math.rsqrt %102 : vector<1x128x1xf32>
    %cst_56 = arith.constant 1.000000e+00 : f32
    %104 = vector.broadcast %cst_56 : f32 to vector<1x128x1xf32>
    %105 = arith.mulf %103, %104 : vector<1x128x1xf32>
    %106 = vector.broadcast %105 : vector<1x128x1xf32> to vector<1x128x128xf32>
    %107 = arith.mulf %95, %106 : vector<1x128x128xf32>
    %108 = arith.truncf %107 : vector<1x128x128xf32> to vector<1x128x128xbf16>
    %c0_57 = arith.constant 0 : index
    %c0_58 = arith.constant 0 : index
    %c640 = arith.constant 640 : index
    %109 = vector.load %arg9[%c0_57, %c0_58, %c640] : memref<1x128x768xf32, #tpu.memory_space<vmem>>, vector<1x128x128xf32>
    %110 = arith.truncf %109 : vector<1x128x128xf32> to vector<1x128x128xbf16>
    "tpu.trace_start"() <{level = 10 : i32, message = "bld,bmd->blm"}> : () -> ()
    %cst_59 = arith.constant dense<0.000000e+00> : vector<1x128x128xf32>
    %111 = tpu.matmul %88, %108, %cst_59 {dimension_numbers = #tpu.dot_dimension_numbers<[2], [2], [1], [1], [0, 0, 0, 1, 1, 1], [0], [0]>} : vector<1x128x128xbf16>, vector<1x128x128xbf16>, vector<1x128x128xf32> -> vector<1x128x128xf32>
    "tpu.trace_stop"() : () -> ()
    %cst_60 = arith.constant dense<0xFF800000> : vector<1x128xf32>
    %112 = vector.multi_reduction <maximumf>, %111, %cst_60 [2] : vector<1x128x128xf32> to vector<1x128xf32>
    %113 = vector.shape_cast %112 : vector<1x128xf32> to vector<1x128x1xf32>
    %114 = vector.broadcast %113 : vector<1x128x1xf32> to vector<1x128x128xf32>
    %115 = arith.subf %111, %114 : vector<1x128x128xf32>
    %116 = math.exp %115 : vector<1x128x128xf32>
    %cst_61 = arith.constant dense<0.000000e+00> : vector<1x128xf32>
    %117 = vector.multi_reduction <add>, %116, %cst_61 [2] : vector<1x128x128xf32> to vector<1x128xf32>
    %118 = vector.shape_cast %117 : vector<1x128xf32> to vector<1x128x1xf32>
    %119 = tpu.reciprocal %118 {approx = true} : vector<1x128x1xf32> -> vector<1x128x1xf32>
    %120 = vector.broadcast %119 : vector<1x128x1xf32> to vector<1x128x128xf32>
    %121 = arith.mulf %116, %120 : vector<1x128x128xf32>
    %122 = arith.truncf %121 : vector<1x128x128xf32> to vector<1x128x128xbf16>
    "tpu.trace_start"() <{level = 10 : i32, message = "blm,bmd->bld"}> : () -> ()
    %cst_62 = arith.constant dense<0.000000e+00> : vector<1x128x128xf32>
    %123 = tpu.matmul %122, %110, %cst_62 {dimension_numbers = #tpu.dot_dimension_numbers<[2], [1], [1], [2], [0, 0, 0, 1, 1, 2], [0], [0]>} : vector<1x128x128xbf16>, vector<1x128x128xbf16>, vector<1x128x128xf32> -> vector<1x128x128xf32>
    "tpu.trace_stop"() : () -> ()
    %124 = arith.truncf %123 : vector<1x128x128xf32> to vector<1x128x128xbf16>
    %c0_63 = arith.constant 0 : index
    %c0_64 = arith.constant 0 : index
    %c128_65 = arith.constant 128 : index
    %125 = vector.load %arg10[%c0_63, %c0_64, %c128_65] : memref<1x128x256xbf16, #tpu.memory_space<vmem>>, vector<1x128x128xbf16>
    tpu.vector_store %arg10[%c0_63, %c0_64, %c128_65], %124 {strides = array<i32>} : memref<1x128x256xbf16, #tpu.memory_space<vmem>>, vector<1x128x128xbf16>,
    %c0_66 = arith.constant 0 : index
    %c0_67 = arith.constant 0 : index
    %c0_68 = arith.constant 0 : index
    %126 = vector.load %arg10[%c0_66, %c0_67, %c0_68] : memref<1x128x256xbf16, #tpu.memory_space<vmem>>, vector<1x128x256xbf16>
    %127 = vector.extract_strided_slice %126 {offsets = [0, 0, 0], sizes = [1, 16, 256], strides = [1, 1, 1]} : vector<1x128x256xbf16> to vector<1x16x256xbf16>
    %128 = vector.shape_cast %127 : vector<1x16x256xbf16> to vector<16x256xbf16>
    %c0_69 = arith.constant 0 : index
    %c0_70 = arith.constant 0 : index
    %129 = vector.load %arg5[%c0_69, %c0_70] : memref<256x256xbf16, #tpu.memory_space<vmem>>, vector<256x256xbf16>
    %cst_71 = arith.constant dense<0.000000e+00> : vector<16x256xf32>
    %130 = tpu.matmul %128, %129, %cst_71 {dimension_numbers = #tpu.dot_dimension_numbers<[1], [0], [0], [1], [0, 0, 1, 1], [], []>} : vector<16x256xbf16>, vector<256x256xbf16>, vector<16x256xf32> -> vector<16x256xf32>
    %131 = vector.shape_cast %130 : vector<16x256xf32> to vector<1x16x256xf32>
    %c0_72 = arith.constant 0 : index
    %c0_73 = arith.constant 0 : index
    %c0_74 = arith.constant 0 : index
    %132 = vector.load %arg7[%c0_72, %c0_73, %c0_74] : memref<1x16x256xf32, #tpu.memory_space<vmem>>, vector<1x16x256xf32>
    tpu.vector_store %arg7[%c0_72, %c0_73, %c0_74], %131 {strides = array<i32>} : memref<1x16x256xf32, #tpu.memory_space<vmem>>, vector<1x16x256xf32>,
    %133 = vector.extract_strided_slice %126 {offsets = [0, 16, 0], sizes = [1, 112, 256], strides = [1, 1, 1]} : vector<1x128x256xbf16> to vector<1x112x256xbf16>
    %134 = vector.shape_cast %133 : vector<1x112x256xbf16> to vector<112x256xbf16>
    %c0_75 = arith.constant 0 : index
    %c0_76 = arith.constant 0 : index
    %135 = vector.load %arg6[%c0_75, %c0_76] : memref<256x256xbf16, #tpu.memory_space<vmem>>, vector<256x256xbf16>
    %cst_77 = arith.constant dense<0.000000e+00> : vector<112x256xf32>
    %136 = tpu.matmul %134, %135, %cst_77 {dimension_numbers = #tpu.dot_dimension_numbers<[1], [0], [0], [1], [0, 0, 1, 1], [], []>} : vector<112x256xbf16>, vector<256x256xbf16>, vector<112x256xf32> -> vector<112x256xf32>
    %137 = vector.shape_cast %136 : vector<112x256xf32> to vector<1x112x256xf32>
    %c0_78 = arith.constant 0 : index
    %c0_79 = arith.constant 0 : index
    %c0_80 = arith.constant 0 : index
    %138 = vector.load %arg8[%c0_78, %c0_79, %c0_80] : memref<1x112x256xf32, #tpu.memory_space<vmem>>, vector<1x112x256xf32>
    tpu.vector_store %arg8[%c0_78, %c0_79, %c0_80], %137 {strides = array<i32>} : memref<1x112x256xf32, #tpu.memory_space<vmem>>, vector<1x112x256xf32>,
    return
  }
  func.func @transform_0(%arg0: i32) -> (i32, i32, i32) {
    %c0_i32 = arith.constant 0 : i32
    %c0_i32_0 = arith.constant 0 : i32
    %c0_i32_1 = arith.constant 0 : i32
    return %arg0, %c0_i32, %c0_i32_0 : i32, i32, i32
  }
  func.func @transform_1(%arg0: i32) -> (i32, i32, i32) {
    %c0_i32 = arith.constant 0 : i32
    %c0_i32_0 = arith.constant 0 : i32
    %c0_i32_1 = arith.constant 0 : i32
    return %arg0, %c0_i32, %c0_i32_0 : i32, i32, i32
  }
  func.func @transform_2(%arg0: i32) -> (i32, i32) {
    %c0_i32 = arith.constant 0 : i32
    %c0_i32_0 = arith.constant 0 : i32
    %c0_i32_1 = arith.constant 0 : i32
    return %c0_i32, %c0_i32_0 : i32, i32
  }
  func.func @transform_3(%arg0: i32) -> (i32, i32) {
    %c0_i32 = arith.constant 0 : i32
    %c0_i32_0 = arith.constant 0 : i32
    %c0_i32_1 = arith.constant 0 : i32
    return %c0_i32, %c0_i32_0 : i32, i32
  }
  func.func @transform_4(%arg0: i32) -> (i32, i32) {
    %c0_i32 = arith.constant 0 : i32
    %c0_i32_0 = arith.constant 0 : i32
    %c0_i32_1 = arith.constant 0 : i32
    return %c0_i32, %c0_i32_0 : i32, i32
  }
  func.func @transform_5(%arg0: i32) -> (i32, i32) {
    %c0_i32 = arith.constant 0 : i32
    %c0_i32_0 = arith.constant 0 : i32
    %c0_i32_1 = arith.constant 0 : i32
    return %c0_i32, %c0_i32_0 : i32, i32
  }
  func.func @transform_6(%arg0: i32) -> (i32, i32, i32) {
    %c0_i32 = arith.constant 0 : i32
    %c0_i32_0 = arith.constant 0 : i32
    %c0_i32_1 = arith.constant 0 : i32
    return %arg0, %c0_i32, %c0_i32_0 : i32, i32, i32
  }
  func.func @transform_7(%arg0: i32) -> (i32, i32, i32) {
    %c0_i32 = arith.constant 0 : i32
    %c0_i32_0 = arith.constant 0 : i32
    %c0_i32_1 = arith.constant 0 : i32
    return %arg0, %c0_i32, %c0_i32_0 : i32, i32, i32
  }
}

</mosaic_0001>

<llo_original>
// kernel: tpu_custom_call.1
$region0: #{tpu_custom_call.1}
  #allocation0 [shape = 'u32[]', space=smem, size = 0x4, offset = 0x4, fixed_abs, tag = 'smem constant byte address 0x4 - core index']
  #allocation1 [shape = 'u32[144,128]{1,0:T(1,128)}', space=vmem, size = 0x12000, scoped, tag = 'internal scratch']
  #allocation2 [shape = 'f32[1,128,768]{2,1,0:T(8,128)}', space=vmem, size = 0x60000, scoped, tag = 'scratch operand']
  #allocation3 [shape = 'bf16[1,128,256]{2,1,0:T(16,128)(2,1)}', space=vmem, size = 0x10000, scoped, tag = 'scratch operand']
  %s0 = inlined_call_operand.hbm [shape: bf16[2,16,256], index: 0, kind: input, shape index: {}]
  %s1 = inlined_call_operand.hbm [shape: bf16[2,112,256], index: 1, kind: input, shape index: {}]
  %s2 = inlined_call_operand.hbm [shape: bf16[256,768], index: 2, kind: input, shape index: {}]
  %s3 = inlined_call_operand.hbm [shape: bf16[256,768], index: 3, kind: input, shape index: {}]
  %s4 = inlined_call_operand.hbm [shape: bf16[256,256], index: 4, kind: input, shape index: {}]
  %s5 = inlined_call_operand.hbm [shape: bf16[256,256], index: 5, kind: input, shape index: {}]
  %s6 = inlined_call_operand.hbm [shape: f32[2,16,256], index: 6, kind: output, shape index: {0}]
  %s7 = inlined_call_operand.hbm [shape: f32[2,112,256], index: 7, kind: output, shape index: {1}]
  %8 = xla_tuple %s6, %s7
  %s9 = sld [smem:[#allocation0]]
  $region89: #{tpu_custom_call.1} parent=0
    _
  %s11 = ssub.s32 1, %s9
  %s12 = scalar_select 0, %s11, %s9
  $region1: #{tpu_custom_call.1} parent=0
    #allocation4 [shape = 'u8[16384]{0}', space=vmem, size = 0x4000, scoped, tag = 'input window, operand 0']
    #allocation5 [shape = 's32[2]{0}', space=sflag, size = 0x8, scoped, tag = 'scoped memory for tpu_custom_call.1']
    #allocation6 [shape = 's32[2]{0}', space=sflag, size = 0x8, scoped, tag = 'scoped memory for tpu_custom_call.1']
    #allocation7 [shape = 'u8[114688]{0}', space=vmem, size = 0x1c000, scoped, tag = 'input window, operand 1']
    #allocation8 [shape = 's32[2]{0}', space=sflag, size = 0x8, scoped, tag = 'scoped memory for tpu_custom_call.1']
    #allocation9 [shape = 'u8[393216]{0}', space=vmem, size = 0x60000, scoped, tag = 'input window, operand 2, single buffered']
    #allocation10 [shape = 'u8[393216]{0}', space=vmem, size = 0x60000, scoped, tag = 'input window, operand 3, single buffered']
    #allocation11 [shape = 's32[1]{0}', space=sflag, size = 0x4, scoped, tag = 'scoped memory for tpu_custom_call.1']
    #allocation12 [shape = 'u8[131072]{0}', space=vmem, size = 0x20000, scoped, tag = 'input window, operand 4, single buffered']
    #allocation13 [shape = 'u8[131072]{0}', space=vmem, size = 0x20000, scoped, tag = 'input window, operand 5, single buffered']
    #allocation14 [shape = 's32[1]{0}', space=sflag, size = 0x4, scoped, tag = 'scoped memory for tpu_custom_call.1']
    #allocation15 [shape = 'u8[32768]{0}', space=vmem, size = 0x8000, scoped, tag = 'output window, operand 0']
    #allocation16 [shape = 'u8[229376]{0}', space=vmem, size = 0x38000, scoped, tag = 'output window, operand 1']
    #allocation17 [shape = 's32[2]{0}', space=sflag, size = 0x8, scoped, tag = 'scoped memory for tpu_custom_call.1']
    %13 = vsyncpa [#allocation5], 0
    %s14 = scalar_lea.sflag [#allocation5], 1
    %15 = vsyncpa %s14, 0
    %16 = vsyncpa [#allocation8], 0
    %s17 = scalar_lea.sflag [#allocation8], 1
    %18 = vsyncpa %s17, 0
    %19 = vsyncpa [#allocation11], 0
    %20 = vsyncpa [#allocation14], 0
    %21 = vsyncpa [#allocation6], 0
    %s22 = scalar_lea.sflag [#allocation6], 1
    %23 = vsyncpa %s22, 0
    %24 = vsyncpa [#allocation17], 0
    %s25 = scalar_lea.sflag [#allocation17], 1
    %26 = vsyncpa %s25, 0
    loop: start=0, step=1, limit=4
    $region2: #{tpu_custom_call.1} parent=1 // loop_pre_header
      _
    $region3: #{tpu_custom_call.1} parent=1 // loop_header
      %s28 = sphi 0, %s32
      %p29 = scmp.ge.s32.totalorder %s28, 4
      %s38 = sphi 0, %s40
      %s41 = sphi 0, %s38
      %s42 = sphi 0, %s41
      %s58 = sphi 0, %s42
      %s64 = sphi 0, %s66
      %s67 = sphi 0, %s64
      %s68 = sphi 0, %s67
      %s84 = sphi 0, %s68
      %s88 = sphi 0, %s88
      %s90 = sphi 0, %s88
      %s91 = sphi 0, %s90
      %s105 = sphi 0, %s91
      %s109 = sphi 0, %s109
      %s111 = sphi 0, %s109
      %s112 = sphi 0, %s111
      %s126 = sphi 0, %s112
      %s130 = sphi 0, %s130
      %s132 = sphi 0, %s130
      %s133 = sphi 0, %s132
      %s147 = sphi 0, %s133
      %s151 = sphi 0, %s151
      %s153 = sphi 0, %s151
      %s154 = sphi 0, %s153
      %s168 = sphi 0, %s154
      %s174 = sphi 0, %s176
      %s177 = sphi 0, %s174
      %s178 = sphi 0, %s177
      %s194 = sphi 0, %s178
      %s200 = sphi 0, %s202
      %s203 = sphi 0, %s200
      %s204 = sphi 0, %s203
      %s220 = sphi 0, %s204
    $region4: #{tpu_custom_call.1} parent=1 // loop_header_branch
      %31 = sbr.rel (%p29) target = $region8
    $region5: #{tpu_custom_call.1} parent=1 // loop_body
      %s33 = ssub.s32 %s28, 1
      %s34 = ssub.s32 %s28, 2
      %s35 = sadd.s32 %s28, 1
      %s36 = ssub.s32 %s28, %s35
      %p37 = scmp.eq.s32.totalorder %s36, 0
      %s39 = sadd.s32 %s38, 1
      %s40 = scalar_select %p37, %s38, %s39
      %p43 = pneg %p37
      %p44 = scmp.eq.s32.totalorder %s28, 1
      %p45 = por %p43, %p44
      %p46 = scmp.ne.s32.totalorder %s38, %s41
      %p47 = scmp.eq.s32.totalorder %s28, 0
      %p48 = por %p46, %p47
      %p49 = scmp.ne.s32.totalorder %s38, %s41
      %p50 = scmp.eq.s32.totalorder %s33, 1
      %p51 = por %p49, %p50
      %p52 = scmp.ne.s32.totalorder %s41, %s42
      %p53 = scmp.eq.s32.totalorder %s33, 0
      %p54 = por %p52, %p53
      %p55 = scmp.ne.s32.totalorder %s41, %s42
      %p56 = scmp.eq.s32.totalorder %s34, 1
      %p57 = por %p55, %p56
      %p59 = scmp.ne.s32.totalorder %s42, %s58
      %p60 = scmp.eq.s32.totalorder %s34, 0
      %p61 = por %p59, %p60
      %s62 = ssub.s32 %s28, %s35
      %p63 = scmp.eq.s32.totalorder %s62, 0
      %s65 = sadd.s32 %s64, 1
      %s66 = scalar_select %p63, %s64, %s65
      %p69 = pneg %p63
      %p70 = scmp.eq.s32.totalorder %s28, 1
      %p71 = por %p69, %p70
      %p72 = scmp.ne.s32.totalorder %s64, %s67
      %p73 = scmp.eq.s32.totalorder %s28, 0
      %p74 = por %p72, %p73
      %p75 = scmp.ne.s32.totalorder %s64, %s67
      %p76 = scmp.eq.s32.totalorder %s33, 1
      %p77 = por %p75, %p76
      %p78 = scmp.ne.s32.totalorder %s67, %s68
      %p79 = scmp.eq.s32.totalorder %s33, 0
      %p80 = por %p78, %p79
      %p81 = scmp.ne.s32.totalorder %s67, %s68
      %p82 = scmp.eq.s32.totalorder %s34, 1
      %p83 = por %p81, %p82
      %p85 = scmp.ne.s32.totalorder %s68, %s84
      %p86 = scmp.eq.s32.totalorder %s34, 0
      %p87 = por %p85, %p86
      %s89 = sadd.s32 %s88, 1
      %p92 = scmp.eq.s32.totalorder %s28, 1
      %p93 = scmp.ne.s32.totalorder %s88, %s90
      %p94 = scmp.eq.s32.totalorder %s28, 0
      %p95 = por %p93, %p94
      %p96 = scmp.ne.s32.totalorder %s88, %s90
      %p97 = scmp.eq.s32.totalorder %s33, 1
      %p98 = por %p96, %p97
      %p99 = scmp.ne.s32.totalorder %s90, %s91
      %p100 = scmp.eq.s32.totalorder %s33, 0
      %p101 = por %p99, %p100
      %p102 = scmp.ne.s32.totalorder %s90, %s91
      %p103 = scmp.eq.s32.totalorder %s34, 1
      %p104 = por %p102, %p103
      %p106 = scmp.ne.s32.totalorder %s91, %s105
      %p107 = scmp.eq.s32.totalorder %s34, 0
      %p108 = por %p106, %p107
      %s110 = sadd.s32 %s109, 1
      %p113 = scmp.eq.s32.totalorder %s28, 1
      %p114 = scmp.ne.s32.totalorder %s109, %s111
      %p115 = scmp.eq.s32.totalorder %s28, 0
      %p116 = por %p114, %p115
      %p117 = scmp.ne.s32.totalorder %s109, %s111
      %p118 = scmp.eq.s32.totalorder %s33, 1
      %p119 = por %p117, %p118
      %p120 = scmp.ne.s32.totalorder %s111, %s112
      %p121 = scmp.eq.s32.totalorder %s33, 0
      %p122 = por %p120, %p121
      %p123 = scmp.ne.s32.totalorder %s111, %s112
      %p124 = scmp.eq.s32.totalorder %s34, 1
      %p125 = por %p123, %p124
      %p127 = scmp.ne.s32.totalorder %s112, %s126
      %p128 = scmp.eq.s32.totalorder %s34, 0
      %p129 = por %p127, %p128
      %s131 = sadd.s32 %s130, 1
      %p134 = scmp.eq.s32.totalorder %s28, 1
      %p135 = scmp.ne.s32.totalorder %s130, %s132
      %p136 = scmp.eq.s32.totalorder %s28, 0
      %p137 = por %p135, %p136
      %p138 = scmp.ne.s32.totalorder %s130, %s132
      %p139 = scmp.eq.s32.totalorder %s33, 1
      %p140 = por %p138, %p139
      %p141 = scmp.ne.s32.totalorder %s132, %s133
      %p142 = scmp.eq.s32.totalorder %s33, 0
      %p143 = por %p141, %p142
      %p144 = scmp.ne.s32.totalorder %s132, %s133
      %p145 = scmp.eq.s32.totalorder %s34, 1
      %p146 = por %p144, %p145
      %p148 = scmp.ne.s32.totalorder %s133, %s147
      %p149 = scmp.eq.s32.totalorder %s34, 0
      %p150 = por %p148, %p149
      %s152 = sadd.s32 %s151, 1
      %p155 = scmp.eq.s32.totalorder %s28, 1
      %p156 = scmp.ne.s32.totalorder %s151, %s153
      %p157 = scmp.eq.s32.totalorder %s28, 0
      %p158 = por %p156, %p157
      %p159 = scmp.ne.s32.totalorder %s151, %s153
      %p160 = scmp.eq.s32.totalorder %s33, 1
      %p161 = por %p159, %p160
      %p162 = scmp.ne.s32.totalorder %s153, %s154
      %p163 = scmp.eq.s32.totalorder %s33, 0
      %p164 = por %p162, %p163
      %p165 = scmp.ne.s32.totalorder %s153, %s154
      %p166 = scmp.eq.s32.totalorder %s34, 1
      %p167 = por %p165, %p166
      %p169 = scmp.ne.s32.totalorder %s154, %s168
      %p170 = scmp.eq.s32.totalorder %s34, 0
      %p171 = por %p169, %p170
      %s172 = ssub.s32 %s28, %s35
      %p173 = scmp.eq.s32.totalorder %s172, 0
      %s175 = sadd.s32 %s174, 1
      %s176 = scalar_select %p173, %s174, %s175
      %p179 = pneg %p173
      %p180 = scmp.eq.s32.totalorder %s28, 1
      %p181 = por %p179, %p180
      %p182 = scmp.ne.s32.totalorder %s174, %s177
      %p183 = scmp.eq.s32.totalorder %s28, 0
      %p184 = por %p182, %p183
      %p185 = scmp.ne.s32.totalorder %s174, %s177
      %p186 = scmp.eq.s32.totalorder %s33, 1
      %p187 = por %p185, %p186
      %p188 = scmp.ne.s32.totalorder %s177, %s178
      %p189 = scmp.eq.s32.totalorder %s33, 0
      %p190 = por %p188, %p189
      %p191 = scmp.ne.s32.totalorder %s177, %s178
      %p192 = scmp.eq.s32.totalorder %s34, 1
      %p193 = por %p191, %p192
      %p195 = scmp.ne.s32.totalorder %s178, %s194
      %p196 = scmp.eq.s32.totalorder %s34, 0
      %p197 = por %p195, %p196
      %s198 = ssub.s32 %s28, %s35
      %p199 = scmp.eq.s32.totalorder %s198, 0
      %s201 = sadd.s32 %s200, 1
      %s202 = scalar_select %p199, %s200, %s201
      %p205 = pneg %p199
      %p206 = scmp.eq.s32.totalorder %s28, 1
      %p207 = por %p205, %p206
      %p208 = scmp.ne.s32.totalorder %s200, %s203
      %p209 = scmp.eq.s32.totalorder %s28, 0
      %p210 = por %p208, %p209
      %p211 = scmp.ne.s32.totalorder %s200, %s203
      %p212 = scmp.eq.s32.totalorder %s33, 1
      %p213 = por %p211, %p212
      %p214 = scmp.ne.s32.totalorder %s203, %s204
      %p215 = scmp.eq.s32.totalorder %s33, 0
      %p216 = por %p214, %p215
      %p217 = scmp.ne.s32.totalorder %s203, %s204
      %p218 = scmp.eq.s32.totalorder %s34, 1
      %p219 = por %p217, %p218
      %p221 = scmp.ne.s32.totalorder %s204, %s220
      %p222 = scmp.eq.s32.totalorder %s34, 0
      %p223 = por %p221, %p222
      %p224 = scmp.le.s32.totalorder 1, %s28
      %p225 = scmp.lt.s32.totalorder %s28, 3
      %p226 = pnand %p224, %p225
      %p227 = pneg %p226
      // Predicated region
      $region9: #{tpu_custom_call.1} parent=5 // pred_check
        _
      $region10: #{tpu_custom_call.1} parent=5 // pred_check_branch
        %229 = sbr.rel (%p226) target = $region12
      $region11: #{tpu_custom_call.1} parent=5 // pred_region
        %s230 = ssub.s32 %s28, 1
        // Predicated region
        $region13: #{tpu_custom_call.1} parent=11 // pred_check
          %p231 = pneg %p101
        $region14: #{tpu_custom_call.1} parent=11 // pred_check_branch
          %233 = sbr.rel (%p231) target = $region16
        $region15: #{tpu_custom_call.1} parent=11 // pred_region
          %s235 = ssub.s32 12288, 12288
          %236 = vsyncadd [#allocation8], %s235
          %s237 = sshll.u32 [#allocation9], 4
          %s238 = int_to_ptr.vmem [resolvable:$true] %s237
          %243 = dma.hbm_to_vmem [thread:$0]  %s2, 12288, %s238, [#allocation8], 384, 384, 24
        $region16: #{tpu_custom_call.1} parent=11 // pred_fallthru
          _
        // Predicated region
        $region17: #{tpu_custom_call.1} parent=11 // pred_check
          %p244 = pneg %p122
        $region18: #{tpu_custom_call.1} parent=11 // pred_check_branch
          %246 = sbr.rel (%p244) target = $region20
        $region19: #{tpu_custom_call.1} parent=11 // pred_region
          %s248 = ssub.s32 12288, 12288
          %249 = vsyncadd [#allocation11], %s248
          %s250 = sshll.u32 [#allocation10], 4
          %s251 = int_to_ptr.vmem [resolvable:$true] %s250
          %256 = dma.hbm_to_vmem [thread:$0]  %s3, 12288, %s251, [#allocation11], 384, 384, 24
        $region20: #{tpu_custom_call.1} parent=11 // pred_fallthru
          _
        // Predicated region
        $region21: #{tpu_custom_call.1} parent=11 // pred_check
          %p257 = pneg %p143
        $region22: #{tpu_custom_call.1} parent=11 // pred_check_branch
          %259 = sbr.rel (%p257) target = $region24
        $region23: #{tpu_custom_call.1} parent=11 // pred_region
          %s261 = ssub.s32 4096, 4096
          %262 = vsyncadd [#allocation11], %s261
          %s263 = sshll.u32 [#allocation12], 4
          %s264 = int_to_ptr.vmem [resolvable:$true] %s263
          %269 = dma.hbm_to_vmem [thread:$0]  %s4, 4096, %s264, [#allocation11], 128, 128, 8
        $region24: #{tpu_custom_call.1} parent=11 // pred_fallthru
          _
        // Predicated region
        $region25: #{tpu_custom_call.1} parent=11 // pred_check
          %p270 = pneg %p164
        $region26: #{tpu_custom_call.1} parent=11 // pred_check_branch
          %272 = sbr.rel (%p270) target = $region28
        $region27: #{tpu_custom_call.1} parent=11 // pred_region
          %s274 = ssub.s32 4096, 4096
          %275 = vsyncadd [#allocation14], %s274
          %s276 = sshll.u32 [#allocation13], 4
          %s277 = int_to_ptr.vmem [resolvable:$true] %s276
          %282 = dma.hbm_to_vmem [thread:$0]  %s5, 4096, %s277, [#allocation14], 128, 128, 8
        $region28: #{tpu_custom_call.1} parent=11 // pred_fallthru
          _
      $region12: #{tpu_custom_call.1} parent=5 // pred_fallthru
        _
      %p283 = scmp.lt.s32.totalorder %s28, 2
      // Predicated region
      $region29: #{tpu_custom_call.1} parent=5 // pred_check
        %p284 = pneg %p283
      $region30: #{tpu_custom_call.1} parent=5 // pred_check_branch
        %286 = sbr.rel (%p284) target = $region32
      $region31: #{tpu_custom_call.1} parent=5 // pred_region
        // Predicated region
        $region33: #{tpu_custom_call.1} parent=31 // pred_check
          %p287 = pneg %p48
        $region34: #{tpu_custom_call.1} parent=31 // pred_check_branch
          %289 = sbr.rel (%p287) target = $region36
        $region35: #{tpu_custom_call.1} parent=31 // pred_region
          %s290 = sand.u32 %s38, 1
          %s291 = scalar_lea.sflag [#allocation5], %s290
          %s292 = sand.u32 %s38, 1
          %s293 = smul.addr %s292, 16
          %s294 = scalar_lea.vmem [#allocation4], %s293
          %s296 = ssub.s32 256, 256
          %297 = vsyncadd %s291, %s296
          %s298 = smul.addr %s28, 4
          %s299 = smul.addr %s298, 64
          %s300 = scalar_lea.hbm %s0, %s299
          %s301 = sshll.u32 %s294, 4
          %s302 = int_to_ptr.vmem [resolvable:$true] %s301
          %307 = dma.hbm_to_vmem [thread:$0]  %s300, 256, %s302, %s291, 128, 128, 8
        $region36: #{tpu_custom_call.1} parent=31 // pred_fallthru
          _
        // Predicated region
        $region37: #{tpu_custom_call.1} parent=31 // pred_check
          %p308 = pneg %p74
        $region38: #{tpu_custom_call.1} parent=31 // pred_check_branch
          %310 = sbr.rel (%p308) target = $region40
        $region39: #{tpu_custom_call.1} parent=31 // pred_region
          %s311 = sand.u32 %s28, 1
          %s312 = scalar_lea.sflag [#allocation8], %s311
          %s313 = sand.u32 %s64, 1
          %s314 = smul.addr %s313, 112
          %s315 = scalar_lea.vmem [#allocation7], %s314
          %s317 = ssub.s32 1792, 1792
          %318 = vsyncadd %s312, %s317
          %s319 = smul.addr %s28, 28
          %s320 = smul.addr %s319, 64
          %s321 = scalar_lea.hbm %s1, %s320
          %s322 = sshll.u32 %s315, 4
          %s323 = int_to_ptr.vmem [resolvable:$true] %s322
          %328 = dma.hbm_to_vmem [thread:$0]  %s321, 1792, %s323, %s312, 128, 128, 8
        $region40: #{tpu_custom_call.1} parent=31 // pred_fallthru
          _
      $region32: #{tpu_custom_call.1} parent=5 // pred_fallthru
        _
      %p329 = scmp.le.s32.totalorder 1, %s28
      %p330 = scmp.lt.s32.totalorder %s28, 3
      %p331 = pnand %p329, %p330
      %p332 = pneg %p331
      // Predicated region
      $region41: #{tpu_custom_call.1} parent=5 // pred_check
        _
      $region42: #{tpu_custom_call.1} parent=5 // pred_check_branch
        %334 = sbr.rel (%p331) target = $region44
      $region43: #{tpu_custom_call.1} parent=5 // pred_region
        %s335 = ssub.s32 %s28, 1
        %s336 = sand.u32 %s41, 1
        %s337 = scalar_lea.sflag [#allocation5], %s336
        %s338 = sand.u32 %s41, 1
        %s339 = smul.addr %s338, 16
        %s340 = scalar_lea.vmem [#allocation4], %s339
        // Predicated region
        $region45: #{tpu_custom_call.1} parent=43 // pred_check
          %p341 = pneg %p54
        $region46: #{tpu_custom_call.1} parent=43 // pred_check_branch
          %343 = sbr.rel (%p341) target = $region48
        $region47: #{tpu_custom_call.1} parent=43 // pred_region
          %344 = dma.done %s337, 256
        $region48: #{tpu_custom_call.1} parent=43 // pred_fallthru
          _
        %s345 = sand.u32 %s33, 1
        %s346 = scalar_lea.sflag [#allocation8], %s345
        %s347 = sand.u32 %s67, 1
        %s348 = smul.addr %s347, 112
        %s349 = scalar_lea.vmem [#allocation7], %s348
        // Predicated region
        $region49: #{tpu_custom_call.1} parent=43 // pred_check
          %p350 = pneg %p80
        $region50: #{tpu_custom_call.1} parent=43 // pred_check_branch
          %352 = sbr.rel (%p350) target = $region52
        $region51: #{tpu_custom_call.1} parent=43 // pred_region
          %353 = dma.done %s346, 1792
        $region52: #{tpu_custom_call.1} parent=43 // pred_fallthru
          _
        // Predicated region
        $region53: #{tpu_custom_call.1} parent=43 // pred_check
          %p354 = pneg %p101
        $region54: #{tpu_custom_call.1} parent=43 // pred_check_branch
          %356 = sbr.rel (%p354) target = $region56
        $region55: #{tpu_custom_call.1} parent=43 // pred_region
          %357 = dma.done [#allocation8], 12288
        $region56: #{tpu_custom_call.1} parent=43 // pred_fallthru
          _
        // Predicated region
        $region57: #{tpu_custom_call.1} parent=43 // pred_check
          %p358 = pneg %p122
        $region58: #{tpu_custom_call.1} parent=43 // pred_check_branch
          %360 = sbr.rel (%p358) target = $region60
        $region59: #{tpu_custom_call.1} parent=43 // pred_region
          %361 = dma.done [#allocation11], 12288
        $region60: #{tpu_custom_call.1} parent=43 // pred_fallthru
          _
        // Predicated region
        $region61: #{tpu_custom_call.1} parent=43 // pred_check
          %p362 = pneg %p143
        $region62: #{tpu_custom_call.1} parent=43 // pred_check_branch
          %364 = sbr.rel (%p362) target = $region64
        $region63: #{tpu_custom_call.1} parent=43 // pred_region
          %365 = dma.done [#allocation11], 4096
        $region64: #{tpu_custom_call.1} parent=43 // pred_fallthru
          _
        // Predicated region
        $region65: #{tpu_custom_call.1} parent=43 // pred_check
          %p366 = pneg %p164
        $region66: #{tpu_custom_call.1} parent=43 // pred_check_branch
          %368 = sbr.rel (%p366) target = $region68
        $region67: #{tpu_custom_call.1} parent=43 // pred_region
          %369 = dma.done [#allocation14], 4096
        $region68: #{tpu_custom_call.1} parent=43 // pred_fallthru
          _
        %s370 = sand.u32 %s41, 1
        %s371 = scalar_lea.sflag [#allocation5], %s370
        %s372 = sand.u32 %s41, 1
        %s373 = smul.addr %s372, 16
        %s374 = scalar_lea.vmem [#allocation4], %s373
        %p375 = pneg %p54
        %p376 = pneg %p51
        %s377 = sand.u32 %s33, 1
        %s378 = scalar_lea.sflag [#allocation8], %s377
        %s379 = sand.u32 %s67, 1
        %s380 = smul.addr %s379, 112
        %s381 = scalar_lea.vmem [#allocation7], %s380
        %p382 = pneg %p80
        %p383 = pneg %p77
        %p384 = pneg %p101
        %p385 = pneg %p98
        %p386 = pneg %p122
        %p387 = pneg %p119
        %p388 = pneg %p143
        %p389 = pneg %p140
        %p390 = pneg %p164
        %p391 = pneg %p161
        %p392 = pneg %p190
        %p393 = pneg %p187
        %s394 = sand.u32 %s177, 1
        %s395 = scalar_lea.sflag [#allocation6], %s394
        %s396 = sand.u32 %s177, 1
        %s397 = smul.addr %s396, 32
        %s398 = scalar_lea.vmem [#allocation15], %s397
        %p399 = pneg %p216
        %p400 = pneg %p213
        %s401 = sand.u32 %s203, 1
        %s402 = scalar_lea.sflag [#allocation17], %s401
        %s403 = sand.u32 %s203, 1
        %s404 = smul.addr %s403, 224
        %s405 = scalar_lea.vmem [#allocation16], %s404
        %v407 = vld [vmem:[%s340] sm:$0xff]
        %v408 = vld [vmem:[%s340 + $0x8] sm:$0xff]
        %v409 = vld [vmem:[%s349] sm:$0xff]
        %v410 = vld [vmem:[%s349 + $0x8] sm:$0xff]
        %v411 = vld [vmem:[%s349 + $0x10] sm:$0xff]
        %v412 = vld [vmem:[%s349 + $0x18] sm:$0xff]
        %v413 = vld [vmem:[%s349 + $0x20] sm:$0xff]
        %v414 = vld [vmem:[%s349 + $0x28] sm:$0xff]
        %v415 = vld [vmem:[%s349 + $0x30] sm:$0xff]
        %v416 = vld [vmem:[%s349 + $0x38] sm:$0xff]
        %v417 = vld [vmem:[%s349 + $0x40] sm:$0xff]
        %v418 = vld [vmem:[%s349 + $0x48] sm:$0xff]
        %v419 = vld [vmem:[%s349 + $0x50] sm:$0xff]
        %v420 = vld [vmem:[%s349 + $0x58] sm:$0xff]
        %v421 = vld [vmem:[%s349 + $0x60] sm:$0xff]
        %v422 = vld [vmem:[%s349 + $0x68] sm:$0xff]
        %v423 = vld [vmem:[#allocation9] sm:$0xff]
        %v424 = vld [vmem:[#allocation9 + $0x8] sm:$0xff]
        %v425 = vld [vmem:[#allocation9 + $0x10] sm:$0xff]
        %v426 = vld [vmem:[#allocation9 + $0x18] sm:$0xff]
        %v427 = vld [vmem:[#allocation9 + $0x20] sm:$0xff]
        %v428 = vld [vmem:[#allocation9 + $0x28] sm:$0xff]
        %v429 = vld [vmem:[#allocation9 + $0x30] sm:$0xff]
        %v430 = vld [vmem:[#allocation9 + $0x38] sm:$0xff]
        %v431 = vld [vmem:[#allocation9 + $0x40] sm:$0xff]
        %v432 = vld [vmem:[#allocation9 + $0x48] sm:$0xff]
        %v433 = vld [vmem:[#allocation9 + $0x50] sm:$0xff]
        %v434 = vld [vmem:[#allocation9 + $0x58] sm:$0xff]
        %v435 = vld [vmem:[#allocation9 + $0x60] sm:$0xff]
        %v436 = vld [vmem:[#allocation9 + $0x68] sm:$0xff]
        %v437 = vld [vmem:[#allocation9 + $0x70] sm:$0xff]
        %v438 = vld [vmem:[#allocation9 + $0x78] sm:$0xff]
        %v439 = vld [vmem:[#allocation9 + $0x80] sm:$0xff]
        %v440 = vld [vmem:[#allocation9 + $0x88] sm:$0xff]
        %v441 = vld [vmem:[#allocation9 + $0x90] sm:$0xff]
        %v442 = vld [vmem:[#allocation9 + $0x98] sm:$0xff]
        %v443 = vld [vmem:[#allocation9 + $0xa0] sm:$0xff]
        %v444 = vld [vmem:[#allocation9 + $0xa8] sm:$0xff]
        %v445 = vld [vmem:[#allocation9 + $0xb0] sm:$0xff]
        %v446 = vld [vmem:[#allocation9 + $0xb8] sm:$0xff]
        %v447 = vld [vmem:[#allocation9 + $0xc0] sm:$0xff]
        %v448 = vld [vmem:[#allocation9 + $0xc8] sm:$0xff]
        %v449 = vld [vmem:[#allocation9 + $0xd0] sm:$0xff]
        %v450 = vld [vmem:[#allocation9 + $0xd8] sm:$0xff]
        %v451 = vld [vmem:[#allocation9 + $0xe0] sm:$0xff]
        %v452 = vld [vmem:[#allocation9 + $0xe8] sm:$0xff]
        %v453 = vld [vmem:[#allocation9 + $0xf0] sm:$0xff]
        %v454 = vld [vmem:[#allocation9 + $0xf8] sm:$0xff]
        %v455 = vld [vmem:[#allocation9 + $0x100] sm:$0xff]
        %v456 = vld [vmem:[#allocation9 + $0x108] sm:$0xff]
        %v457 = vld [vmem:[#allocation9 + $0x110] sm:$0xff]
        %v458 = vld [vmem:[#allocation9 + $0x118] sm:$0xff]
        %v459 = vld [vmem:[#allocation9 + $0x120] sm:$0xff]
        %v460 = vld [vmem:[#allocation9 + $0x128] sm:$0xff]
        %v461 = vld [vmem:[#allocation9 + $0x130] sm:$0xff]
        %v462 = vld [vmem:[#allocation9 + $0x138] sm:$0xff]
        %v463 = vld [vmem:[#allocation9 + $0x140] sm:$0xff]
        %v464 = vld [vmem:[#allocation9 + $0x148] sm:$0xff]
        %v465 = vld [vmem:[#allocation9 + $0x150] sm:$0xff]
        %v466 = vld [vmem:[#allocation9 + $0x158] sm:$0xff]
        %v467 = vld [vmem:[#allocation9 + $0x160] sm:$0xff]
        %v468 = vld [vmem:[#allocation9 + $0x168] sm:$0xff]
        %v469 = vld [vmem:[#allocation9 + $0x170] sm:$0xff]
        %v470 = vld [vmem:[#allocation9 + $0x178] sm:$0xff]
        %v471 = vld [vmem:[#allocation9 + $0x180] sm:$0xff]
        %v472 = vld [vmem:[#allocation9 + $0x188] sm:$0xff]
        %v473 = vld [vmem:[#allocation9 + $0x190] sm:$0xff]
        %v474 = vld [vmem:[#allocation9 + $0x198] sm:$0xff]
        %v475 = vld [vmem:[#allocation9 + $0x1a0] sm:$0xff]
        %v476 = vld [vmem:[#allocation9 + $0x1a8] sm:$0xff]
        %v477 = vld [vmem:[#allocation9 + $0x1b0] sm:$0xff]
        %v478 = vld [vmem:[#allocation9 + $0x1b8] sm:$0xff]
        %v479 = vld [vmem:[#allocation9 + $0x1c0] sm:$0xff]
        %v480 = vld [vmem:[#allocation9 + $0x1c8] sm:$0xff]
        %v481 = vld [vmem:[#allocation9 + $0x1d0] sm:$0xff]
        %v482 = vld [vmem:[#allocation9 + $0x1d8] sm:$0xff]
        %v483 = vld [vmem:[#allocation9 + $0x1e0] sm:$0xff]
        %v484 = vld [vmem:[#allocation9 + $0x1e8] sm:$0xff]
        %v485 = vld [vmem:[#allocation9 + $0x1f0] sm:$0xff]
        %v486 = vld [vmem:[#allocation9 + $0x1f8] sm:$0xff]
        %v487 = vld [vmem:[#allocation9 + $0x200] sm:$0xff]
        %v488 = vld [vmem:[#allocation9 + $0x208] sm:$0xff]
        %v489 = vld [vmem:[#allocation9 + $0x210] sm:$0xff]
        %v490 = vld [vmem:[#allocation9 + $0x218] sm:$0xff]
        %v491 = vld [vmem:[#allocation9 + $0x220] sm:$0xff]
        %v492 = vld [vmem:[#allocation9 + $0x228] sm:$0xff]
        %v493 = vld [vmem:[#allocation9 + $0x230] sm:$0xff]
        %v494 = vld [vmem:[#allocation9 + $0x238] sm:$0xff]
        %v495 = vld [vmem:[#allocation9 + $0x240] sm:$0xff]
        %v496 = vld [vmem:[#allocation9 + $0x248] sm:$0xff]
        %v497 = vld [vmem:[#allocation9 + $0x250] sm:$0xff]
        %v498 = vld [vmem:[#allocation9 + $0x258] sm:$0xff]
        %v499 = vld [vmem:[#allocation9 + $0x260] sm:$0xff]
        %v500 = vld [vmem:[#allocation9 + $0x268] sm:$0xff]
        %v501 = vld [vmem:[#allocation9 + $0x270] sm:$0xff]
        %v502 = vld [vmem:[#allocation9 + $0x278] sm:$0xff]
        %v503 = vld [vmem:[#allocation9 + $0x280] sm:$0xff]
        %v504 = vld [vmem:[#allocation9 + $0x288] sm:$0xff]
        %v505 = vld [vmem:[#allocation9 + $0x290] sm:$0xff]
        %v506 = vld [vmem:[#allocation9 + $0x298] sm:$0xff]
        %v507 = vld [vmem:[#allocation9 + $0x2a0] sm:$0xff]
        %v508 = vld [vmem:[#allocation9 + $0x2a8] sm:$0xff]
        %v509 = vld [vmem:[#allocation9 + $0x2b0] sm:$0xff]
        %v510 = vld [vmem:[#allocation9 + $0x2b8] sm:$0xff]
        %v511 = vld [vmem:[#allocation9 + $0x2c0] sm:$0xff]
        %v512 = vld [vmem:[#allocation9 + $0x2c8] sm:$0xff]
        %v513 = vld [vmem:[#allocation9 + $0x2d0] sm:$0xff]
        %v514 = vld [vmem:[#allocation9 + $0x2d8] sm:$0xff]
        %v515 = vld [vmem:[#allocation9 + $0x2e0] sm:$0xff]
        %v516 = vld [vmem:[#allocation9 + $0x2e8] sm:$0xff]
        %v517 = vld [vmem:[#allocation9 + $0x2f0] sm:$0xff]
        %v518 = vld [vmem:[#allocation9 + $0x2f8] sm:$0xff]
        %v521 = vunpack.c.l.b16 %v407
        %v522 = vunpack.c.h.b16 %v407
        %v523 = vunpack.c.l.b16 %v408
        %v524 = vunpack.c.h.b16 %v408
        %v525 = vpack.c.b16 %v523, %v521
        %v526 = vpack.c.b16 %v524, %v522
        %v625 = vunpack.c.l.b16 %v423
        %v626 = vunpack.c.h.b16 %v423
        %v627 = vunpack.c.l.b16 %v424
        %v628 = vunpack.c.h.b16 %v424
        %v629 = vunpack.c.l.b16 %v425
        %v630 = vunpack.c.h.b16 %v425
        %v631 = vunpack.c.l.b16 %v426
        %v632 = vunpack.c.h.b16 %v426
        %v633 = vunpack.c.l.b16 %v427
        %v634 = vunpack.c.h.b16 %v427
        %v635 = vunpack.c.l.b16 %v428
        %v636 = vunpack.c.h.b16 %v428
        %v637 = vunpack.c.l.b16 %v429
        %v638 = vunpack.c.h.b16 %v429
        %v639 = vunpack.c.l.b16 %v430
        %v640 = vunpack.c.h.b16 %v430
        %v641 = vunpack.c.l.b16 %v431
        %v642 = vunpack.c.h.b16 %v431
        %v643 = vunpack.c.l.b16 %v432
        %v644 = vunpack.c.h.b16 %v432
        %v645 = vunpack.c.l.b16 %v433
        %v646 = vunpack.c.h.b16 %v433
        %v647 = vunpack.c.l.b16 %v434
        %v648 = vunpack.c.h.b16 %v434
        %v649 = vunpack.c.l.b16 %v435
        %v650 = vunpack.c.h.b16 %v435
        %v651 = vunpack.c.l.b16 %v436
        %v652 = vunpack.c.h.b16 %v436
        %v653 = vunpack.c.l.b16 %v437
        %v654 = vunpack.c.h.b16 %v437
        %v655 = vunpack.c.l.b16 %v438
        %v656 = vunpack.c.h.b16 %v438
        %v657 = vunpack.c.l.b16 %v439
        %v658 = vunpack.c.h.b16 %v439
        %v659 = vunpack.c.l.b16 %v440
        %v660 = vunpack.c.h.b16 %v440
        %v661 = vunpack.c.l.b16 %v441
        %v662 = vunpack.c.h.b16 %v441
        %v663 = vunpack.c.l.b16 %v442
        %v664 = vunpack.c.h.b16 %v442
        %v665 = vunpack.c.l.b16 %v443
        %v666 = vunpack.c.h.b16 %v443
        %v667 = vunpack.c.l.b16 %v444
        %v668 = vunpack.c.h.b16 %v444
        %v669 = vunpack.c.l.b16 %v445
        %v670 = vunpack.c.h.b16 %v445
        %v671 = vunpack.c.l.b16 %v446
        %v672 = vunpack.c.h.b16 %v446
        %v673 = vunpack.c.l.b16 %v447
        %v674 = vunpack.c.h.b16 %v447
        %v675 = vunpack.c.l.b16 %v448
        %v676 = vunpack.c.h.b16 %v448
        %v677 = vunpack.c.l.b16 %v449
        %v678 = vunpack.c.h.b16 %v449
        %v679 = vunpack.c.l.b16 %v450
        %v680 = vunpack.c.h.b16 %v450
        %v681 = vunpack.c.l.b16 %v451
        %v682 = vunpack.c.h.b16 %v451
        %v683 = vunpack.c.l.b16 %v452
        %v684 = vunpack.c.h.b16 %v452
        %v685 = vunpack.c.l.b16 %v453
        %v686 = vunpack.c.h.b16 %v453
        %v687 = vunpack.c.l.b16 %v454
        %v688 = vunpack.c.h.b16 %v454
        %v689 = vunpack.c.l.b16 %v455
        %v690 = vunpack.c.h.b16 %v455
        %v691 = vunpack.c.l.b16 %v456
        %v692 = vunpack.c.h.b16 %v456
        %v693 = vunpack.c.l.b16 %v457
        %v694 = vunpack.c.h.b16 %v457
        %v695 = vunpack.c.l.b16 %v458
        %v696 = vunpack.c.h.b16 %v458
        %v697 = vunpack.c.l.b16 %v459
        %v698 = vunpack.c.h.b16 %v459
        %v699 = vunpack.c.l.b16 %v460
        %v700 = vunpack.c.h.b16 %v460
        %v701 = vunpack.c.l.b16 %v461
        %v702 = vunpack.c.h.b16 %v461
        %v703 = vunpack.c.l.b16 %v462
        %v704 = vunpack.c.h.b16 %v462
        %v705 = vunpack.c.l.b16 %v463
        %v706 = vunpack.c.h.b16 %v463
        %v707 = vunpack.c.l.b16 %v464
        %v708 = vunpack.c.h.b16 %v464
        %v709 = vunpack.c.l.b16 %v465
        %v710 = vunpack.c.h.b16 %v465
        %v711 = vunpack.c.l.b16 %v466
        %v712 = vunpack.c.h.b16 %v466
        %v713 = vunpack.c.l.b16 %v467
        %v714 = vunpack.c.h.b16 %v467
        %v715 = vunpack.c.l.b16 %v468
        %v716 = vunpack.c.h.b16 %v468
        %v717 = vunpack.c.l.b16 %v469
        %v718 = vunpack.c.h.b16 %v469
        %v719 = vunpack.c.l.b16 %v470
        %v720 = vunpack.c.h.b16 %v470
        %v721 = vunpack.c.l.b16 %v471
        %v722 = vunpack.c.h.b16 %v471
        %v723 = vunpack.c.l.b16 %v472
        %v724 = vunpack.c.h.b16 %v472
        %v725 = vunpack.c.l.b16 %v473
        %v726 = vunpack.c.h.b16 %v473
        %v727 = vunpack.c.l.b16 %v474
        %v728 = vunpack.c.h.b16 %v474
        %v729 = vunpack.c.l.b16 %v475
        %v730 = vunpack.c.h.b16 %v475
        %v731 = vunpack.c.l.b16 %v476
        %v732 = vunpack.c.h.b16 %v476
        %v733 = vunpack.c.l.b16 %v477
        %v734 = vunpack.c.h.b16 %v477
        %v735 = vunpack.c.l.b16 %v478
        %v736 = vunpack.c.h.b16 %v478
        %v737 = vunpack.c.l.b16 %v479
        %v738 = vunpack.c.h.b16 %v479
        %v739 = vunpack.c.l.b16 %v480
        %v740 = vunpack.c.h.b16 %v480
        %v741 = vunpack.c.l.b16 %v481
        %v742 = vunpack.c.h.b16 %v481
        %v743 = vunpack.c.l.b16 %v482
        %v744 = vunpack.c.h.b16 %v482
        %v745 = vunpack.c.l.b16 %v483
        %v746 = vunpack.c.h.b16 %v483
        %v747 = vunpack.c.l.b16 %v484
        %v748 = vunpack.c.h.b16 %v484
        %v749 = vunpack.c.l.b16 %v485
        %v750 = vunpack.c.h.b16 %v485
        %v751 = vunpack.c.l.b16 %v486
        %v752 = vunpack.c.h.b16 %v486
        %v753 = vunpack.c.l.b16 %v487
        %v754 = vunpack.c.h.b16 %v487
        %v755 = vunpack.c.l.b16 %v488
        %v756 = vunpack.c.h.b16 %v488
        %v757 = vunpack.c.l.b16 %v489
        %v758 = vunpack.c.h.b16 %v489
        %v759 = vunpack.c.l.b16 %v490
        %v760 = vunpack.c.h.b16 %v490
        %v761 = vunpack.c.l.b16 %v491
        %v762 = vunpack.c.h.b16 %v491
        %v763 = vunpack.c.l.b16 %v492
        %v764 = vunpack.c.h.b16 %v492
        %v765 = vunpack.c.l.b16 %v493
        %v766 = vunpack.c.h.b16 %v493
        %v767 = vunpack.c.l.b16 %v494
        %v768 = vunpack.c.h.b16 %v494
        %v769 = vunpack.c.l.b16 %v495
        %v770 = vunpack.c.h.b16 %v495
        %v771 = vunpack.c.l.b16 %v496
        %v772 = vunpack.c.h.b16 %v496
        %v773 = vunpack.c.l.b16 %v497
        %v774 = vunpack.c.h.b16 %v497
        %v775 = vunpack.c.l.b16 %v498
        %v776 = vunpack.c.h.b16 %v498
        %v777 = vunpack.c.l.b16 %v499
        %v778 = vunpack.c.h.b16 %v499
        %v779 = vunpack.c.l.b16 %v500
        %v780 = vunpack.c.h.b16 %v500
        %v781 = vunpack.c.l.b16 %v501
        %v782 = vunpack.c.h.b16 %v501
        %v783 = vunpack.c.l.b16 %v502
        %v784 = vunpack.c.h.b16 %v502
        %v785 = vunpack.c.l.b16 %v503
        %v786 = vunpack.c.h.b16 %v503
        %v787 = vunpack.c.l.b16 %v504
        %v788 = vunpack.c.h.b16 %v504
        %v789 = vunpack.c.l.b16 %v505
        %v790 = vunpack.c.h.b16 %v505
        %v791 = vunpack.c.l.b16 %v506
        %v792 = vunpack.c.h.b16 %v506
        %v793 = vunpack.c.l.b16 %v507
        %v794 = vunpack.c.h.b16 %v507
        %v795 = vunpack.c.l.b16 %v508
        %v796 = vunpack.c.h.b16 %v508
        %v797 = vunpack.c.l.b16 %v509
        %v798 = vunpack.c.h.b16 %v509
        %v799 = vunpack.c.l.b16 %v510
        %v800 = vunpack.c.h.b16 %v510
        %v801 = vunpack.c.l.b16 %v511
        %v802 = vunpack.c.h.b16 %v511
        %v803 = vunpack.c.l.b16 %v512
        %v804 = vunpack.c.h.b16 %v512
        %v805 = vunpack.c.l.b16 %v513
        %v806 = vunpack.c.h.b16 %v513
        %v807 = vunpack.c.l.b16 %v514
        %v808 = vunpack.c.h.b16 %v514
        %v809 = vunpack.c.l.b16 %v515
        %v810 = vunpack.c.h.b16 %v515
        %v811 = vunpack.c.l.b16 %v516
        %v812 = vunpack.c.h.b16 %v516
        %v813 = vunpack.c.l.b16 %v517
        %v814 = vunpack.c.h.b16 %v517
        %v815 = vunpack.c.l.b16 %v518
        %v816 = vunpack.c.h.b16 %v518
        %v817 = vpack.c.b16 %v631, %v625
        %v818 = vpack.c.b16 %v632, %v626
        %v819 = vpack.c.b16 %v633, %v627
        %v820 = vpack.c.b16 %v634, %v628
        %v821 = vpack.c.b16 %v635, %v629
        %v822 = vpack.c.b16 %v636, %v630
        %v823 = vpack.c.b16 %v643, %v637
        %v824 = vpack.c.b16 %v644, %v638
        %v825 = vpack.c.b16 %v645, %v639
        %v826 = vpack.c.b16 %v646, %v640
        %v827 = vpack.c.b16 %v647, %v641
        %v828 = vpack.c.b16 %v648, %v642
        %v829 = vpack.c.b16 %v655, %v649
        %v830 = vpack.c.b16 %v656, %v650
        %v831 = vpack.c.b16 %v657, %v651
        %v832 = vpack.c.b16 %v658, %v652
        %v833 = vpack.c.b16 %v659, %v653
        %v834 = vpack.c.b16 %v660, %v654
        %v835 = vpack.c.b16 %v667, %v661
        %v836 = vpack.c.b16 %v668, %v662
        %v837 = vpack.c.b16 %v669, %v663
        %v838 = vpack.c.b16 %v670, %v664
        %v839 = vpack.c.b16 %v671, %v665
        %v840 = vpack.c.b16 %v672, %v666
        %v841 = vpack.c.b16 %v679, %v673
        %v842 = vpack.c.b16 %v680, %v674
        %v843 = vpack.c.b16 %v681, %v675
        %v844 = vpack.c.b16 %v682, %v676
        %v845 = vpack.c.b16 %v683, %v677
        %v846 = vpack.c.b16 %v684, %v678
        %v847 = vpack.c.b16 %v691, %v685
        %v848 = vpack.c.b16 %v692, %v686
        %v849 = vpack.c.b16 %v693, %v687
        %v850 = vpack.c.b16 %v694, %v688
        %v851 = vpack.c.b16 %v695, %v689
        %v852 = vpack.c.b16 %v696, %v690
        %v853 = vpack.c.b16 %v703, %v697
        %v854 = vpack.c.b16 %v704, %v698
        %v855 = vpack.c.b16 %v705, %v699
        %v856 = vpack.c.b16 %v706, %v700
        %v857 = vpack.c.b16 %v707, %v701
        %v858 = vpack.c.b16 %v708, %v702
        %v859 = vpack.c.b16 %v715, %v709
        %v860 = vpack.c.b16 %v716, %v710
        %v861 = vpack.c.b16 %v717, %v711
        %v862 = vpack.c.b16 %v718, %v712
        %v863 = vpack.c.b16 %v719, %v713
        %v864 = vpack.c.b16 %v720, %v714
        %v865 = vpack.c.b16 %v727, %v721
        %v866 = vpack.c.b16 %v728, %v722
        %v867 = vpack.c.b16 %v729, %v723
        %v868 = vpack.c.b16 %v730, %v724
        %v869 = vpack.c.b16 %v731, %v725
        %v870 = vpack.c.b16 %v732, %v726
        %v871 = vpack.c.b16 %v739, %v733
        %v872 = vpack.c.b16 %v740, %v734
        %v873 = vpack.c.b16 %v741, %v735
        %v874 = vpack.c.b16 %v742, %v736
        %v875 = vpack.c.b16 %v743, %v737
        %v876 = vpack.c.b16 %v744, %v738
        %v877 = vpack.c.b16 %v751, %v745
        %v878 = vpack.c.b16 %v752, %v746
        %v879 = vpack.c.b16 %v753, %v747
        %v880 = vpack.c.b16 %v754, %v748
        %v881 = vpack.c.b16 %v755, %v749
        %v882 = vpack.c.b16 %v756, %v750
        %v883 = vpack.c.b16 %v763, %v757
        %v884 = vpack.c.b16 %v764, %v758
        %v885 = vpack.c.b16 %v765, %v759
        %v886 = vpack.c.b16 %v766, %v760
        %v887 = vpack.c.b16 %v767, %v761
        %v888 = vpack.c.b16 %v768, %v762
        %v889 = vpack.c.b16 %v775, %v769
        %v890 = vpack.c.b16 %v776, %v770
        %v891 = vpack.c.b16 %v777, %v771
        %v892 = vpack.c.b16 %v778, %v772
        %v893 = vpack.c.b16 %v779, %v773
        %v894 = vpack.c.b16 %v780, %v774
        %v895 = vpack.c.b16 %v787, %v781
        %v896 = vpack.c.b16 %v788, %v782
        %v897 = vpack.c.b16 %v789, %v783
        %v898 = vpack.c.b16 %v790, %v784
        %v899 = vpack.c.b16 %v791, %v785
        %v900 = vpack.c.b16 %v792, %v786
        %v901 = vpack.c.b16 %v799, %v793
        %v902 = vpack.c.b16 %v800, %v794
        %v903 = vpack.c.b16 %v801, %v795
        %v904 = vpack.c.b16 %v802, %v796
        %v905 = vpack.c.b16 %v803, %v797
        %v906 = vpack.c.b16 %v804, %v798
        %v907 = vpack.c.b16 %v811, %v805
        %v908 = vpack.c.b16 %v812, %v806
        %v909 = vpack.c.b16 %v813, %v807
        %v910 = vpack.c.b16 %v814, %v808
        %v911 = vpack.c.b16 %v815, %v809
        %v912 = vpack.c.b16 %v816, %v810
        %1009 = vmatprep.subr.bf16.mxu0 %v818
        %1010 = vmatpush1.bf16.msra.mxu0 %v817
        %1011 = vmatprep.subr.bf16.mxu0 %v824
        %1012 = vmatpush1.bf16.msra.mxu0 %v823
        %1013 = vmatprep.subr.bf16.mxu0 %v830
        %1014 = vmatpush1.bf16.msra.mxu0 %v829
        %1015 = vmatprep.subr.bf16.mxu0 %v836
        %1016 = vmatpush1.bf16.msra.mxu0 %v835
        %1017 = vmatprep.subr.bf16.mxu0 %v842
        %1018 = vmatpush1.bf16.msra.mxu0 %v841
        %1019 = vmatprep.subr.bf16.mxu0 %v848
        %1020 = vmatpush1.bf16.msra.mxu0 %v847
        %1021 = vmatprep.subr.bf16.mxu0 %v854
        %1022 = vmatpush1.bf16.msra.mxu0 %v853
        %1023 = vmatprep.subr.bf16.mxu0 %v860
        %1024 = vmatpush1.bf16.msra.mxu0 %v859
        %1025 = vmatprep.subr.bf16.mxu0 %v866
        %1026 = vmatpush1.bf16.msra.mxu0 %v865
        %1027 = vmatprep.subr.bf16.mxu0 %v872
        %1028 = vmatpush1.bf16.msra.mxu0 %v871
        %1029 = vmatprep.subr.bf16.mxu0 %v878
        %1030 = vmatpush1.bf16.msra.mxu0 %v877
        %1031 = vmatprep.subr.bf16.mxu0 %v884
        %1032 = vmatpush1.bf16.msra.mxu0 %v883
        %1033 = vmatprep.subr.bf16.mxu0 %v890
        %1034 = vmatpush1.bf16.msra.mxu0 %v889
        %1035 = vmatprep.subr.bf16.mxu0 %v896
        %1036 = vmatpush1.bf16.msra.mxu0 %v895
        %1037 = vmatprep.subr.bf16.mxu0 %v902
        %1038 = vmatpush1.bf16.msra.mxu0 %v901
        %1039 = vmatprep.subr.bf16.mxu0 %v908
        %1040 = vmatpush1.bf16.msra.mxu0 %v907
        %1041 = vmatprep.mubr.bf16.mxu0 %v526
        %1042 = vmatmul.mubr.bf16.gmra.mrb[0].mxu0 %v525
        %v1043 = vpop.f32.mrb[0].mxu0
        %v1044 = vadd.f32 0.0, %v1043
        %v1045 = vpop.f32.mrb[0].mxu0
        %v1046 = vadd.f32 0.0, %v1045
        %v1047 = vpop.f32.mrb[0].mxu0
        %v1048 = vadd.f32 0.0, %v1047
        %v1049 = vpop.f32.mrb[0].mxu0
        %v1050 = vadd.f32 0.0, %v1049
        %1051 = vdwg.mxu0
        %1052 = vmatprep.subr.bf16.mxu0 %v820
        %1053 = vmatpush1.bf16.msra.mxu0 %v819
        %1054 = vmatprep.subr.bf16.mxu0 %v826
        %1055 = vmatpush1.bf16.msra.mxu0 %v825
        %1056 = vmatprep.subr.bf16.mxu0 %v832
        %1057 = vmatpush1.bf16.msra.mxu0 %v831
        %1058 = vmatprep.subr.bf16.mxu0 %v838
        %1059 = vmatpush1.bf16.msra.mxu0 %v837
        %1060 = vmatprep.subr.bf16.mxu0 %v844
        %1061 = vmatpush1.bf16.msra.mxu0 %v843
        %1062 = vmatprep.subr.bf16.mxu0 %v850
        %1063 = vmatpush1.bf16.msra.mxu0 %v849
        %1064 = vmatprep.subr.bf16.mxu0 %v856
        %1065 = vmatpush1.bf16.msra.mxu0 %v855
        %1066 = vmatprep.subr.bf16.mxu0 %v862
        %1067 = vmatpush1.bf16.msra.mxu0 %v861
        %1068 = vmatprep.subr.bf16.mxu0 %v868
        %1069 = vmatpush1.bf16.msra.mxu0 %v867
        %1070 = vmatprep.subr.bf16.mxu0 %v874
        %1071 = vmatpush1.bf16.msra.mxu0 %v873
        %1072 = vmatprep.subr.bf16.mxu0 %v880
        %1073 = vmatpush1.bf16.msra.mxu0 %v879
        %1074 = vmatprep.subr.bf16.mxu0 %v886
        %1075 = vmatpush1.bf16.msra.mxu0 %v885
        %1076 = vmatprep.subr.bf16.mxu0 %v892
        %1077 = vmatpush1.bf16.msra.mxu0 %v891
        %1078 = vmatprep.subr.bf16.mxu0 %v898
        %1079 = vmatpush1.bf16.msra.mxu0 %v897
        %1080 = vmatprep.subr.bf16.mxu0 %v904
        %1081 = vmatpush1.bf16.msra.mxu0 %v903
        %1082 = vmatprep.subr.bf16.mxu0 %v910
        %1083 = vmatpush1.bf16.msra.mxu0 %v909
        %1084 = vmatprep.mubr.bf16.mxu0 %v526
        %1085 = vmatmul.mubr.bf16.gmra.mrb[0].mxu0 %v525
        %v1086 = vpop.f32.mrb[0].mxu0
        %v1087 = vadd.f32 0.0, %v1086
        %v1088 = vpop.f32.mrb[0].mxu0
        %v1089 = vadd.f32 0.0, %v1088
        %v1090 = vpop.f32.mrb[0].mxu0
        %v1091 = vadd.f32 0.0, %v1090
        %v1092 = vpop.f32.mrb[0].mxu0
        %v1093 = vadd.f32 0.0, %v1092
        %1094 = vdwg.mxu0
        %1095 = vmatprep.subr.bf16.mxu0 %v822
        %1096 = vmatpush1.bf16.msra.mxu0 %v821
        %1097 = vmatprep.subr.bf16.mxu0 %v828
        %1098 = vmatpush1.bf16.msra.mxu0 %v827
        %1099 = vmatprep.subr.bf16.mxu0 %v834
        %1100 = vmatpush1.bf16.msra.mxu0 %v833
        %1101 = vmatprep.subr.bf16.mxu0 %v840
        %1102 = vmatpush1.bf16.msra.mxu0 %v839
        %1103 = vmatprep.subr.bf16.mxu0 %v846
        %1104 = vmatpush1.bf16.msra.mxu0 %v845
        %1105 = vmatprep.subr.bf16.mxu0 %v852
        %1106 = vmatpush1.bf16.msra.mxu0 %v851
        %1107 = vmatprep.subr.bf16.mxu0 %v858
        %1108 = vmatpush1.bf16.msra.mxu0 %v857
        %1109 = vmatprep.subr.bf16.mxu0 %v864
        %1110 = vmatpush1.bf16.msra.mxu0 %v863
        %1111 = vmatprep.subr.bf16.mxu0 %v870
        %1112 = vmatpush1.bf16.msra.mxu0 %v869
        %1113 = vmatprep.subr.bf16.mxu0 %v876
        %1114 = vmatpush1.bf16.msra.mxu0 %v875
        %1115 = vmatprep.subr.bf16.mxu0 %v882
        %1116 = vmatpush1.bf16.msra.mxu0 %v881
        %1117 = vmatprep.subr.bf16.mxu0 %v888
        %1118 = vmatpush1.bf16.msra.mxu0 %v887
        %1119 = vmatprep.subr.bf16.mxu0 %v894
        %1120 = vmatpush1.bf16.msra.mxu0 %v893
        %1121 = vmatprep.subr.bf16.mxu0 %v900
        %1122 = vmatpush1.bf16.msra.mxu0 %v899
        %1123 = vmatprep.subr.bf16.mxu0 %v906
        %1124 = vmatpush1.bf16.msra.mxu0 %v905
        %1125 = vmatprep.subr.bf16.mxu0 %v912
        %1126 = vmatpush1.bf16.msra.mxu0 %v911
        %1127 = vmatprep.mubr.bf16.mxu0 %v526
        %1128 = vmatmul.mubr.bf16.gmra.mrb[0].mxu0 %v525
        %v1129 = vpop.f32.mrb[0].mxu0
        %v1130 = vadd.f32 0.0, %v1129
        %v1131 = vpop.f32.mrb[0].mxu0
        %v1132 = vadd.f32 0.0, %v1131
        %v1133 = vpop.f32.mrb[0].mxu0
        %v1134 = vadd.f32 0.0, %v1133
        %v1135 = vpop.f32.mrb[0].mxu0
        %v1136 = vadd.f32 0.0, %v1135
        %1137 = vdwg.mxu0
        %1138 = vst [vmem:[#allocation2] sm:$0xff] %v1044
        %1139 = vst [vmem:[#allocation2 + $0x8] sm:$0xff] %v1046
        %1140 = vst [vmem:[#allocation2 + $0x10] sm:$0xff] %v1087
        %1141 = vst [vmem:[#allocation2 + $0x18] sm:$0xff] %v1089
        %1142 = vst [vmem:[#allocation2 + $0x20] sm:$0xff] %v1130
        %1143 = vst [vmem:[#allocation2 + $0x28] sm:$0xff] %v1132
        %1144 = vst [vmem:[#allocation2 + $0x30] sm:$0xff] %v1048
        %1145 = vst [vmem:[#allocation2 + $0x38] sm:$0xff] %v1050
        %1146 = vst [vmem:[#allocation2 + $0x40] sm:$0xff] %v1091
        %1147 = vst [vmem:[#allocation2 + $0x48] sm:$0xff] %v1093
        %1148 = vst [vmem:[#allocation2 + $0x50] sm:$0xff] %v1134
        %1149 = vst [vmem:[#allocation2 + $0x58] sm:$0xff] %v1136
        %v1150 = vld [vmem:[#allocation10] sm:$0xff]
        %v1151 = vld [vmem:[#allocation10 + $0x8] sm:$0xff]
        %v1152 = vld [vmem:[#allocation10 + $0x10] sm:$0xff]
        %v1153 = vld [vmem:[#allocation10 + $0x18] sm:$0xff]
        %v1154 = vld [vmem:[#allocation10 + $0x20] sm:$0xff]
        %v1155 = vld [vmem:[#allocation10 + $0x28] sm:$0xff]
        %v1156 = vld [vmem:[#allocation10 + $0x30] sm:$0xff]
        %v1157 = vld [vmem:[#allocation10 + $0x38] sm:$0xff]
        %v1158 = vld [vmem:[#allocation10 + $0x40] sm:$0xff]
        %v1159 = vld [vmem:[#allocation10 + $0x48] sm:$0xff]
        %v1160 = vld [vmem:[#allocation10 + $0x50] sm:$0xff]
        %v1161 = vld [vmem:[#allocation10 + $0x58] sm:$0xff]
        %v1162 = vld [vmem:[#allocation10 + $0x60] sm:$0xff]
        %v1163 = vld [vmem:[#allocation10 + $0x68] sm:$0xff]
        %v1164 = vld [vmem:[#allocation10 + $0x70] sm:$0xff]
        %v1165 = vld [vmem:[#allocation10 + $0x78] sm:$0xff]
        %v1166 = vld [vmem:[#allocation10 + $0x80] sm:$0xff]
        %v1167 = vld [vmem:[#allocation10 + $0x88] sm:$0xff]
        %v1168 = vld [vmem:[#allocation10 + $0x90] sm:$0xff]
        %v1169 = vld [vmem:[#allocation10 + $0x98] sm:$0xff]
        %v1170 = vld [vmem:[#allocation10 + $0xa0] sm:$0xff]
        %v1171 = vld [vmem:[#allocation10 + $0xa8] sm:$0xff]
        %v1172 = vld [vmem:[#allocation10 + $0xb0] sm:$0xff]
        %v1173 = vld [vmem:[#allocation10 + $0xb8] sm:$0xff]
        %v1174 = vld [vmem:[#allocation10 + $0xc0] sm:$0xff]
        %v1175 = vld [vmem:[#allocation10 + $0xc8] sm:$0xff]
        %v1176 = vld [vmem:[#allocation10 + $0xd0] sm:$0xff]
        %v1177 = vld [vmem:[#allocation10 + $0xd8] sm:$0xff]
        %v1178 = vld [vmem:[#allocation10 + $0xe0] sm:$0xff]
        %v1179 = vld [vmem:[#allocation10 + $0xe8] sm:$0xff]
        %v1180 = vld [vmem:[#allocation10 + $0xf0] sm:$0xff]
        %v1181 = vld [vmem:[#allocation10 + $0xf8] sm:$0xff]
        %v1182 = vld [vmem:[#allocation10 + $0x100] sm:$0xff]
        %v1183 = vld [vmem:[#allocation10 + $0x108] sm:$0xff]
        %v1184 = vld [vmem:[#allocation10 + $0x110] sm:$0xff]
        %v1185 = vld [vmem:[#allocation10 + $0x118] sm:$0xff]
        %v1186 = vld [vmem:[#allocation10 + $0x120] sm:$0xff]
        %v1187 = vld [vmem:[#allocation10 + $0x128] sm:$0xff]
        %v1188 = vld [vmem:[#allocation10 + $0x130] sm:$0xff]
        %v1189 = vld [vmem:[#allocation10 + $0x138] sm:$0xff]
        %v1190 = vld [vmem:[#allocation10 + $0x140] sm:$0xff]
        %v1191 = vld [vmem:[#allocation10 + $0x148] sm:$0xff]
        %v1192 = vld [vmem:[#allocation10 + $0x150] sm:$0xff]
        %v1193 = vld [vmem:[#allocation10 + $0x158] sm:$0xff]
        %v1194 = vld [vmem:[#allocation10 + $0x160] sm:$0xff]
        %v1195 = vld [vmem:[#allocation10 + $0x168] sm:$0xff]
        %v1196 = vld [vmem:[#allocation10 + $0x170] sm:$0xff]
        %v1197 = vld [vmem:[#allocation10 + $0x178] sm:$0xff]
        %v1198 = vld [vmem:[#allocation10 + $0x180] sm:$0xff]
        %v1199 = vld [vmem:[#allocation10 + $0x188] sm:$0xff]
        %v1200 = vld [vmem:[#allocation10 + $0x190] sm:$0xff]
        %v1201 = vld [vmem:[#allocation10 + $0x198] sm:$0xff]
        %v1202 = vld [vmem:[#allocation10 + $0x1a0] sm:$0xff]
        %v1203 = vld [vmem:[#allocation10 + $0x1a8] sm:$0xff]
        %v1204 = vld [vmem:[#allocation10 + $0x1b0] sm:$0xff]
        %v1205 = vld [vmem:[#allocation10 + $0x1b8] sm:$0xff]
        %v1206 = vld [vmem:[#allocation10 + $0x1c0] sm:$0xff]
        %v1207 = vld [vmem:[#allocation10 + $0x1c8] sm:$0xff]
        %v1208 = vld [vmem:[#allocation10 + $0x1d0] sm:$0xff]
        %v1209 = vld [vmem:[#allocation10 + $0x1d8] sm:$0xff]
        %v1210 = vld [vmem:[#allocation10 + $0x1e0] sm:$0xff]
        %v1211 = vld [vmem:[#allocation10 + $0x1e8] sm:$0xff]
        %v1212 = vld [vmem:[#allocation10 + $0x1f0] sm:$0xff]
        %v1213 = vld [vmem:[#allocation10 + $0x1f8] sm:$0xff]
        %v1214 = vld [vmem:[#allocation10 + $0x200] sm:$0xff]
        %v1215 = vld [vmem:[#allocation10 + $0x208] sm:$0xff]
        %v1216 = vld [vmem:[#allocation10 + $0x210] sm:$0xff]
        %v1217 = vld [vmem:[#allocation10 + $0x218] sm:$0xff]
        %v1218 = vld [vmem:[#allocation10 + $0x220] sm:$0xff]
        %v1219 = vld [vmem:[#allocation10 + $0x228] sm:$0xff]
        %v1220 = vld [vmem:[#allocation10 + $0x230] sm:$0xff]
        %v1221 = vld [vmem:[#allocation10 + $0x238] sm:$0xff]
        %v1222 = vld [vmem:[#allocation10 + $0x240] sm:$0xff]
        %v1223 = vld [vmem:[#allocation10 + $0x248] sm:$0xff]
        %v1224 = vld [vmem:[#allocation10 + $0x250] sm:$0xff]
        %v1225 = vld [vmem:[#allocation10 + $0x258] sm:$0xff]
        %v1226 = vld [vmem:[#allocation10 + $0x260] sm:$0xff]
        %v1227 = vld [vmem:[#allocation10 + $0x268] sm:$0xff]
        %v1228 = vld [vmem:[#allocation10 + $0x270] sm:$0xff]
        %v1229 = vld [vmem:[#allocation10 + $0x278] sm:$0xff]
        %v1230 = vld [vmem:[#allocation10 + $0x280] sm:$0xff]
        %v1231 = vld [vmem:[#allocation10 + $0x288] sm:$0xff]
        %v1232 = vld [vmem:[#allocation10 + $0x290] sm:$0xff]
        %v1233 = vld [vmem:[#allocation10 + $0x298] sm:$0xff]
        %v1234 = vld [vmem:[#allocation10 + $0x2a0] sm:$0xff]
        %v1235 = vld [vmem:[#allocation10 + $0x2a8] sm:$0xff]
        %v1236 = vld [vmem:[#allocation10 + $0x2b0] sm:$0xff]
        %v1237 = vld [vmem:[#allocation10 + $0x2b8] sm:$0xff]
        %v1238 = vld [vmem:[#allocation10 + $0x2c0] sm:$0xff]
        %v1239 = vld [vmem:[#allocation10 + $0x2c8] sm:$0xff]
        %v1240 = vld [vmem:[#allocation10 + $0x2d0] sm:$0xff]
        %v1241 = vld [vmem:[#allocation10 + $0x2d8] sm:$0xff]
        %v1242 = vld [vmem:[#allocation10 + $0x2e0] sm:$0xff]
        %v1243 = vld [vmem:[#allocation10 + $0x2e8] sm:$0xff]
        %v1244 = vld [vmem:[#allocation10 + $0x2f0] sm:$0xff]
        %v1245 = vld [vmem:[#allocation10 + $0x2f8] sm:$0xff]
        %v1260 = vunpack.c.l.b16 %v409
        %v1261 = vunpack.c.h.b16 %v409
        %v1262 = vunpack.c.l.b16 %v410
        %v1263 = vunpack.c.h.b16 %v410
        %v1264 = vunpack.c.l.b16 %v411
        %v1265 = vunpack.c.h.b16 %v411
        %v1266 = vunpack.c.l.b16 %v412
        %v1267 = vunpack.c.h.b16 %v412
        %v1268 = vunpack.c.l.b16 %v413
        %v1269 = vunpack.c.h.b16 %v413
        %v1270 = vunpack.c.l.b16 %v414
        %v1271 = vunpack.c.h.b16 %v414
        %v1272 = vunpack.c.l.b16 %v415
        %v1273 = vunpack.c.h.b16 %v415
        %v1274 = vunpack.c.l.b16 %v416
        %v1275 = vunpack.c.h.b16 %v416
        %v1276 = vunpack.c.l.b16 %v417
        %v1277 = vunpack.c.h.b16 %v417
        %v1278 = vunpack.c.l.b16 %v418
        %v1279 = vunpack.c.h.b16 %v418
        %v1280 = vunpack.c.l.b16 %v419
        %v1281 = vunpack.c.h.b16 %v419
        %v1282 = vunpack.c.l.b16 %v420
        %v1283 = vunpack.c.h.b16 %v420
        %v1284 = vunpack.c.l.b16 %v421
        %v1285 = vunpack.c.h.b16 %v421
        %v1286 = vunpack.c.l.b16 %v422
        %v1287 = vunpack.c.h.b16 %v422
        %v1288 = vpack.c.b16 %v1262, %v1260
        %v1289 = vpack.c.b16 %v1263, %v1261
        %v1290 = vpack.c.b16 %v1266, %v1264
        %v1291 = vpack.c.b16 %v1267, %v1265
        %v1292 = vpack.c.b16 %v1270, %v1268
        %v1293 = vpack.c.b16 %v1271, %v1269
        %v1294 = vpack.c.b16 %v1274, %v1272
        %v1295 = vpack.c.b16 %v1275, %v1273
        %v1296 = vpack.c.b16 %v1278, %v1276
        %v1297 = vpack.c.b16 %v1279, %v1277
        %v1298 = vpack.c.b16 %v1282, %v1280
        %v1299 = vpack.c.b16 %v1283, %v1281
        %v1300 = vpack.c.b16 %v1286, %v1284
        %v1301 = vpack.c.b16 %v1287, %v1285
        %v1412 = vunpack.c.l.b16 %v1150
        %v1413 = vunpack.c.h.b16 %v1150
        %v1414 = vunpack.c.l.b16 %v1151
        %v1415 = vunpack.c.h.b16 %v1151
        %v1416 = vunpack.c.l.b16 %v1152
        %v1417 = vunpack.c.h.b16 %v1152
        %v1418 = vunpack.c.l.b16 %v1153
        %v1419 = vunpack.c.h.b16 %v1153
        %v1420 = vunpack.c.l.b16 %v1154
        %v1421 = vunpack.c.h.b16 %v1154
        %v1422 = vunpack.c.l.b16 %v1155
        %v1423 = vunpack.c.h.b16 %v1155
        %v1424 = vunpack.c.l.b16 %v1156
        %v1425 = vunpack.c.h.b16 %v1156
        %v1426 = vunpack.c.l.b16 %v1157
        %v1427 = vunpack.c.h.b16 %v1157
        %v1428 = vunpack.c.l.b16 %v1158
        %v1429 = vunpack.c.h.b16 %v1158
        %v1430 = vunpack.c.l.b16 %v1159
        %v1431 = vunpack.c.h.b16 %v1159
        %v1432 = vunpack.c.l.b16 %v1160
        %v1433 = vunpack.c.h.b16 %v1160
        %v1434 = vunpack.c.l.b16 %v1161
        %v1435 = vunpack.c.h.b16 %v1161
        %v1436 = vunpack.c.l.b16 %v1162
        %v1437 = vunpack.c.h.b16 %v1162
        %v1438 = vunpack.c.l.b16 %v1163
        %v1439 = vunpack.c.h.b16 %v1163
        %v1440 = vunpack.c.l.b16 %v1164
        %v1441 = vunpack.c.h.b16 %v1164
        %v1442 = vunpack.c.l.b16 %v1165
        %v1443 = vunpack.c.h.b16 %v1165
        %v1444 = vunpack.c.l.b16 %v1166
        %v1445 = vunpack.c.h.b16 %v1166
        %v1446 = vunpack.c.l.b16 %v1167
        %v1447 = vunpack.c.h.b16 %v1167
        %v1448 = vunpack.c.l.b16 %v1168
        %v1449 = vunpack.c.h.b16 %v1168
        %v1450 = vunpack.c.l.b16 %v1169
        %v1451 = vunpack.c.h.b16 %v1169
        %v1452 = vunpack.c.l.b16 %v1170
        %v1453 = vunpack.c.h.b16 %v1170
        %v1454 = vunpack.c.l.b16 %v1171
        %v1455 = vunpack.c.h.b16 %v1171
        %v1456 = vunpack.c.l.b16 %v1172
        %v1457 = vunpack.c.h.b16 %v1172
        %v1458 = vunpack.c.l.b16 %v1173
        %v1459 = vunpack.c.h.b16 %v1173
        %v1460 = vunpack.c.l.b16 %v1174
        %v1461 = vunpack.c.h.b16 %v1174
        %v1462 = vunpack.c.l.b16 %v1175
        %v1463 = vunpack.c.h.b16 %v1175
        %v1464 = vunpack.c.l.b16 %v1176
        %v1465 = vunpack.c.h.b16 %v1176
        %v1466 = vunpack.c.l.b16 %v1177
        %v1467 = vunpack.c.h.b16 %v1177
        %v1468 = vunpack.c.l.b16 %v1178
        %v1469 = vunpack.c.h.b16 %v1178
        %v1470 = vunpack.c.l.b16 %v1179
        %v1471 = vunpack.c.h.b16 %v1179
        %v1472 = vunpack.c.l.b16 %v1180
        %v1473 = vunpack.c.h.b16 %v1180
        %v1474 = vunpack.c.l.b16 %v1181
        %v1475 = vunpack.c.h.b16 %v1181
        %v1476 = vunpack.c.l.b16 %v1182
        %v1477 = vunpack.c.h.b16 %v1182
        %v1478 = vunpack.c.l.b16 %v1183
        %v1479 = vunpack.c.h.b16 %v1183
        %v1480 = vunpack.c.l.b16 %v1184
        %v1481 = vunpack.c.h.b16 %v1184
        %v1482 = vunpack.c.l.b16 %v1185
        %v1483 = vunpack.c.h.b16 %v1185
        %v1484 = vunpack.c.l.b16 %v1186
        %v1485 = vunpack.c.h.b16 %v1186
        %v1486 = vunpack.c.l.b16 %v1187
        %v1487 = vunpack.c.h.b16 %v1187
        %v1488 = vunpack.c.l.b16 %v1188
        %v1489 = vunpack.c.h.b16 %v1188
        %v1490 = vunpack.c.l.b16 %v1189
        %v1491 = vunpack.c.h.b16 %v1189
        %v1492 = vunpack.c.l.b16 %v1190
        %v1493 = vunpack.c.h.b16 %v1190
        %v1494 = vunpack.c.l.b16 %v1191
        %v1495 = vunpack.c.h.b16 %v1191
        %v1496 = vunpack.c.l.b16 %v1192
        %v1497 = vunpack.c.h.b16 %v1192
        %v1498 = vunpack.c.l.b16 %v1193
        %v1499 = vunpack.c.h.b16 %v1193
        %v1500 = vunpack.c.l.b16 %v1194
        %v1501 = vunpack.c.h.b16 %v1194
        %v1502 = vunpack.c.l.b16 %v1195
        %v1503 = vunpack.c.h.b16 %v1195
        %v1504 = vunpack.c.l.b16 %v1196
        %v1505 = vunpack.c.h.b16 %v1196
        %v1506 = vunpack.c.l.b16 %v1197
        %v1507 = vunpack.c.h.b16 %v1197
        %v1508 = vunpack.c.l.b16 %v1198
        %v1509 = vunpack.c.h.b16 %v1198
        %v1510 = vunpack.c.l.b16 %v1199
        %v1511 = vunpack.c.h.b16 %v1199
        %v1512 = vunpack.c.l.b16 %v1200
        %v1513 = vunpack.c.h.b16 %v1200
        %v1514 = vunpack.c.l.b16 %v1201
        %v1515 = vunpack.c.h.b16 %v1201
        %v1516 = vunpack.c.l.b16 %v1202
        %v1517 = vunpack.c.h.b16 %v1202
        %v1518 = vunpack.c.l.b16 %v1203
        %v1519 = vunpack.c.h.b16 %v1203
        %v1520 = vunpack.c.l.b16 %v1204
        %v1521 = vunpack.c.h.b16 %v1204
        %v1522 = vunpack.c.l.b16 %v1205
        %v1523 = vunpack.c.h.b16 %v1205
        %v1524 = vunpack.c.l.b16 %v1206
        %v1525 = vunpack.c.h.b16 %v1206
        %v1526 = vunpack.c.l.b16 %v1207
        %v1527 = vunpack.c.h.b16 %v1207
        %v1528 = vunpack.c.l.b16 %v1208
        %v1529 = vunpack.c.h.b16 %v1208
        %v1530 = vunpack.c.l.b16 %v1209
        %v1531 = vunpack.c.h.b16 %v1209
        %v1532 = vunpack.c.l.b16 %v1210
        %v1533 = vunpack.c.h.b16 %v1210
        %v1534 = vunpack.c.l.b16 %v1211
        %v1535 = vunpack.c.h.b16 %v1211
        %v1536 = vunpack.c.l.b16 %v1212
        %v1537 = vunpack.c.h.b16 %v1212
        %v1538 = vunpack.c.l.b16 %v1213
        %v1539 = vunpack.c.h.b16 %v1213
        %v1540 = vunpack.c.l.b16 %v1214
        %v1541 = vunpack.c.h.b16 %v1214
        %v1542 = vunpack.c.l.b16 %v1215
        %v1543 = vunpack.c.h.b16 %v1215
        %v1544 = vunpack.c.l.b16 %v1216
        %v1545 = vunpack.c.h.b16 %v1216
        %v1546 = vunpack.c.l.b16 %v1217
        %v1547 = vunpack.c.h.b16 %v1217
        %v1548 = vunpack.c.l.b16 %v1218
        %v1549 = vunpack.c.h.b16 %v1218
        %v1550 = vunpack.c.l.b16 %v1219
        %v1551 = vunpack.c.h.b16 %v1219
        %v1552 = vunpack.c.l.b16 %v1220
        %v1553 = vunpack.c.h.b16 %v1220
        %v1554 = vunpack.c.l.b16 %v1221
        %v1555 = vunpack.c.h.b16 %v1221
        %v1556 = vunpack.c.l.b16 %v1222
        %v1557 = vunpack.c.h.b16 %v1222
        %v1558 = vunpack.c.l.b16 %v1223
        %v1559 = vunpack.c.h.b16 %v1223
        %v1560 = vunpack.c.l.b16 %v1224
        %v1561 = vunpack.c.h.b16 %v1224
        %v1562 = vunpack.c.l.b16 %v1225
        %v1563 = vunpack.c.h.b16 %v1225
        %v1564 = vunpack.c.l.b16 %v1226
        %v1565 = vunpack.c.h.b16 %v1226
        %v1566 = vunpack.c.l.b16 %v1227
        %v1567 = vunpack.c.h.b16 %v1227
        %v1568 = vunpack.c.l.b16 %v1228
        %v1569 = vunpack.c.h.b16 %v1228
        %v1570 = vunpack.c.l.b16 %v1229
        %v1571 = vunpack.c.h.b16 %v1229
        %v1572 = vunpack.c.l.b16 %v1230
        %v1573 = vunpack.c.h.b16 %v1230
        %v1574 = vunpack.c.l.b16 %v1231
        %v1575 = vunpack.c.h.b16 %v1231
        %v1576 = vunpack.c.l.b16 %v1232
        %v1577 = vunpack.c.h.b16 %v1232
        %v1578 = vunpack.c.l.b16 %v1233
        %v1579 = vunpack.c.h.b16 %v1233
        %v1580 = vunpack.c.l.b16 %v1234
        %v1581 = vunpack.c.h.b16 %v1234
        %v1582 = vunpack.c.l.b16 %v1235
        %v1583 = vunpack.c.h.b16 %v1235
        %v1584 = vunpack.c.l.b16 %v1236
        %v1585 = vunpack.c.h.b16 %v1236
        %v1586 = vunpack.c.l.b16 %v1237
        %v1587 = vunpack.c.h.b16 %v1237
        %v1588 = vunpack.c.l.b16 %v1238
        %v1589 = vunpack.c.h.b16 %v1238
        %v1590 = vunpack.c.l.b16 %v1239
        %v1591 = vunpack.c.h.b16 %v1239
        %v1592 = vunpack.c.l.b16 %v1240
        %v1593 = vunpack.c.h.b16 %v1240
        %v1594 = vunpack.c.l.b16 %v1241
        %v1595 = vunpack.c.h.b16 %v1241
        %v1596 = vunpack.c.l.b16 %v1242
        %v1597 = vunpack.c.h.b16 %v1242
        %v1598 = vunpack.c.l.b16 %v1243
        %v1599 = vunpack.c.h.b16 %v1243
        %v1600 = vunpack.c.l.b16 %v1244
        %v1601 = vunpack.c.h.b16 %v1244
        %v1602 = vunpack.c.l.b16 %v1245
        %v1603 = vunpack.c.h.b16 %v1245
        %v1604 = vpack.c.b16 %v1418, %v1412
        %v1605 = vpack.c.b16 %v1419, %v1413
        %v1606 = vpack.c.b16 %v1420, %v1414
        %v1607 = vpack.c.b16 %v1421, %v1415
        %v1608 = vpack.c.b16 %v1422, %v1416
        %v1609 = vpack.c.b16 %v1423, %v1417
        %v1610 = vpack.c.b16 %v1430, %v1424
        %v1611 = vpack.c.b16 %v1431, %v1425
        %v1612 = vpack.c.b16 %v1432, %v1426
        %v1613 = vpack.c.b16 %v1433, %v1427
        %v1614 = vpack.c.b16 %v1434, %v1428
        %v1615 = vpack.c.b16 %v1435, %v1429
        %v1616 = vpack.c.b16 %v1442, %v1436
        %v1617 = vpack.c.b16 %v1443, %v1437
        %v1618 = vpack.c.b16 %v1444, %v1438
        %v1619 = vpack.c.b16 %v1445, %v1439
        %v1620 = vpack.c.b16 %v1446, %v1440
        %v1621 = vpack.c.b16 %v1447, %v1441
        %v1622 = vpack.c.b16 %v1454, %v1448
        %v1623 = vpack.c.b16 %v1455, %v1449
        %v1624 = vpack.c.b16 %v1456, %v1450
        %v1625 = vpack.c.b16 %v1457, %v1451
        %v1626 = vpack.c.b16 %v1458, %v1452
        %v1627 = vpack.c.b16 %v1459, %v1453
        %v1628 = vpack.c.b16 %v1466, %v1460
        %v1629 = vpack.c.b16 %v1467, %v1461
        %v1630 = vpack.c.b16 %v1468, %v1462
        %v1631 = vpack.c.b16 %v1469, %v1463
        %v1632 = vpack.c.b16 %v1470, %v1464
        %v1633 = vpack.c.b16 %v1471, %v1465
        %v1634 = vpack.c.b16 %v1478, %v1472
        %v1635 = vpack.c.b16 %v1479, %v1473
        %v1636 = vpack.c.b16 %v1480, %v1474
        %v1637 = vpack.c.b16 %v1481, %v1475
        %v1638 = vpack.c.b16 %v1482, %v1476
        %v1639 = vpack.c.b16 %v1483, %v1477
        %v1640 = vpack.c.b16 %v1490, %v1484
        %v1641 = vpack.c.b16 %v1491, %v1485
        %v1642 = vpack.c.b16 %v1492, %v1486
        %v1643 = vpack.c.b16 %v1493, %v1487
        %v1644 = vpack.c.b16 %v1494, %v1488
        %v1645 = vpack.c.b16 %v1495, %v1489
        %v1646 = vpack.c.b16 %v1502, %v1496
        %v1647 = vpack.c.b16 %v1503, %v1497
        %v1648 = vpack.c.b16 %v1504, %v1498
        %v1649 = vpack.c.b16 %v1505, %v1499
        %v1650 = vpack.c.b16 %v1506, %v1500
        %v1651 = vpack.c.b16 %v1507, %v1501
        %v1652 = vpack.c.b16 %v1514, %v1508
        %v1653 = vpack.c.b16 %v1515, %v1509
        %v1654 = vpack.c.b16 %v1516, %v1510
        %v1655 = vpack.c.b16 %v1517, %v1511
        %v1656 = vpack.c.b16 %v1518, %v1512
        %v1657 = vpack.c.b16 %v1519, %v1513
        %v1658 = vpack.c.b16 %v1526, %v1520
        %v1659 = vpack.c.b16 %v1527, %v1521
        %v1660 = vpack.c.b16 %v1528, %v1522
        %v1661 = vpack.c.b16 %v1529, %v1523
        %v1662 = vpack.c.b16 %v1530, %v1524
        %v1663 = vpack.c.b16 %v1531, %v1525
        %v1664 = vpack.c.b16 %v1538, %v1532
        %v1665 = vpack.c.b16 %v1539, %v1533
        %v1666 = vpack.c.b16 %v1540, %v1534
        %v1667 = vpack.c.b16 %v1541, %v1535
        %v1668 = vpack.c.b16 %v1542, %v1536
        %v1669 = vpack.c.b16 %v1543, %v1537
        %v1670 = vpack.c.b16 %v1550, %v1544
        %v1671 = vpack.c.b16 %v1551, %v1545
        %v1672 = vpack.c.b16 %v1552, %v1546
        %v1673 = vpack.c.b16 %v1553, %v1547
        %v1674 = vpack.c.b16 %v1554, %v1548
        %v1675 = vpack.c.b16 %v1555, %v1549
        %v1676 = vpack.c.b16 %v1562, %v1556
        %v1677 = vpack.c.b16 %v1563, %v1557
        %v1678 = vpack.c.b16 %v1564, %v1558
        %v1679 = vpack.c.b16 %v1565, %v1559
        %v1680 = vpack.c.b16 %v1566, %v1560
        %v1681 = vpack.c.b16 %v1567, %v1561
        %v1682 = vpack.c.b16 %v1574, %v1568
        %v1683 = vpack.c.b16 %v1575, %v1569
        %v1684 = vpack.c.b16 %v1576, %v1570
        %v1685 = vpack.c.b16 %v1577, %v1571
        %v1686 = vpack.c.b16 %v1578, %v1572
        %v1687 = vpack.c.b16 %v1579, %v1573
        %v1688 = vpack.c.b16 %v1586, %v1580
        %v1689 = vpack.c.b16 %v1587, %v1581
        %v1690 = vpack.c.b16 %v1588, %v1582
        %v1691 = vpack.c.b16 %v1589, %v1583
        %v1692 = vpack.c.b16 %v1590, %v1584
        %v1693 = vpack.c.b16 %v1591, %v1585
        %v1694 = vpack.c.b16 %v1598, %v1592
        %v1695 = vpack.c.b16 %v1599, %v1593
        %v1696 = vpack.c.b16 %v1600, %v1594
        %v1697 = vpack.c.b16 %v1601, %v1595
        %v1698 = vpack.c.b16 %v1602, %v1596
        %v1699 = vpack.c.b16 %v1603, %v1597
        %1796 = vmatprep.subr.bf16.mxu0 %v1605
        %1797 = vmatpush1.bf16.msra.mxu0 %v1604
        %1798 = vmatprep.subr.bf16.mxu0 %v1611
        %1799 = vmatpush1.bf16.msra.mxu0 %v1610
        %1800 = vmatprep.subr.bf16.mxu0 %v1617
        %1801 = vmatpush1.bf16.msra.mxu0 %v1616
        %1802 = vmatprep.subr.bf16.mxu0 %v1623
        %1803 = vmatpush1.bf16.msra.mxu0 %v1622
        %1804 = vmatprep.subr.bf16.mxu0 %v1629
        %1805 = vmatpush1.bf16.msra.mxu0 %v1628
        %1806 = vmatprep.subr.bf16.mxu0 %v1635
        %1807 = vmatpush1.bf16.msra.mxu0 %v1634
        %1808 = vmatprep.subr.bf16.mxu0 %v1641
        %1809 = vmatpush1.bf16.msra.mxu0 %v1640
        %1810 = vmatprep.subr.bf16.mxu0 %v1647
        %1811 = vmatpush1.bf16.msra.mxu0 %v1646
        %1812 = vmatprep.subr.bf16.mxu0 %v1653
        %1813 = vmatpush1.bf16.msra.mxu0 %v1652
        %1814 = vmatprep.subr.bf16.mxu0 %v1659
        %1815 = vmatpush1.bf16.msra.mxu0 %v1658
        %1816 = vmatprep.subr.bf16.mxu0 %v1665
        %1817 = vmatpush1.bf16.msra.mxu0 %v1664
        %1818 = vmatprep.subr.bf16.mxu0 %v1671
        %1819 = vmatpush1.bf16.msra.mxu0 %v1670
        %1820 = vmatprep.subr.bf16.mxu0 %v1677
        %1821 = vmatpush1.bf16.msra.mxu0 %v1676
        %1822 = vmatprep.subr.bf16.mxu0 %v1683
        %1823 = vmatpush1.bf16.msra.mxu0 %v1682
        %1824 = vmatprep.subr.bf16.mxu0 %v1689
        %1825 = vmatpush1.bf16.msra.mxu0 %v1688
        %1826 = vmatprep.subr.bf16.mxu0 %v1695
        %1827 = vmatpush1.bf16.msra.mxu0 %v1694
        %1828 = vmatprep.mubr.bf16.mxu0 %v1289
        %1829 = vmatmul.mubr.bf16.gmra.mrb[0].mxu0 %v1288
        %v1830 = vpop.f32.mrb[0].mxu0
        %v1831 = vadd.f32 0.0, %v1830
        %v1832 = vpop.f32.mrb[0].mxu0
        %v1833 = vadd.f32 0.0, %v1832
        %v1834 = vpop.f32.mrb[0].mxu0
        %v1835 = vadd.f32 0.0, %v1834
        %v1836 = vpop.f32.mrb[0].mxu0
        %v1837 = vadd.f32 0.0, %v1836
        %1838 = vmatprep.mubr.bf16.mxu0 %v1291
        %1839 = vmatmul.mubr.bf16.gmra.mrb[0].mxu0 %v1290
        %v1840 = vpop.f32.mrb[0].mxu0
        %v1841 = vadd.f32 0.0, %v1840
        %v1842 = vpop.f32.mrb[0].mxu0
        %v1843 = vadd.f32 0.0, %v1842
        %v1844 = vpop.f32.mrb[0].mxu0
        %v1845 = vadd.f32 0.0, %v1844
        %v1846 = vpop.f32.mrb[0].mxu0
        %v1847 = vadd.f32 0.0, %v1846
        %1848 = vmatprep.mubr.bf16.mxu0 %v1293
        %1849 = vmatmul.mubr.bf16.gmra.mrb[0].mxu0 %v1292
        %v1850 = vpop.f32.mrb[0].mxu0
        %v1851 = vadd.f32 0.0, %v1850
        %v1852 = vpop.f32.mrb[0].mxu0
        %v1853 = vadd.f32 0.0, %v1852
        %v1854 = vpop.f32.mrb[0].mxu0
        %v1855 = vadd.f32 0.0, %v1854
        %v1856 = vpop.f32.mrb[0].mxu0
        %v1857 = vadd.f32 0.0, %v1856
        %1858 = vmatprep.mubr.bf16.mxu0 %v1295
        %1859 = vmatmul.mubr.bf16.gmra.mrb[0].mxu0 %v1294
        %v1860 = vpop.f32.mrb[0].mxu0
        %v1861 = vadd.f32 0.0, %v1860
        %v1862 = vpop.f32.mrb[0].mxu0
        %v1863 = vadd.f32 0.0, %v1862
        %v1864 = vpop.f32.mrb[0].mxu0
        %v1865 = vadd.f32 0.0, %v1864
        %v1866 = vpop.f32.mrb[0].mxu0
        %v1867 = vadd.f32 0.0, %v1866
        %1868 = vmatprep.mubr.bf16.mxu0 %v1297
        %1869 = vmatmul.mubr.bf16.gmra.mrb[0].mxu0 %v1296
        %v1870 = vpop.f32.mrb[0].mxu0
        %v1871 = vadd.f32 0.0, %v1870
        %v1872 = vpop.f32.mrb[0].mxu0
        %v1873 = vadd.f32 0.0, %v1872
        %v1874 = vpop.f32.mrb[0].mxu0
        %v1875 = vadd.f32 0.0, %v1874
        %v1876 = vpop.f32.mrb[0].mxu0
        %v1877 = vadd.f32 0.0, %v1876
        %1878 = vmatprep.mubr.bf16.mxu0 %v1299
        %1879 = vmatmul.mubr.bf16.gmra.mrb[0].mxu0 %v1298
        %v1880 = vpop.f32.mrb[0].mxu0
        %v1881 = vadd.f32 0.0, %v1880
        %v1882 = vpop.f32.mrb[0].mxu0
        %v1883 = vadd.f32 0.0, %v1882
        %v1884 = vpop.f32.mrb[0].mxu0
        %v1885 = vadd.f32 0.0, %v1884
        %v1886 = vpop.f32.mrb[0].mxu0
        %v1887 = vadd.f32 0.0, %v1886
        %1888 = vmatprep.mubr.bf16.mxu0 %v1301
        %1889 = vmatmul.mubr.bf16.gmra.mrb[0].mxu0 %v1300
        %v1890 = vpop.f32.mrb[0].mxu0
        %v1891 = vadd.f32 0.0, %v1890
        %v1892 = vpop.f32.mrb[0].mxu0
        %v1893 = vadd.f32 0.0, %v1892
        %v1894 = vpop.f32.mrb[0].mxu0
        %v1895 = vadd.f32 0.0, %v1894
        %v1896 = vpop.f32.mrb[0].mxu0
        %v1897 = vadd.f32 0.0, %v1896
        %1898 = vdwg.mxu0
        %1899 = vmatprep.subr.bf16.mxu0 %v1607
        %1900 = vmatpush1.bf16.msra.mxu0 %v1606
        %1901 = vmatprep.subr.bf16.mxu0 %v1613
        %1902 = vmatpush1.bf16.msra.mxu0 %v1612
        %1903 = vmatprep.subr.bf16.mxu0 %v1619
        %1904 = vmatpush1.bf16.msra.mxu0 %v1618
        %1905 = vmatprep.subr.bf16.mxu0 %v1625
        %1906 = vmatpush1.bf16.msra.mxu0 %v1624
        %1907 = vmatprep.subr.bf16.mxu0 %v1631
        %1908 = vmatpush1.bf16.msra.mxu0 %v1630
        %1909 = vmatprep.subr.bf16.mxu0 %v1637
        %1910 = vmatpush1.bf16.msra.mxu0 %v1636
        %1911 = vmatprep.subr.bf16.mxu0 %v1643
        %1912 = vmatpush1.bf16.msra.mxu0 %v1642
        %1913 = vmatprep.subr.bf16.mxu0 %v1649
        %1914 = vmatpush1.bf16.msra.mxu0 %v1648
        %1915 = vmatprep.subr.bf16.mxu0 %v1655
        %1916 = vmatpush1.bf16.msra.mxu0 %v1654
        %1917 = vmatprep.subr.bf16.mxu0 %v1661
        %1918 = vmatpush1.bf16.msra.mxu0 %v1660
        %1919 = vmatprep.subr.bf16.mxu0 %v1667
        %1920 = vmatpush1.bf16.msra.mxu0 %v1666
        %1921 = vmatprep.subr.bf16.mxu0 %v1673
        %1922 = vmatpush1.bf16.msra.mxu0 %v1672
        %1923 = vmatprep.subr.bf16.mxu0 %v1679
        %1924 = vmatpush1.bf16.msra.mxu0 %v1678
        %1925 = vmatprep.subr.bf16.mxu0 %v1685
        %1926 = vmatpush1.bf16.msra.mxu0 %v1684
        %1927 = vmatprep.subr.bf16.mxu0 %v1691
        %1928 = vmatpush1.bf16.msra.mxu0 %v1690
        %1929 = vmatprep.subr.bf16.mxu0 %v1697
        %1930 = vmatpush1.bf16.msra.mxu0 %v1696
        %1931 = vmatprep.mubr.bf16.mxu0 %v1289
        %1932 = vmatmul.mubr.bf16.gmra.mrb[0].mxu0 %v1288
        %v1933 = vpop.f32.mrb[0].mxu0
        %v1934 = vadd.f32 0.0, %v1933
        %v1935 = vpop.f32.mrb[0].mxu0
        %v1936 = vadd.f32 0.0, %v1935
        %v1937 = vpop.f32.mrb[0].mxu0
        %v1938 = vadd.f32 0.0, %v1937
        %v1939 = vpop.f32.mrb[0].mxu0
        %v1940 = vadd.f32 0.0, %v1939
        %1941 = vmatprep.mubr.bf16.mxu0 %v1291
        %1942 = vmatmul.mubr.bf16.gmra.mrb[0].mxu0 %v1290
        %v1943 = vpop.f32.mrb[0].mxu0
        %v1944 = vadd.f32 0.0, %v1943
        %v1945 = vpop.f32.mrb[0].mxu0
        %v1946 = vadd.f32 0.0, %v1945
        %v1947 = vpop.f32.mrb[0].mxu0
        %v1948 = vadd.f32 0.0, %v1947
        %v1949 = vpop.f32.mrb[0].mxu0
        %v1950 = vadd.f32 0.0, %v1949
        %1951 = vmatprep.mubr.bf16.mxu0 %v1293
        %1952 = vmatmul.mubr.bf16.gmra.mrb[0].mxu0 %v1292
        %v1953 = vpop.f32.mrb[0].mxu0
        %v1954 = vadd.f32 0.0, %v1953
        %v1955 = vpop.f32.mrb[0].mxu0
        %v1956 = vadd.f32 0.0, %v1955
        %v1957 = vpop.f32.mrb[0].mxu0
        %v1958 = vadd.f32 0.0, %v1957
        %v1959 = vpop.f32.mrb[0].mxu0
        %v1960 = vadd.f32 0.0, %v1959
        %1961 = vmatprep.mubr.bf16.mxu0 %v1295
        %1962 = vmatmul.mubr.bf16.gmra.mrb[0].mxu0 %v1294
        %v1963 = vpop.f32.mrb[0].mxu0
        %v1964 = vadd.f32 0.0, %v1963
        %v1965 = vpop.f32.mrb[0].mxu0
        %v1966 = vadd.f32 0.0, %v1965
        %v1967 = vpop.f32.mrb[0].mxu0
        %v1968 = vadd.f32 0.0, %v1967
        %v1969 = vpop.f32.mrb[0].mxu0
        %v1970 = vadd.f32 0.0, %v1969
        %1971 = vmatprep.mubr.bf16.mxu0 %v1297
        %1972 = vmatmul.mubr.bf16.gmra.mrb[0].mxu0 %v1296
        %v1973 = vpop.f32.mrb[0].mxu0
        %v1974 = vadd.f32 0.0, %v1973
        %v1975 = vpop.f32.mrb[0].mxu0
        %v1976 = vadd.f32 0.0, %v1975
        %v1977 = vpop.f32.mrb[0].mxu0
        %v1978 = vadd.f32 0.0, %v1977
        %v1979 = vpop.f32.mrb[0].mxu0
        %v1980 = vadd.f32 0.0, %v1979
        %1981 = vmatprep.mubr.bf16.mxu0 %v1299
        %1982 = vmatmul.mubr.bf16.gmra.mrb[0].mxu0 %v1298
        %v1983 = vpop.f32.mrb[0].mxu0
        %v1984 = vadd.f32 0.0, %v1983
        %v1985 = vpop.f32.mrb[0].mxu0
        %v1986 = vadd.f32 0.0, %v1985
        %v1987 = vpop.f32.mrb[0].mxu0
        %v1988 = vadd.f32 0.0, %v1987
        %v1989 = vpop.f32.mrb[0].mxu0
        %v1990 = vadd.f32 0.0, %v1989
        %1991 = vmatprep.mubr.bf16.mxu0 %v1301
        %1992 = vmatmul.mubr.bf16.gmra.mrb[0].mxu0 %v1300
        %v1993 = vpop.f32.mrb[0].mxu0
        %v1994 = vadd.f32 0.0, %v1993
        %v1995 = vpop.f32.mrb[0].mxu0
        %v1996 = vadd.f32 0.0, %v1995
        %v1997 = vpop.f32.mrb[0].mxu0
        %v1998 = vadd.f32 0.0, %v1997
        %v1999 = vpop.f32.mrb[0].mxu0
        %v2000 = vadd.f32 0.0, %v1999
        %2001 = vdwg.mxu0
        %2002 = vmatprep.subr.bf16.mxu0 %v1609
        %2003 = vmatpush1.bf16.msra.mxu0 %v1608
        %2004 = vmatprep.subr.bf16.mxu0 %v1615
        %2005 = vmatpush1.bf16.msra.mxu0 %v1614
        %2006 = vmatprep.subr.bf16.mxu0 %v1621
        %2007 = vmatpush1.bf16.msra.mxu0 %v1620
        %2008 = vmatprep.subr.bf16.mxu0 %v1627
        %2009 = vmatpush1.bf16.msra.mxu0 %v1626
        %2010 = vmatprep.subr.bf16.mxu0 %v1633
        %2011 = vmatpush1.bf16.msra.mxu0 %v1632
        %2012 = vmatprep.subr.bf16.mxu0 %v1639
        %2013 = vmatpush1.bf16.msra.mxu0 %v1638
        %2014 = vmatprep.subr.bf16.mxu0 %v1645
        %2015 = vmatpush1.bf16.msra.mxu0 %v1644
        %2016 = vmatprep.subr.bf16.mxu0 %v1651
        %2017 = vmatpush1.bf16.msra.mxu0 %v1650
        %2018 = vmatprep.subr.bf16.mxu0 %v1657
        %2019 = vmatpush1.bf16.msra.mxu0 %v1656
        %2020 = vmatprep.subr.bf16.mxu0 %v1663
        %2021 = vmatpush1.bf16.msra.mxu0 %v1662
        %2022 = vmatprep.subr.bf16.mxu0 %v1669
        %2023 = vmatpush1.bf16.msra.mxu0 %v1668
        %2024 = vmatprep.subr.bf16.mxu0 %v1675
        %2025 = vmatpush1.bf16.msra.mxu0 %v1674
        %2026 = vmatprep.subr.bf16.mxu0 %v1681
        %2027 = vmatpush1.bf16.msra.mxu0 %v1680
        %2028 = vmatprep.subr.bf16.mxu0 %v1687
        %2029 = vmatpush1.bf16.msra.mxu0 %v1686
        %2030 = vmatprep.subr.bf16.mxu0 %v1693
        %2031 = vmatpush1.bf16.msra.mxu0 %v1692
        %2032 = vmatprep.subr.bf16.mxu0 %v1699
        %2033 = vmatpush1.bf16.msra.mxu0 %v1698
        %2034 = vmatprep.mubr.bf16.mxu0 %v1289
        %2035 = vmatmul.mubr.bf16.gmra.mrb[0].mxu0 %v1288
        %v2036 = vpop.f32.mrb[0].mxu0
        %v2037 = vadd.f32 0.0, %v2036
        %v2038 = vpop.f32.mrb[0].mxu0
        %v2039 = vadd.f32 0.0, %v2038
        %v2040 = vpop.f32.mrb[0].mxu0
        %v2041 = vadd.f32 0.0, %v2040
        %v2042 = vpop.f32.mrb[0].mxu0
        %v2043 = vadd.f32 0.0, %v2042
        %2044 = vmatprep.mubr.bf16.mxu0 %v1291
        %2045 = vmatmul.mubr.bf16.gmra.mrb[0].mxu0 %v1290
        %v2046 = vpop.f32.mrb[0].mxu0
        %v2047 = vadd.f32 0.0, %v2046
        %v2048 = vpop.f32.mrb[0].mxu0
        %v2049 = vadd.f32 0.0, %v2048
        %v2050 = vpop.f32.mrb[0].mxu0
        %v2051 = vadd.f32 0.0, %v2050
        %v2052 = vpop.f32.mrb[0].mxu0
        %v2053 = vadd.f32 0.0, %v2052
        %2054 = vmatprep.mubr.bf16.mxu0 %v1293
        %2055 = vmatmul.mubr.bf16.gmra.mrb[0].mxu0 %v1292
        %v2056 = vpop.f32.mrb[0].mxu0
        %v2057 = vadd.f32 0.0, %v2056
        %v2058 = vpop.f32.mrb[0].mxu0
        %v2059 = vadd.f32 0.0, %v2058
        %v2060 = vpop.f32.mrb[0].mxu0
        %v2061 = vadd.f32 0.0, %v2060
        %v2062 = vpop.f32.mrb[0].mxu0
        %v2063 = vadd.f32 0.0, %v2062
        %2064 = vmatprep.mubr.bf16.mxu0 %v1295
        %2065 = vmatmul.mubr.bf16.gmra.mrb[0].mxu0 %v1294
        %v2066 = vpop.f32.mrb[0].mxu0
        %v2067 = vadd.f32 0.0, %v2066
        %v2068 = vpop.f32.mrb[0].mxu0
        %v2069 = vadd.f32 0.0, %v2068
        %v2070 = vpop.f32.mrb[0].mxu0
        %v2071 = vadd.f32 0.0, %v2070
        %v2072 = vpop.f32.mrb[0].mxu0
        %v2073 = vadd.f32 0.0, %v2072
        %2074 = vmatprep.mubr.bf16.mxu0 %v1297
        %2075 = vmatmul.mubr.bf16.gmra.mrb[0].mxu0 %v1296
        %v2076 = vpop.f32.mrb[0].mxu0
        %v2077 = vadd.f32 0.0, %v2076
        %v2078 = vpop.f32.mrb[0].mxu0
        %v2079 = vadd.f32 0.0, %v2078
        %v2080 = vpop.f32.mrb[0].mxu0
        %v2081 = vadd.f32 0.0, %v2080
        %v2082 = vpop.f32.mrb[0].mxu0
        %v2083 = vadd.f32 0.0, %v2082
        %2084 = vmatprep.mubr.bf16.mxu0 %v1299
        %2085 = vmatmul.mubr.bf16.gmra.mrb[0].mxu0 %v1298
        %v2086 = vpop.f32.mrb[0].mxu0
        %v2087 = vadd.f32 0.0, %v2086
        %v2088 = vpop.f32.mrb[0].mxu0
        %v2089 = vadd.f32 0.0, %v2088
        %v2090 = vpop.f32.mrb[0].mxu0
        %v2091 = vadd.f32 0.0, %v2090
        %v2092 = vpop.f32.mrb[0].mxu0
        %v2093 = vadd.f32 0.0, %v2092
        %2094 = vmatprep.mubr.bf16.mxu0 %v1301
        %2095 = vmatmul.mubr.bf16.gmra.mrb[0].mxu0 %v1300
        %v2096 = vpop.f32.mrb[0].mxu0
        %v2097 = vadd.f32 0.0, %v2096
        %v2098 = vpop.f32.mrb[0].mxu0
        %v2099 = vadd.f32 0.0, %v2098
        %v2100 = vpop.f32.mrb[0].mxu0
        %v2101 = vadd.f32 0.0, %v2100
        %v2102 = vpop.f32.mrb[0].mxu0
        %v2103 = vadd.f32 0.0, %v2102
        %2104 = vdwg.mxu0
        %2105 = vst [vmem:[#allocation2 + $0x60] sm:$0xff] %v1831
        %2106 = vst [vmem:[#allocation2 + $0x68] sm:$0xff] %v1833
        %2107 = vst [vmem:[#allocation2 + $0x70] sm:$0xff] %v1934
        %2108 = vst [vmem:[#allocation2 + $0x78] sm:$0xff] %v1936
        %2109 = vst [vmem:[#allocation2 + $0x80] sm:$0xff] %v2037
        %2110 = vst [vmem:[#allocation2 + $0x88] sm:$0xff] %v2039
        %2111 = vst [vmem:[#allocation2 + $0x90] sm:$0xff] %v1835
        %2112 = vst [vmem:[#allocation2 + $0x98] sm:$0xff] %v1837
        %2113 = vst [vmem:[#allocation2 + $0xa0] sm:$0xff] %v1938
        %2114 = vst [vmem:[#allocation2 + $0xa8] sm:$0xff] %v1940
        %2115 = vst [vmem:[#allocation2 + $0xb0] sm:$0xff] %v2041
        %2116 = vst [vmem:[#allocation2 + $0xb8] sm:$0xff] %v2043
        %2117 = vst [vmem:[#allocation2 + $0xc0] sm:$0xff] %v1841
        %2118 = vst [vmem:[#allocation2 + $0xc8] sm:$0xff] %v1843
        %2119 = vst [vmem:[#allocation2 + $0xd0] sm:$0xff] %v1944
        %2120 = vst [vmem:[#allocation2 + $0xd8] sm:$0xff] %v1946
        %2121 = vst [vmem:[#allocation2 + $0xe0] sm:$0xff] %v2047
        %2122 = vst [vmem:[#allocation2 + $0xe8] sm:$0xff] %v2049
        %2123 = vst [vmem:[#allocation2 + $0xf0] sm:$0xff] %v1845
        %2124 = vst [vmem:[#allocation2 + $0xf8] sm:$0xff] %v1847
        %2125 = vst [vmem:[#allocation2 + $0x100] sm:$0xff] %v1948
        %2126 = vst [vmem:[#allocation2 + $0x108] sm:$0xff] %v1950
        %2127 = vst [vmem:[#allocation2 + $0x110] sm:$0xff] %v2051
        %2128 = vst [vmem:[#allocation2 + $0x118] sm:$0xff] %v2053
        %2129 = vst [vmem:[#allocation2 + $0x120] sm:$0xff] %v1851
        %2130 = vst [vmem:[#allocation2 + $0x128] sm:$0xff] %v1853
        %2131 = vst [vmem:[#allocation2 + $0x130] sm:$0xff] %v1954
        %2132 = vst [vmem:[#allocation2 + $0x138] sm:$0xff] %v1956
        %2133 = vst [vmem:[#allocation2 + $0x140] sm:$0xff] %v2057
        %2134 = vst [vmem:[#allocation2 + $0x148] sm:$0xff] %v2059
        %2135 = vst [vmem:[#allocation2 + $0x150] sm:$0xff] %v1855
        %2136 = vst [vmem:[#allocation2 + $0x158] sm:$0xff] %v1857
        %2137 = vst [vmem:[#allocation2 + $0x160] sm:$0xff] %v1958
        %2138 = vst [vmem:[#allocation2 + $0x168] sm:$0xff] %v1960
        %2139 = vst [vmem:[#allocation2 + $0x170] sm:$0xff] %v2061
        %2140 = vst [vmem:[#allocation2 + $0x178] sm:$0xff] %v2063
        %2141 = vst [vmem:[#allocation2 + $0x180] sm:$0xff] %v1861
        %2142 = vst [vmem:[#allocation2 + $0x188] sm:$0xff] %v1863
        %2143 = vst [vmem:[#allocation2 + $0x190] sm:$0xff] %v1964
        %2144 = vst [vmem:[#allocation2 + $0x198] sm:$0xff] %v1966
        %2145 = vst [vmem:[#allocation2 + $0x1a0] sm:$0xff] %v2067
        %2146 = vst [vmem:[#allocation2 + $0x1a8] sm:$0xff] %v2069
        %2147 = vst [vmem:[#allocation2 + $0x1b0] sm:$0xff] %v1865
        %2148 = vst [vmem:[#allocation2 + $0x1b8] sm:$0xff] %v1867
        %2149 = vst [vmem:[#allocation2 + $0x1c0] sm:$0xff] %v1968
        %2150 = vst [vmem:[#allocation2 + $0x1c8] sm:$0xff] %v1970
        %2151 = vst [vmem:[#allocation2 + $0x1d0] sm:$0xff] %v2071
        %2152 = vst [vmem:[#allocation2 + $0x1d8] sm:$0xff] %v2073
        %2153 = vst [vmem:[#allocation2 + $0x1e0] sm:$0xff] %v1871
        %2154 = vst [vmem:[#allocation2 + $0x1e8] sm:$0xff] %v1873
        %2155 = vst [vmem:[#allocation2 + $0x1f0] sm:$0xff] %v1974
        %2156 = vst [vmem:[#allocation2 + $0x1f8] sm:$0xff] %v1976
        %2157 = vst [vmem:[#allocation2 + $0x200] sm:$0xff] %v2077
        %2158 = vst [vmem:[#allocation2 + $0x208] sm:$0xff] %v2079
        %2159 = vst [vmem:[#allocation2 + $0x210] sm:$0xff] %v1875
        %2160 = vst [vmem:[#allocation2 + $0x218] sm:$0xff] %v1877
        %2161 = vst [vmem:[#allocation2 + $0x220] sm:$0xff] %v1978
        %2162 = vst [vmem:[#allocation2 + $0x228] sm:$0xff] %v1980
        %2163 = vst [vmem:[#allocation2 + $0x230] sm:$0xff] %v2081
        %2164 = vst [vmem:[#allocation2 + $0x238] sm:$0xff] %v2083
        %2165 = vst [vmem:[#allocation2 + $0x240] sm:$0xff] %v1881
        %2166 = vst [vmem:[#allocation2 + $0x248] sm:$0xff] %v1883
        %2167 = vst [vmem:[#allocation2 + $0x250] sm:$0xff] %v1984
        %2168 = vst [vmem:[#allocation2 + $0x258] sm:$0xff] %v1986
        %2169 = vst [vmem:[#allocation2 + $0x260] sm:$0xff] %v2087
        %2170 = vst [vmem:[#allocation2 + $0x268] sm:$0xff] %v2089
        %2171 = vst [vmem:[#allocation2 + $0x270] sm:$0xff] %v1885
        %2172 = vst [vmem:[#allocation2 + $0x278] sm:$0xff] %v1887
        %2173 = vst [vmem:[#allocation2 + $0x280] sm:$0xff] %v1988
        %2174 = vst [vmem:[#allocation2 + $0x288] sm:$0xff] %v1990
        %2175 = vst [vmem:[#allocation2 + $0x290] sm:$0xff] %v2091
        %2176 = vst [vmem:[#allocation2 + $0x298] sm:$0xff] %v2093
        %2177 = vst [vmem:[#allocation2 + $0x2a0] sm:$0xff] %v1891
        %2178 = vst [vmem:[#allocation2 + $0x2a8] sm:$0xff] %v1893
        %2179 = vst [vmem:[#allocation2 + $0x2b0] sm:$0xff] %v1994
        %2180 = vst [vmem:[#allocation2 + $0x2b8] sm:$0xff] %v1996
        %2181 = vst [vmem:[#allocation2 + $0x2c0] sm:$0xff] %v2097
        %2182 = vst [vmem:[#allocation2 + $0x2c8] sm:$0xff] %v2099
        %2183 = vst [vmem:[#allocation2 + $0x2d0] sm:$0xff] %v1895
        %2184 = vst [vmem:[#allocation2 + $0x2d8] sm:$0xff] %v1897
        %2185 = vst [vmem:[#allocation2 + $0x2e0] sm:$0xff] %v1998
        %2186 = vst [vmem:[#allocation2 + $0x2e8] sm:$0xff] %v2000
        %2187 = vst [vmem:[#allocation2 + $0x2f0] sm:$0xff] %v2101
        %2188 = vst [vmem:[#allocation2 + $0x2f8] sm:$0xff] %v2103
        %v2189 = vld [vmem:[#allocation2] sm:$0xff]
        %v2190 = vld [vmem:[#allocation2 + $0x30] sm:$0xff]
        %v2191 = vld [vmem:[#allocation2 + $0x60] sm:$0xff]
        %v2192 = vld [vmem:[#allocation2 + $0x90] sm:$0xff]
        %v2193 = vld [vmem:[#allocation2 + $0xc0] sm:$0xff]
        %v2194 = vld [vmem:[#allocation2 + $0xf0] sm:$0xff]
        %v2195 = vld [vmem:[#allocation2 + $0x120] sm:$0xff]
        %v2196 = vld [vmem:[#allocation2 + $0x150] sm:$0xff]
        %v2197 = vld [vmem:[#allocation2 + $0x180] sm:$0xff]
        %v2198 = vld [vmem:[#allocation2 + $0x1b0] sm:$0xff]
        %v2199 = vld [vmem:[#allocation2 + $0x1e0] sm:$0xff]
        %v2200 = vld [vmem:[#allocation2 + $0x210] sm:$0xff]
        %v2201 = vld [vmem:[#allocation2 + $0x240] sm:$0xff]
        %v2202 = vld [vmem:[#allocation2 + $0x270] sm:$0xff]
        %v2203 = vld [vmem:[#allocation2 + $0x2a0] sm:$0xff]
        %v2204 = vld [vmem:[#allocation2 + $0x2d0] sm:$0xff]
        %2205 = vadd.xlane.f32.xlu0 %v2189
        %v2206 = vpop.xlane.xlu0 %2205
        %2207 = vadd.xlane.f32.xlu0 %v2190
        %v2208 = vpop.xlane.xlu0 %2207
        %2209 = vadd.xlane.f32.xlu0 %v2191
        %v2210 = vpop.xlane.xlu0 %2209
        %2211 = vadd.xlane.f32.xlu0 %v2192
        %v2212 = vpop.xlane.xlu0 %2211
        %2213 = vadd.xlane.f32.xlu0 %v2193
        %v2214 = vpop.xlane.xlu0 %2213
        %2215 = vadd.xlane.f32.xlu0 %v2194
        %v2216 = vpop.xlane.xlu0 %2215
        %2217 = vadd.xlane.f32.xlu0 %v2195
        %v2218 = vpop.xlane.xlu0 %2217
        %2219 = vadd.xlane.f32.xlu0 %v2196
        %v2220 = vpop.xlane.xlu0 %2219
        %2221 = vadd.xlane.f32.xlu0 %v2197
        %v2222 = vpop.xlane.xlu0 %2221
        %2223 = vadd.xlane.f32.xlu0 %v2198
        %v2224 = vpop.xlane.xlu0 %2223
        %2225 = vadd.xlane.f32.xlu0 %v2199
        %v2226 = vpop.xlane.xlu0 %2225
        %2227 = vadd.xlane.f32.xlu0 %v2200
        %v2228 = vpop.xlane.xlu0 %2227
        %2229 = vadd.xlane.f32.xlu0 %v2201
        %v2230 = vpop.xlane.xlu0 %2229
        %2231 = vadd.xlane.f32.xlu0 %v2202
        %v2232 = vpop.xlane.xlu0 %2231
        %2233 = vadd.xlane.f32.xlu0 %v2203
        %v2234 = vpop.xlane.xlu0 %2233
        %2235 = vadd.xlane.f32.xlu0 %v2204
        %v2236 = vpop.xlane.xlu0 %2235
        %v2237 = vrcp.pop 128.0
        %v2238 = vmul.f32 %v2206, %v2237
        %v2239 = vmul.f32 %v2208, %v2237
        %v2240 = vmul.f32 %v2210, %v2237
        %v2241 = vmul.f32 %v2212, %v2237
        %v2242 = vmul.f32 %v2214, %v2237
        %v2243 = vmul.f32 %v2216, %v2237
        %v2244 = vmul.f32 %v2218, %v2237
        %v2245 = vmul.f32 %v2220, %v2237
        %v2246 = vmul.f32 %v2222, %v2237
        %v2247 = vmul.f32 %v2224, %v2237
        %v2248 = vmul.f32 %v2226, %v2237
        %v2249 = vmul.f32 %v2228, %v2237
        %v2250 = vmul.f32 %v2230, %v2237
        %v2251 = vmul.f32 %v2232, %v2237
        %v2252 = vmul.f32 %v2234, %v2237
        %v2253 = vmul.f32 %v2236, %v2237
        %v2254 = vsub.f32 %v2189, %v2238
        %v2255 = vsub.f32 %v2190, %v2239
        %v2256 = vsub.f32 %v2191, %v2240
        %v2257 = vsub.f32 %v2192, %v2241
        %v2258 = vsub.f32 %v2193, %v2242
        %v2259 = vsub.f32 %v2194, %v2243
        %v2260 = vsub.f32 %v2195, %v2244
        %v2261 = vsub.f32 %v2196, %v2245
        %v2262 = vsub.f32 %v2197, %v2246
        %v2263 = vsub.f32 %v2198, %v2247
        %v2264 = vsub.f32 %v2199, %v2248
        %v2265 = vsub.f32 %v2200, %v2249
        %v2266 = vsub.f32 %v2201, %v2250
        %v2267 = vsub.f32 %v2202, %v2251
        %v2268 = vsub.f32 %v2203, %v2252
        %v2269 = vsub.f32 %v2204, %v2253
        %v2270 = vmul.f32 %v2254, %v2254
        %v2271 = vmul.f32 %v2255, %v2255
        %v2272 = vmul.f32 %v2256, %v2256
        %v2273 = vmul.f32 %v2257, %v2257
        %v2274 = vmul.f32 %v2258, %v2258
        %v2275 = vmul.f32 %v2259, %v2259
        %v2276 = vmul.f32 %v2260, %v2260
        %v2277 = vmul.f32 %v2261, %v2261
        %v2278 = vmul.f32 %v2262, %v2262
        %v2279 = vmul.f32 %v2263, %v2263
        %v2280 = vmul.f32 %v2264, %v2264
        %v2281 = vmul.f32 %v2265, %v2265
        %v2282 = vmul.f32 %v2266, %v2266
        %v2283 = vmul.f32 %v2267, %v2267
        %v2284 = vmul.f32 %v2268, %v2268
        %v2285 = vmul.f32 %v2269, %v2269
        %2286 = vadd.xlane.f32.xlu0 %v2270
        %v2287 = vpop.xlane.xlu0 %2286
        %2288 = vadd.xlane.f32.xlu0 %v2271
        %v2289 = vpop.xlane.xlu0 %2288
        %2290 = vadd.xlane.f32.xlu0 %v2272
        %v2291 = vpop.xlane.xlu0 %2290
        %2292 = vadd.xlane.f32.xlu0 %v2273
        %v2293 = vpop.xlane.xlu0 %2292
        %2294 = vadd.xlane.f32.xlu0 %v2274
        %v2295 = vpop.xlane.xlu0 %2294
        %2296 = vadd.xlane.f32.xlu0 %v2275
        %v2297 = vpop.xlane.xlu0 %2296
        %2298 = vadd.xlane.f32.xlu0 %v2276
        %v2299 = vpop.xlane.xlu0 %2298
        %2300 = vadd.xlane.f32.xlu0 %v2277
        %v2301 = vpop.xlane.xlu0 %2300
        %2302 = vadd.xlane.f32.xlu0 %v2278
        %v2303 = vpop.xlane.xlu0 %2302
        %2304 = vadd.xlane.f32.xlu0 %v2279
        %v2305 = vpop.xlane.xlu0 %2304
        %2306 = vadd.xlane.f32.xlu0 %v2280
        %v2307 = vpop.xlane.xlu0 %2306
        %2308 = vadd.xlane.f32.xlu0 %v2281
        %v2309 = vpop.xlane.xlu0 %2308
        %2310 = vadd.xlane.f32.xlu0 %v2282
        %v2311 = vpop.xlane.xlu0 %2310
        %2312 = vadd.xlane.f32.xlu0 %v2283
        %v2313 = vpop.xlane.xlu0 %2312
        %2314 = vadd.xlane.f32.xlu0 %v2284
        %v2315 = vpop.xlane.xlu0 %2314
        %2316 = vadd.xlane.f32.xlu0 %v2285
        %v2317 = vpop.xlane.xlu0 %2316
        %v2318 = vmul.f32 %v2287, %v2237
        %v2319 = vmul.f32 %v2289, %v2237
        %v2320 = vmul.f32 %v2291, %v2237
        %v2321 = vmul.f32 %v2293, %v2237
        %v2322 = vmul.f32 %v2295, %v2237
        %v2323 = vmul.f32 %v2297, %v2237
        %v2324 = vmul.f32 %v2299, %v2237
        %v2325 = vmul.f32 %v2301, %v2237
        %v2326 = vmul.f32 %v2303, %v2237
        %v2327 = vmul.f32 %v2305, %v2237
        %v2328 = vmul.f32 %v2307, %v2237
        %v2329 = vmul.f32 %v2309, %v2237
        %v2330 = vmul.f32 %v2311, %v2237
        %v2331 = vmul.f32 %v2313, %v2237
        %v2332 = vmul.f32 %v2315, %v2237
        %v2333 = vmul.f32 %v2317, %v2237
        %v2334 = vadd.f32 %v2318, 1e-05
        %v2335 = vadd.f32 %v2319, 1e-05
        %v2336 = vadd.f32 %v2320, 1e-05
        %v2337 = vadd.f32 %v2321, 1e-05
        %v2338 = vadd.f32 %v2322, 1e-05
        %v2339 = vadd.f32 %v2323, 1e-05
        %v2340 = vadd.f32 %v2324, 1e-05
        %v2341 = vadd.f32 %v2325, 1e-05
        %v2342 = vadd.f32 %v2326, 1e-05
        %v2343 = vadd.f32 %v2327, 1e-05
        %v2344 = vadd.f32 %v2328, 1e-05
        %v2345 = vadd.f32 %v2329, 1e-05
        %v2346 = vadd.f32 %v2330, 1e-05
        %v2347 = vadd.f32 %v2331, 1e-05
        %v2348 = vadd.f32 %v2332, 1e-05
        %v2349 = vadd.f32 %v2333, 1e-05
        %v2350 = vrsqrt.pop %v2334
        %v2351 = vrsqrt.pop %v2335
        %v2352 = vrsqrt.pop %v2336
        %v2353 = vrsqrt.pop %v2337
        %v2354 = vrsqrt.pop %v2338
        %v2355 = vrsqrt.pop %v2339
        %v2356 = vrsqrt.pop %v2340
        %v2357 = vrsqrt.pop %v2341
        %v2358 = vrsqrt.pop %v2342
        %v2359 = vrsqrt.pop %v2343
        %v2360 = vrsqrt.pop %v2344
        %v2361 = vrsqrt.pop %v2345
        %v2362 = vrsqrt.pop %v2346
        %v2363 = vrsqrt.pop %v2347
        %v2364 = vrsqrt.pop %v2348
        %v2365 = vrsqrt.pop %v2349
        %v2366 = vmul.f32 %v2350, 0.088388346
        %v2367 = vmul.f32 %v2351, 0.088388346
        %v2368 = vmul.f32 %v2352, 0.088388346
        %v2369 = vmul.f32 %v2353, 0.088388346
        %v2370 = vmul.f32 %v2354, 0.088388346
        %v2371 = vmul.f32 %v2355, 0.088388346
        %v2372 = vmul.f32 %v2356, 0.088388346
        %v2373 = vmul.f32 %v2357, 0.088388346
        %v2374 = vmul.f32 %v2358, 0.088388346
        %v2375 = vmul.f32 %v2359, 0.088388346
        %v2376 = vmul.f32 %v2360, 0.088388346
        %v2377 = vmul.f32 %v2361, 0.088388346
        %v2378 = vmul.f32 %v2362, 0.088388346
        %v2379 = vmul.f32 %v2363, 0.088388346
        %v2380 = vmul.f32 %v2364, 0.088388346
        %v2381 = vmul.f32 %v2365, 0.088388346
        %v2382 = vmul.f32 %v2254, %v2366
        %v2383 = vmul.f32 %v2255, %v2367
        %v2384 = vmul.f32 %v2256, %v2368
        %v2385 = vmul.f32 %v2257, %v2369
        %v2386 = vmul.f32 %v2258, %v2370
        %v2387 = vmul.f32 %v2259, %v2371
        %v2388 = vmul.f32 %v2260, %v2372
        %v2389 = vmul.f32 %v2261, %v2373
        %v2390 = vmul.f32 %v2262, %v2374
        %v2391 = vmul.f32 %v2263, %v2375
        %v2392 = vmul.f32 %v2264, %v2376
        %v2393 = vmul.f32 %v2265, %v2377
        %v2394 = vmul.f32 %v2266, %v2378
        %v2395 = vmul.f32 %v2267, %v2379
        %v2396 = vmul.f32 %v2268, %v2380
        %v2397 = vmul.f32 %v2269, %v2381
        %v2398 = vpack.c.bf16 %v2383, %v2382
        %v2399 = vpack.c.bf16 %v2385, %v2384
        %v2400 = vpack.c.bf16 %v2387, %v2386
        %v2401 = vpack.c.bf16 %v2389, %v2388
        %v2402 = vpack.c.bf16 %v2391, %v2390
        %v2403 = vpack.c.bf16 %v2393, %v2392
        %v2404 = vpack.c.bf16 %v2395, %v2394
        %v2405 = vpack.c.bf16 %v2397, %v2396
        %v2406 = vld [vmem:[#allocation2 + $0x10] sm:$0xff]
        %v2407 = vld [vmem:[#allocation2 + $0x40] sm:$0xff]
        %v2408 = vld [vmem:[#allocation2 + $0x70] sm:$0xff]
        %v2409 = vld [vmem:[#allocation2 + $0xa0] sm:$0xff]
        %v2410 = vld [vmem:[#allocation2 + $0xd0] sm:$0xff]
        %v2411 = vld [vmem:[#allocation2 + $0x100] sm:$0xff]
        %v2412 = vld [vmem:[#allocation2 + $0x130] sm:$0xff]
        %v2413 = vld [vmem:[#allocation2 + $0x160] sm:$0xff]
        %v2414 = vld [vmem:[#allocation2 + $0x190] sm:$0xff]
        %v2415 = vld [vmem:[#allocation2 + $0x1c0] sm:$0xff]
        %v2416 = vld [vmem:[#allocation2 + $0x1f0] sm:$0xff]
        %v2417 = vld [vmem:[#allocation2 + $0x220] sm:$0xff]
        %v2418 = vld [vmem:[#allocation2 + $0x250] sm:$0xff]
        %v2419 = vld [vmem:[#allocation2 + $0x280] sm:$0xff]
        %v2420 = vld [vmem:[#allocation2 + $0x2b0] sm:$0xff]
        %v2421 = vld [vmem:[#allocation2 + $0x2e0] sm:$0xff]
        %2422 = vadd.xlane.f32.xlu0 %v2406
        %v2423 = vpop.xlane.xlu0 %2422
        %2424 = vadd.xlane.f32.xlu0 %v2407
        %v2425 = vpop.xlane.xlu0 %2424
        %2426 = vadd.xlane.f32.xlu0 %v2408
        %v2427 = vpop.xlane.xlu0 %2426
        %2428 = vadd.xlane.f32.xlu0 %v2409
        %v2429 = vpop.xlane.xlu0 %2428
        %2430 = vadd.xlane.f32.xlu0 %v2410
        %v2431 = vpop.xlane.xlu0 %2430
        %2432 = vadd.xlane.f32.xlu0 %v2411
        %v2433 = vpop.xlane.xlu0 %2432
        %2434 = vadd.xlane.f32.xlu0 %v2412
        %v2435 = vpop.xlane.xlu0 %2434
        %2436 = vadd.xlane.f32.xlu0 %v2413
        %v2437 = vpop.xlane.xlu0 %2436
        %2438 = vadd.xlane.f32.xlu0 %v2414
        %v2439 = vpop.xlane.xlu0 %2438
        %2440 = vadd.xlane.f32.xlu0 %v2415
        %v2441 = vpop.xlane.xlu0 %2440
        %2442 = vadd.xlane.f32.xlu0 %v2416
        %v2443 = vpop.xlane.xlu0 %2442
        %2444 = vadd.xlane.f32.xlu0 %v2417
        %v2445 = vpop.xlane.xlu0 %2444
        %2446 = vadd.xlane.f32.xlu0 %v2418
        %v2447 = vpop.xlane.xlu0 %2446
        %2448 = vadd.xlane.f32.xlu0 %v2419
        %v2449 = vpop.xlane.xlu0 %2448
        %2450 = vadd.xlane.f32.xlu0 %v2420
        %v2451 = vpop.xlane.xlu0 %2450
        %2452 = vadd.xlane.f32.xlu0 %v2421
        %v2453 = vpop.xlane.xlu0 %2452
        %v2454 = vmul.f32 %v2423, %v2237
        %v2455 = vmul.f32 %v2425, %v2237
        %v2456 = vmul.f32 %v2427, %v2237
        %v2457 = vmul.f32 %v2429, %v2237
        %v2458 = vmul.f32 %v2431, %v2237
        %v2459 = vmul.f32 %v2433, %v2237
        %v2460 = vmul.f32 %v2435, %v2237
        %v2461 = vmul.f32 %v2437, %v2237
        %v2462 = vmul.f32 %v2439, %v2237
        %v2463 = vmul.f32 %v2441, %v2237
        %v2464 = vmul.f32 %v2443, %v2237
        %v2465 = vmul.f32 %v2445, %v2237
        %v2466 = vmul.f32 %v2447, %v2237
        %v2467 = vmul.f32 %v2449, %v2237
        %v2468 = vmul.f32 %v2451, %v2237
        %v2469 = vmul.f32 %v2453, %v2237
        %v2470 = vsub.f32 %v2406, %v2454
        %v2471 = vsub.f32 %v2407, %v2455
        %v2472 = vsub.f32 %v2408, %v2456
        %v2473 = vsub.f32 %v2409, %v2457
        %v2474 = vsub.f32 %v2410, %v2458
        %v2475 = vsub.f32 %v2411, %v2459
        %v2476 = vsub.f32 %v2412, %v2460
        %v2477 = vsub.f32 %v2413, %v2461
        %v2478 = vsub.f32 %v2414, %v2462
        %v2479 = vsub.f32 %v2415, %v2463
        %v2480 = vsub.f32 %v2416, %v2464
        %v2481 = vsub.f32 %v2417, %v2465
        %v2482 = vsub.f32 %v2418, %v2466
        %v2483 = vsub.f32 %v2419, %v2467
        %v2484 = vsub.f32 %v2420, %v2468
        %v2485 = vsub.f32 %v2421, %v2469
        %v2486 = vmul.f32 %v2470, %v2470
        %v2487 = vmul.f32 %v2471, %v2471
        %v2488 = vmul.f32 %v2472, %v2472
        %v2489 = vmul.f32 %v2473, %v2473
        %v2490 = vmul.f32 %v2474, %v2474
        %v2491 = vmul.f32 %v2475, %v2475
        %v2492 = vmul.f32 %v2476, %v2476
        %v2493 = vmul.f32 %v2477, %v2477
        %v2494 = vmul.f32 %v2478, %v2478
        %v2495 = vmul.f32 %v2479, %v2479
        %v2496 = vmul.f32 %v2480, %v2480
        %v2497 = vmul.f32 %v2481, %v2481
        %v2498 = vmul.f32 %v2482, %v2482
        %v2499 = vmul.f32 %v2483, %v2483
        %v2500 = vmul.f32 %v2484, %v2484
        %v2501 = vmul.f32 %v2485, %v2485
        %2502 = vadd.xlane.f32.xlu0 %v2486
        %v2503 = vpop.xlane.xlu0 %2502
        %2504 = vadd.xlane.f32.xlu0 %v2487
        %v2505 = vpop.xlane.xlu0 %2504
        %2506 = vadd.xlane.f32.xlu0 %v2488
        %v2507 = vpop.xlane.xlu0 %2506
        %2508 = vadd.xlane.f32.xlu0 %v2489
        %v2509 = vpop.xlane.xlu0 %2508
        %2510 = vadd.xlane.f32.xlu0 %v2490
        %v2511 = vpop.xlane.xlu0 %2510
        %2512 = vadd.xlane.f32.xlu0 %v2491
        %v2513 = vpop.xlane.xlu0 %2512
        %2514 = vadd.xlane.f32.xlu0 %v2492
        %v2515 = vpop.xlane.xlu0 %2514
        %2516 = vadd.xlane.f32.xlu0 %v2493
        %v2517 = vpop.xlane.xlu0 %2516
        %2518 = vadd.xlane.f32.xlu0 %v2494
        %v2519 = vpop.xlane.xlu0 %2518
        %2520 = vadd.xlane.f32.xlu0 %v2495
        %v2521 = vpop.xlane.xlu0 %2520
        %2522 = vadd.xlane.f32.xlu0 %v2496
        %v2523 = vpop.xlane.xlu0 %2522
        %2524 = vadd.xlane.f32.xlu0 %v2497
        %v2525 = vpop.xlane.xlu0 %2524
        %2526 = vadd.xlane.f32.xlu0 %v2498
        %v2527 = vpop.xlane.xlu0 %2526
        %2528 = vadd.xlane.f32.xlu0 %v2499
        %v2529 = vpop.xlane.xlu0 %2528
        %2530 = vadd.xlane.f32.xlu0 %v2500
        %v2531 = vpop.xlane.xlu0 %2530
        %2532 = vadd.xlane.f32.xlu0 %v2501
        %v2533 = vpop.xlane.xlu0 %2532
        %v2534 = vmul.f32 %v2503, %v2237
        %v2535 = vmul.f32 %v2505, %v2237
        %v2536 = vmul.f32 %v2507, %v2237
        %v2537 = vmul.f32 %v2509, %v2237
        %v2538 = vmul.f32 %v2511, %v2237
        %v2539 = vmul.f32 %v2513, %v2237
        %v2540 = vmul.f32 %v2515, %v2237
        %v2541 = vmul.f32 %v2517, %v2237
        %v2542 = vmul.f32 %v2519, %v2237
        %v2543 = vmul.f32 %v2521, %v2237
        %v2544 = vmul.f32 %v2523, %v2237
        %v2545 = vmul.f32 %v2525, %v2237
        %v2546 = vmul.f32 %v2527, %v2237
        %v2547 = vmul.f32 %v2529, %v2237
        %v2548 = vmul.f32 %v2531, %v2237
        %v2549 = vmul.f32 %v2533, %v2237
        %v2550 = vadd.f32 %v2534, 1e-05
        %v2551 = vadd.f32 %v2535, 1e-05
        %v2552 = vadd.f32 %v2536, 1e-05
        %v2553 = vadd.f32 %v2537, 1e-05
        %v2554 = vadd.f32 %v2538, 1e-05
        %v2555 = vadd.f32 %v2539, 1e-05
        %v2556 = vadd.f32 %v2540, 1e-05
        %v2557 = vadd.f32 %v2541, 1e-05
        %v2558 = vadd.f32 %v2542, 1e-05
        %v2559 = vadd.f32 %v2543, 1e-05
        %v2560 = vadd.f32 %v2544, 1e-05
        %v2561 = vadd.f32 %v2545, 1e-05
        %v2562 = vadd.f32 %v2546, 1e-05
        %v2563 = vadd.f32 %v2547, 1e-05
        %v2564 = vadd.f32 %v2548, 1e-05
        %v2565 = vadd.f32 %v2549, 1e-05
        %v2566 = vrsqrt.pop %v2550
        %v2567 = vrsqrt.pop %v2551
        %v2568 = vrsqrt.pop %v2552
        %v2569 = vrsqrt.pop %v2553
        %v2570 = vrsqrt.pop %v2554
        %v2571 = vrsqrt.pop %v2555
        %v2572 = vrsqrt.pop %v2556
        %v2573 = vrsqrt.pop %v2557
        %v2574 = vrsqrt.pop %v2558
        %v2575 = vrsqrt.pop %v2559
        %v2576 = vrsqrt.pop %v2560
        %v2577 = vrsqrt.pop %v2561
        %v2578 = vrsqrt.pop %v2562
        %v2579 = vrsqrt.pop %v2563
        %v2580 = vrsqrt.pop %v2564
        %v2581 = vrsqrt.pop %v2565
        %v2582 = vmul.f32 %v2470, %v2566
        %v2583 = vmul.f32 %v2471, %v2567
        %v2584 = vmul.f32 %v2472, %v2568
        %v2585 = vmul.f32 %v2473, %v2569
        %v2586 = vmul.f32 %v2474, %v2570
        %v2587 = vmul.f32 %v2475, %v2571
        %v2588 = vmul.f32 %v2476, %v2572
        %v2589 = vmul.f32 %v2477, %v2573
        %v2590 = vmul.f32 %v2478, %v2574
        %v2591 = vmul.f32 %v2479, %v2575
        %v2592 = vmul.f32 %v2480, %v2576
        %v2593 = vmul.f32 %v2481, %v2577
        %v2594 = vmul.f32 %v2482, %v2578
        %v2595 = vmul.f32 %v2483, %v2579
        %v2596 = vmul.f32 %v2484, %v2580
        %v2597 = vmul.f32 %v2485, %v2581
        %v2598 = vpack.c.bf16 %v2583, %v2582
        %v2599 = vpack.c.bf16 %v2585, %v2584
        %v2600 = vpack.c.bf16 %v2587, %v2586
        %v2601 = vpack.c.bf16 %v2589, %v2588
        %v2602 = vpack.c.bf16 %v2591, %v2590
        %v2603 = vpack.c.bf16 %v2593, %v2592
        %v2604 = vpack.c.bf16 %v2595, %v2594
        %v2605 = vpack.c.bf16 %v2597, %v2596
        %v2606 = vld [vmem:[#allocation2 + $0x20] sm:$0xff]
        %v2607 = vld [vmem:[#allocation2 + $0x50] sm:$0xff]
        %v2608 = vld [vmem:[#allocation2 + $0x80] sm:$0xff]
        %v2609 = vld [vmem:[#allocation2 + $0xb0] sm:$0xff]
        %v2610 = vld [vmem:[#allocation2 + $0xe0] sm:$0xff]
        %v2611 = vld [vmem:[#allocation2 + $0x110] sm:$0xff]
        %v2612 = vld [vmem:[#allocation2 + $0x140] sm:$0xff]
        %v2613 = vld [vmem:[#allocation2 + $0x170] sm:$0xff]
        %v2614 = vld [vmem:[#allocation2 + $0x1a0] sm:$0xff]
        %v2615 = vld [vmem:[#allocation2 + $0x1d0] sm:$0xff]
        %v2616 = vld [vmem:[#allocation2 + $0x200] sm:$0xff]
        %v2617 = vld [vmem:[#allocation2 + $0x230] sm:$0xff]
        %v2618 = vld [vmem:[#allocation2 + $0x260] sm:$0xff]
        %v2619 = vld [vmem:[#allocation2 + $0x290] sm:$0xff]
        %v2620 = vld [vmem:[#allocation2 + $0x2c0] sm:$0xff]
        %v2621 = vld [vmem:[#allocation2 + $0x2f0] sm:$0xff]
        %v2622 = vpack.c.bf16 %v2607, %v2606
        %v2623 = vpack.c.bf16 %v2609, %v2608
        %v2624 = vpack.c.bf16 %v2611, %v2610
        %v2625 = vpack.c.bf16 %v2613, %v2612
        %v2626 = vpack.c.bf16 %v2615, %v2614
        %v2627 = vpack.c.bf16 %v2617, %v2616
        %v2628 = vpack.c.bf16 %v2619, %v2618
        %v2629 = vpack.c.bf16 %v2621, %v2620
        %2630 = vmatprep.subr.bf16.mxu0 0
        %2631 = vmatpush1.bf16.xpose.msra.mxu0 %v2598
        %2632 = vmatprep.subr.bf16.mxu0 0
        %2633 = vmatpush1.bf16.xpose.msra.mxu0 %v2599
        %2634 = vmatprep.subr.bf16.mxu0 0
        %2635 = vmatpush1.bf16.xpose.msra.mxu0 %v2600
        %2636 = vmatprep.subr.bf16.mxu0 0
        %2637 = vmatpush1.bf16.xpose.msra.mxu0 %v2601
        %2638 = vmatprep.subr.bf16.mxu0 0
        %2639 = vmatpush1.bf16.xpose.msra.mxu0 %v2602
        %2640 = vmatprep.subr.bf16.mxu0 0
        %2641 = vmatpush1.bf16.xpose.msra.mxu0 %v2603
        %2642 = vmatprep.subr.bf16.mxu0 0
        %2643 = vmatpush1.bf16.xpose.msra.mxu0 %v2604
        %2644 = vmatprep.subr.bf16.mxu0 0
        %2645 = vmatpush1.bf16.xpose.msra.mxu0 %v2605
        %2646 = vmatprep.subr.bf16.mxu0 0
        %2647 = vmatpush1.bf16.xpose.msra.mxu0 0
        %2648 = vmatprep.subr.bf16.mxu0 0
        %2649 = vmatpush1.bf16.xpose.msra.mxu0 0
        %2650 = vmatprep.subr.bf16.mxu0 0
        %2651 = vmatpush1.bf16.xpose.msra.mxu0 0
        %2652 = vmatprep.subr.bf16.mxu0 0
        %2653 = vmatpush1.bf16.xpose.msra.mxu0 0
        %2654 = vmatprep.subr.bf16.mxu0 0
        %2655 = vmatpush1.bf16.xpose.msra.mxu0 0
        %2656 = vmatprep.subr.bf16.mxu0 0
        %2657 = vmatpush1.bf16.xpose.msra.mxu0 0
        %2658 = vmatprep.subr.bf16.mxu0 0
        %2659 = vmatpush1.bf16.xpose.msra.mxu0 0
        %2660 = vmatprep.subr.bf16.mxu0 0
        %2661 = vmatpush1.bf16.xpose.msra.mxu0 0
        %2662 = vmatprep.mubr.bf16.mxu0 0
        %2663 = vmatmul.mubr.bf16.gmra.mrb[0].mxu0 %v2398
        %v2664 = vpop.f32.mrb[0].mxu0
        %v2665 = vadd.f32 0.0, %v2664
        %v2666 = vpop.f32.mrb[0].mxu0
        %v2667 = vpop.f32.mrb[0].mxu0
        %v2668 = vadd.f32 0.0, %v2667
        %v2669 = vpop.f32.mrb[0].mxu0
        %2670 = vmatprep.mubr.bf16.mxu0 0
        %2671 = vmatmul.mubr.bf16.gmra.mrb[0].mxu0 %v2399
        %v2672 = vpop.f32.mrb[0].mxu0
        %v2673 = vadd.f32 0.0, %v2672
        %v2674 = vpop.f32.mrb[0].mxu0
        %v2675 = vpop.f32.mrb[0].mxu0
        %v2676 = vadd.f32 0.0, %v2675
        %v2677 = vpop.f32.mrb[0].mxu0
        %2678 = vmatprep.mubr.bf16.mxu0 0
        %2679 = vmatmul.mubr.bf16.gmra.mrb[0].mxu0 %v2400
        %v2680 = vpop.f32.mrb[0].mxu0
        %v2681 = vadd.f32 0.0, %v2680
        %v2682 = vpop.f32.mrb[0].mxu0
        %v2683 = vpop.f32.mrb[0].mxu0
        %v2684 = vadd.f32 0.0, %v2683
        %v2685 = vpop.f32.mrb[0].mxu0
        %2686 = vmatprep.mubr.bf16.mxu0 0
        %2687 = vmatmul.mubr.bf16.gmra.mrb[0].mxu0 %v2401
        %v2688 = vpop.f32.mrb[0].mxu0
        %v2689 = vadd.f32 0.0, %v2688
        %v2690 = vpop.f32.mrb[0].mxu0
        %v2691 = vpop.f32.mrb[0].mxu0
        %v2692 = vadd.f32 0.0, %v2691
        %v2693 = vpop.f32.mrb[0].mxu0
        %2694 = vmatprep.mubr.bf16.mxu0 0
        %2695 = vmatmul.mubr.bf16.gmra.mrb[0].mxu0 %v2402
        %v2696 = vpop.f32.mrb[0].mxu0
        %v2697 = vadd.f32 0.0, %v2696
        %v2698 = vpop.f32.mrb[0].mxu0
        %v2699 = vpop.f32.mrb[0].mxu0
        %v2700 = vadd.f32 0.0, %v2699
        %v2701 = vpop.f32.mrb[0].mxu0
        %2702 = vmatprep.mubr.bf16.mxu0 0
        %2703 = vmatmul.mubr.bf16.gmra.mrb[0].mxu0 %v2403
        %v2704 = vpop.f32.mrb[0].mxu0
        %v2705 = vadd.f32 0.0, %v2704
        %v2706 = vpop.f32.mrb[0].mxu0
        %v2707 = vpop.f32.mrb[0].mxu0
        %v2708 = vadd.f32 0.0, %v2707
        %v2709 = vpop.f32.mrb[0].mxu0
        %2710 = vmatprep.mubr.bf16.mxu0 0
        %2711 = vmatmul.mubr.bf16.gmra.mrb[0].mxu0 %v2404
        %v2712 = vpop.f32.mrb[0].mxu0
        %v2713 = vadd.f32 0.0, %v2712
        %v2714 = vpop.f32.mrb[0].mxu0
        %v2715 = vpop.f32.mrb[0].mxu0
        %v2716 = vadd.f32 0.0, %v2715
        %v2717 = vpop.f32.mrb[0].mxu0
        %2718 = vmatprep.mubr.bf16.mxu0 0
        %2719 = vmatmul.mubr.bf16.gmra.mrb[0].mxu0 %v2405
        %v2720 = vpop.f32.mrb[0].mxu0
        %v2721 = vadd.f32 0.0, %v2720
        %v2722 = vpop.f32.mrb[0].mxu0
        %v2723 = vpop.f32.mrb[0].mxu0
        %v2724 = vadd.f32 0.0, %v2723
        %v2725 = vpop.f32.mrb[0].mxu0
        %2726 = vdwg.mxu0
        %2727 = vmax.xlane.f32.xlu0 %v2665
        %v2728 = vpop.xlane.xlu0 %2727
        %2729 = vmax.xlane.f32.xlu0 %v2668
        %v2730 = vpop.xlane.xlu0 %2729
        %2731 = vmax.xlane.f32.xlu0 %v2673
        %v2732 = vpop.xlane.xlu0 %2731
        %2733 = vmax.xlane.f32.xlu0 %v2676
        %v2734 = vpop.xlane.xlu0 %2733
        %2735 = vmax.xlane.f32.xlu0 %v2681
        %v2736 = vpop.xlane.xlu0 %2735
        %2737 = vmax.xlane.f32.xlu0 %v2684
        %v2738 = vpop.xlane.xlu0 %2737
        %2739 = vmax.xlane.f32.xlu0 %v2689
        %v2740 = vpop.xlane.xlu0 %2739
        %2741 = vmax.xlane.f32.xlu0 %v2692
        %v2742 = vpop.xlane.xlu0 %2741
        %2743 = vmax.xlane.f32.xlu0 %v2697
        %v2744 = vpop.xlane.xlu0 %2743
        %2745 = vmax.xlane.f32.xlu0 %v2700
        %v2746 = vpop.xlane.xlu0 %2745
        %2747 = vmax.xlane.f32.xlu0 %v2705
        %v2748 = vpop.xlane.xlu0 %2747
        %2749 = vmax.xlane.f32.xlu0 %v2708
        %v2750 = vpop.xlane.xlu0 %2749
        %2751 = vmax.xlane.f32.xlu0 %v2713
        %v2752 = vpop.xlane.xlu0 %2751
        %2753 = vmax.xlane.f32.xlu0 %v2716
        %v2754 = vpop.xlane.xlu0 %2753
        %2755 = vmax.xlane.f32.xlu0 %v2721
        %v2756 = vpop.xlane.xlu0 %2755
        %2757 = vmax.xlane.f32.xlu0 %v2724
        %v2758 = vpop.xlane.xlu0 %2757
        %v2759 = vsub.f32 %v2665, %v2728
        %v2760 = vsub.f32 %v2668, %v2730
        %v2761 = vsub.f32 %v2673, %v2732
        %v2762 = vsub.f32 %v2676, %v2734
        %v2763 = vsub.f32 %v2681, %v2736
        %v2764 = vsub.f32 %v2684, %v2738
        %v2765 = vsub.f32 %v2689, %v2740
        %v2766 = vsub.f32 %v2692, %v2742
        %v2767 = vsub.f32 %v2697, %v2744
        %v2768 = vsub.f32 %v2700, %v2746
        %v2769 = vsub.f32 %v2705, %v2748
        %v2770 = vsub.f32 %v2708, %v2750
        %v2771 = vsub.f32 %v2713, %v2752
        %v2772 = vsub.f32 %v2716, %v2754
        %v2773 = vsub.f32 %v2721, %v2756
        %v2774 = vsub.f32 %v2724, %v2758
        %v2775 = vmul.f32 %v2759, 1.442695
        %v2776 = vpow.pop %v2775
        %v2777 = vmul.f32 %v2760, 1.442695
        %v2778 = vpow.pop %v2777
        %v2779 = vmul.f32 %v2761, 1.442695
        %v2780 = vpow.pop %v2779
        %v2781 = vmul.f32 %v2762, 1.442695
        %v2782 = vpow.pop %v2781
        %v2783 = vmul.f32 %v2763, 1.442695
        %v2784 = vpow.pop %v2783
        %v2785 = vmul.f32 %v2764, 1.442695
        %v2786 = vpow.pop %v2785
        %v2787 = vmul.f32 %v2765, 1.442695
        %v2788 = vpow.pop %v2787
        %v2789 = vmul.f32 %v2766, 1.442695
        %v2790 = vpow.pop %v2789
        %v2791 = vmul.f32 %v2767, 1.442695
        %v2792 = vpow.pop %v2791
        %v2793 = vmul.f32 %v2768, 1.442695
        %v2794 = vpow.pop %v2793
        %v2795 = vmul.f32 %v2769, 1.442695
        %v2796 = vpow.pop %v2795
        %v2797 = vmul.f32 %v2770, 1.442695
        %v2798 = vpow.pop %v2797
        %v2799 = vmul.f32 %v2771, 1.442695
        %v2800 = vpow.pop %v2799
        %v2801 = vmul.f32 %v2772, 1.442695
        %v2802 = vpow.pop %v2801
        %v2803 = vmul.f32 %v2773, 1.442695
        %v2804 = vpow.pop %v2803
        %v2805 = vmul.f32 %v2774, 1.442695
        %v2806 = vpow.pop %v2805
        %2807 = vadd.xlane.f32.xlu0 %v2776
        %v2808 = vpop.xlane.xlu0 %2807
        %2809 = vadd.xlane.f32.xlu0 %v2778
        %v2810 = vpop.xlane.xlu0 %2809
        %2811 = vadd.xlane.f32.xlu0 %v2780
        %v2812 = vpop.xlane.xlu0 %2811
        %2813 = vadd.xlane.f32.xlu0 %v2782
        %v2814 = vpop.xlane.xlu0 %2813
        %2815 = vadd.xlane.f32.xlu0 %v2784
        %v2816 = vpop.xlane.xlu0 %2815
        %2817 = vadd.xlane.f32.xlu0 %v2786
        %v2818 = vpop.xlane.xlu0 %2817
        %2819 = vadd.xlane.f32.xlu0 %v2788
        %v2820 = vpop.xlane.xlu0 %2819
        %2821 = vadd.xlane.f32.xlu0 %v2790
        %v2822 = vpop.xlane.xlu0 %2821
        %2823 = vadd.xlane.f32.xlu0 %v2792
        %v2824 = vpop.xlane.xlu0 %2823
        %2825 = vadd.xlane.f32.xlu0 %v2794
        %v2826 = vpop.xlane.xlu0 %2825
        %2827 = vadd.xlane.f32.xlu0 %v2796
        %v2828 = vpop.xlane.xlu0 %2827
        %2829 = vadd.xlane.f32.xlu0 %v2798
        %v2830 = vpop.xlane.xlu0 %2829
        %2831 = vadd.xlane.f32.xlu0 %v2800
        %v2832 = vpop.xlane.xlu0 %2831
        %2833 = vadd.xlane.f32.xlu0 %v2802
        %v2834 = vpop.xlane.xlu0 %2833
        %2835 = vadd.xlane.f32.xlu0 %v2804
        %v2836 = vpop.xlane.xlu0 %2835
        %2837 = vadd.xlane.f32.xlu0 %v2806
        %v2838 = vpop.xlane.xlu0 %2837
        %v2839 = vrcp.pop %v2808
        %v2840 = vrcp.pop %v2810
        %v2841 = vrcp.pop %v2812
        %v2842 = vrcp.pop %v2814
        %v2843 = vrcp.pop %v2816
        %v2844 = vrcp.pop %v2818
        %v2845 = vrcp.pop %v2820
        %v2846 = vrcp.pop %v2822
        %v2847 = vrcp.pop %v2824
        %v2848 = vrcp.pop %v2826
        %v2849 = vrcp.pop %v2828
        %v2850 = vrcp.pop %v2830
        %v2851 = vrcp.pop %v2832
        %v2852 = vrcp.pop %v2834
        %v2853 = vrcp.pop %v2836
        %v2854 = vrcp.pop %v2838
        %v2855 = vmul.f32 %v2776, %v2839
        %v2856 = vmul.f32 %v2778, %v2840
        %v2857 = vmul.f32 %v2780, %v2841
        %v2858 = vmul.f32 %v2782, %v2842
        %v2859 = vmul.f32 %v2784, %v2843
        %v2860 = vmul.f32 %v2786, %v2844
        %v2861 = vmul.f32 %v2788, %v2845
        %v2862 = vmul.f32 %v2790, %v2846
        %v2863 = vmul.f32 %v2792, %v2847
        %v2864 = vmul.f32 %v2794, %v2848
        %v2865 = vmul.f32 %v2796, %v2849
        %v2866 = vmul.f32 %v2798, %v2850
        %v2867 = vmul.f32 %v2800, %v2851
        %v2868 = vmul.f32 %v2802, %v2852
        %v2869 = vmul.f32 %v2804, %v2853
        %v2870 = vmul.f32 %v2806, %v2854
        %v2871 = vpack.c.bf16 %v2856, %v2855
        %v2872 = vpack.c.bf16 %v2858, %v2857
        %v2873 = vpack.c.bf16 %v2860, %v2859
        %v2874 = vpack.c.bf16 %v2862, %v2861
        %v2875 = vpack.c.bf16 %v2864, %v2863
        %v2876 = vpack.c.bf16 %v2866, %v2865
        %v2877 = vpack.c.bf16 %v2868, %v2867
        %v2878 = vpack.c.bf16 %v2870, %v2869
        %2879 = vmatprep.subr.bf16.mxu0 0
        %2880 = vmatpush1.bf16.msra.mxu0 %v2622
        %2881 = vmatprep.subr.bf16.mxu0 0
        %2882 = vmatpush1.bf16.msra.mxu0 %v2623
        %2883 = vmatprep.subr.bf16.mxu0 0
        %2884 = vmatpush1.bf16.msra.mxu0 %v2624
        %2885 = vmatprep.subr.bf16.mxu0 0
        %2886 = vmatpush1.bf16.msra.mxu0 %v2625
        %2887 = vmatprep.subr.bf16.mxu0 0
        %2888 = vmatpush1.bf16.msra.mxu0 %v2626
        %2889 = vmatprep.subr.bf16.mxu0 0
        %2890 = vmatpush1.bf16.msra.mxu0 %v2627
        %2891 = vmatprep.subr.bf16.mxu0 0
        %2892 = vmatpush1.bf16.msra.mxu0 %v2628
        %2893 = vmatprep.subr.bf16.mxu0 0
        %2894 = vmatpush1.bf16.msra.mxu0 %v2629
        %2895 = vmatprep.subr.bf16.mxu0 0
        %2896 = vmatpush1.bf16.msra.mxu0 0
        %2897 = vmatprep.subr.bf16.mxu0 0
        %2898 = vmatpush1.bf16.msra.mxu0 0
        %2899 = vmatprep.subr.bf16.mxu0 0
        %2900 = vmatpush1.bf16.msra.mxu0 0
        %2901 = vmatprep.subr.bf16.mxu0 0
        %2902 = vmatpush1.bf16.msra.mxu0 0
        %2903 = vmatprep.subr.bf16.mxu0 0
        %2904 = vmatpush1.bf16.msra.mxu0 0
        %2905 = vmatprep.subr.bf16.mxu0 0
        %2906 = vmatpush1.bf16.msra.mxu0 0
        %2907 = vmatprep.subr.bf16.mxu0 0
        %2908 = vmatpush1.bf16.msra.mxu0 0
        %2909 = vmatprep.subr.bf16.mxu0 0
        %2910 = vmatpush1.bf16.msra.mxu0 0
        %2911 = vmatprep.mubr.bf16.mxu0 0
        %2912 = vmatmul.mubr.bf16.gmra.mrb[0].mxu0 %v2871
        %v2913 = vpop.f32.mrb[0].mxu0
        %v2914 = vadd.f32 0.0, %v2913
        %v2915 = vpop.f32.mrb[0].mxu0
        %v2916 = vpop.f32.mrb[0].mxu0
        %v2917 = vadd.f32 0.0, %v2916
        %v2918 = vpop.f32.mrb[0].mxu0
        %2919 = vmatprep.mubr.bf16.mxu0 0
        %2920 = vmatmul.mubr.bf16.gmra.mrb[0].mxu0 %v2872
        %v2921 = vpop.f32.mrb[0].mxu0
        %v2922 = vadd.f32 0.0, %v2921
        %v2923 = vpop.f32.mrb[0].mxu0
        %v2924 = vpop.f32.mrb[0].mxu0
        %v2925 = vadd.f32 0.0, %v2924
        %v2926 = vpop.f32.mrb[0].mxu0
        %2927 = vmatprep.mubr.bf16.mxu0 0
        %2928 = vmatmul.mubr.bf16.gmra.mrb[0].mxu0 %v2873
        %v2929 = vpop.f32.mrb[0].mxu0
        %v2930 = vadd.f32 0.0, %v2929
        %v2931 = vpop.f32.mrb[0].mxu0
        %v2932 = vpop.f32.mrb[0].mxu0
        %v2933 = vadd.f32 0.0, %v2932
        %v2934 = vpop.f32.mrb[0].mxu0
        %2935 = vmatprep.mubr.bf16.mxu0 0
        %2936 = vmatmul.mubr.bf16.gmra.mrb[0].mxu0 %v2874
        %v2937 = vpop.f32.mrb[0].mxu0
        %v2938 = vadd.f32 0.0, %v2937
        %v2939 = vpop.f32.mrb[0].mxu0
        %v2940 = vpop.f32.mrb[0].mxu0
        %v2941 = vadd.f32 0.0, %v2940
        %v2942 = vpop.f32.mrb[0].mxu0
        %2943 = vmatprep.mubr.bf16.mxu0 0
        %2944 = vmatmul.mubr.bf16.gmra.mrb[0].mxu0 %v2875
        %v2945 = vpop.f32.mrb[0].mxu0
        %v2946 = vadd.f32 0.0, %v2945
        %v2947 = vpop.f32.mrb[0].mxu0
        %v2948 = vpop.f32.mrb[0].mxu0
        %v2949 = vadd.f32 0.0, %v2948
        %v2950 = vpop.f32.mrb[0].mxu0
        %2951 = vmatprep.mubr.bf16.mxu0 0
        %2952 = vmatmul.mubr.bf16.gmra.mrb[0].mxu0 %v2876
        %v2953 = vpop.f32.mrb[0].mxu0
        %v2954 = vadd.f32 0.0, %v2953
        %v2955 = vpop.f32.mrb[0].mxu0
        %v2956 = vpop.f32.mrb[0].mxu0
        %v2957 = vadd.f32 0.0, %v2956
        %v2958 = vpop.f32.mrb[0].mxu0
        %2959 = vmatprep.mubr.bf16.mxu0 0
        %2960 = vmatmul.mubr.bf16.gmra.mrb[0].mxu0 %v2877
        %v2961 = vpop.f32.mrb[0].mxu0
        %v2962 = vadd.f32 0.0, %v2961
        %v2963 = vpop.f32.mrb[0].mxu0
        %v2964 = vpop.f32.mrb[0].mxu0
        %v2965 = vadd.f32 0.0, %v2964
        %v2966 = vpop.f32.mrb[0].mxu0
        %2967 = vmatprep.mubr.bf16.mxu0 0
        %2968 = vmatmul.mubr.bf16.gmra.mrb[0].mxu0 %v2878
        %v2969 = vpop.f32.mrb[0].mxu0
        %v2970 = vadd.f32 0.0, %v2969
        %v2971 = vpop.f32.mrb[0].mxu0
        %v2972 = vpop.f32.mrb[0].mxu0
        %v2973 = vadd.f32 0.0, %v2972
        %v2974 = vpop.f32.mrb[0].mxu0
        %2975 = vdwg.mxu0
        %v2976 = vpack.c.bf16 %v2917, %v2914
        %v2977 = vpack.c.bf16 %v2925, %v2922
        %v2978 = vpack.c.bf16 %v2933, %v2930
        %v2979 = vpack.c.bf16 %v2941, %v2938
        %v2980 = vpack.c.bf16 %v2949, %v2946
        %v2981 = vpack.c.bf16 %v2957, %v2954
        %v2982 = vpack.c.bf16 %v2965, %v2962
        %v2983 = vpack.c.bf16 %v2973, %v2970
        %2984 = vst [vmem:[#allocation3] sm:$0xff] %v2976
        %2985 = vst [vmem:[#allocation3 + $0x10] sm:$0xff] %v2977
        %2986 = vst [vmem:[#allocation3 + $0x20] sm:$0xff] %v2978
        %2987 = vst [vmem:[#allocation3 + $0x30] sm:$0xff] %v2979
        %2988 = vst [vmem:[#allocation3 + $0x40] sm:$0xff] %v2980
        %2989 = vst [vmem:[#allocation3 + $0x50] sm:$0xff] %v2981
        %2990 = vst [vmem:[#allocation3 + $0x60] sm:$0xff] %v2982
        %2991 = vst [vmem:[#allocation3 + $0x70] sm:$0xff] %v2983
        %v2992 = vld [vmem:[#allocation2 + $0x8] sm:$0xff]
        %v2993 = vld [vmem:[#allocation2 + $0x38] sm:$0xff]
        %v2994 = vld [vmem:[#allocation2 + $0x68] sm:$0xff]
        %v2995 = vld [vmem:[#allocation2 + $0x98] sm:$0xff]
        %v2996 = vld [vmem:[#allocation2 + $0xc8] sm:$0xff]
        %v2997 = vld [vmem:[#allocation2 + $0xf8] sm:$0xff]
        %v2998 = vld [vmem:[#allocation2 + $0x128] sm:$0xff]
        %v2999 = vld [vmem:[#allocation2 + $0x158] sm:$0xff]
        %v3000 = vld [vmem:[#allocation2 + $0x188] sm:$0xff]
        %v3001 = vld [vmem:[#allocation2 + $0x1b8] sm:$0xff]
        %v3002 = vld [vmem:[#allocation2 + $0x1e8] sm:$0xff]
        %v3003 = vld [vmem:[#allocation2 + $0x218] sm:$0xff]
        %v3004 = vld [vmem:[#allocation2 + $0x248] sm:$0xff]
        %v3005 = vld [vmem:[#allocation2 + $0x278] sm:$0xff]
        %v3006 = vld [vmem:[#allocation2 + $0x2a8] sm:$0xff]
        %v3007 = vld [vmem:[#allocation2 + $0x2d8] sm:$0xff]
        %3008 = vadd.xlane.f32.xlu0 %v2992
        %v3009 = vpop.xlane.xlu0 %3008
        %3010 = vadd.xlane.f32.xlu0 %v2993
        %v3011 = vpop.xlane.xlu0 %3010
        %3012 = vadd.xlane.f32.xlu0 %v2994
        %v3013 = vpop.xlane.xlu0 %3012
        %3014 = vadd.xlane.f32.xlu0 %v2995
        %v3015 = vpop.xlane.xlu0 %3014
        %3016 = vadd.xlane.f32.xlu0 %v2996
        %v3017 = vpop.xlane.xlu0 %3016
        %3018 = vadd.xlane.f32.xlu0 %v2997
        %v3019 = vpop.xlane.xlu0 %3018
        %3020 = vadd.xlane.f32.xlu0 %v2998
        %v3021 = vpop.xlane.xlu0 %3020
        %3022 = vadd.xlane.f32.xlu0 %v2999
        %v3023 = vpop.xlane.xlu0 %3022
        %3024 = vadd.xlane.f32.xlu0 %v3000
        %v3025 = vpop.xlane.xlu0 %3024
        %3026 = vadd.xlane.f32.xlu0 %v3001
        %v3027 = vpop.xlane.xlu0 %3026
        %3028 = vadd.xlane.f32.xlu0 %v3002
        %v3029 = vpop.xlane.xlu0 %3028
        %3030 = vadd.xlane.f32.xlu0 %v3003
        %v3031 = vpop.xlane.xlu0 %3030
        %3032 = vadd.xlane.f32.xlu0 %v3004
        %v3033 = vpop.xlane.xlu0 %3032
        %3034 = vadd.xlane.f32.xlu0 %v3005
        %v3035 = vpop.xlane.xlu0 %3034
        %3036 = vadd.xlane.f32.xlu0 %v3006
        %v3037 = vpop.xlane.xlu0 %3036
        %3038 = vadd.xlane.f32.xlu0 %v3007
        %v3039 = vpop.xlane.xlu0 %3038
        %v3040 = vmul.f32 %v3009, %v2237
        %v3041 = vmul.f32 %v3011, %v2237
        %v3042 = vmul.f32 %v3013, %v2237
        %v3043 = vmul.f32 %v3015, %v2237
        %v3044 = vmul.f32 %v3017, %v2237
        %v3045 = vmul.f32 %v3019, %v2237
        %v3046 = vmul.f32 %v3021, %v2237
        %v3047 = vmul.f32 %v3023, %v2237
        %v3048 = vmul.f32 %v3025, %v2237
        %v3049 = vmul.f32 %v3027, %v2237
        %v3050 = vmul.f32 %v3029, %v2237
        %v3051 = vmul.f32 %v3031, %v2237
        %v3052 = vmul.f32 %v3033, %v2237
        %v3053 = vmul.f32 %v3035, %v2237
        %v3054 = vmul.f32 %v3037, %v2237
        %v3055 = vmul.f32 %v3039, %v2237
        %v3056 = vsub.f32 %v2992, %v3040
        %v3057 = vsub.f32 %v2993, %v3041
        %v3058 = vsub.f32 %v2994, %v3042
        %v3059 = vsub.f32 %v2995, %v3043
        %v3060 = vsub.f32 %v2996, %v3044
        %v3061 = vsub.f32 %v2997, %v3045
        %v3062 = vsub.f32 %v2998, %v3046
        %v3063 = vsub.f32 %v2999, %v3047
        %v3064 = vsub.f32 %v3000, %v3048
        %v3065 = vsub.f32 %v3001, %v3049
        %v3066 = vsub.f32 %v3002, %v3050
        %v3067 = vsub.f32 %v3003, %v3051
        %v3068 = vsub.f32 %v3004, %v3052
        %v3069 = vsub.f32 %v3005, %v3053
        %v3070 = vsub.f32 %v3006, %v3054
        %v3071 = vsub.f32 %v3007, %v3055
        %v3072 = vmul.f32 %v3056, %v3056
        %v3073 = vmul.f32 %v3057, %v3057
        %v3074 = vmul.f32 %v3058, %v3058
        %v3075 = vmul.f32 %v3059, %v3059
        %v3076 = vmul.f32 %v3060, %v3060
        %v3077 = vmul.f32 %v3061, %v3061
        %v3078 = vmul.f32 %v3062, %v3062
        %v3079 = vmul.f32 %v3063, %v3063
        %v3080 = vmul.f32 %v3064, %v3064
        %v3081 = vmul.f32 %v3065, %v3065
        %v3082 = vmul.f32 %v3066, %v3066
        %v3083 = vmul.f32 %v3067, %v3067
        %v3084 = vmul.f32 %v3068, %v3068
        %v3085 = vmul.f32 %v3069, %v3069
        %v3086 = vmul.f32 %v3070, %v3070
        %v3087 = vmul.f32 %v3071, %v3071
        %3088 = vadd.xlane.f32.xlu0 %v3072
        %v3089 = vpop.xlane.xlu0 %3088
        %3090 = vadd.xlane.f32.xlu0 %v3073
        %v3091 = vpop.xlane.xlu0 %3090
        %3092 = vadd.xlane.f32.xlu0 %v3074
        %v3093 = vpop.xlane.xlu0 %3092
        %3094 = vadd.xlane.f32.xlu0 %v3075
        %v3095 = vpop.xlane.xlu0 %3094
        %3096 = vadd.xlane.f32.xlu0 %v3076
        %v3097 = vpop.xlane.xlu0 %3096
        %3098 = vadd.xlane.f32.xlu0 %v3077
        %v3099 = vpop.xlane.xlu0 %3098
        %3100 = vadd.xlane.f32.xlu0 %v3078
        %v3101 = vpop.xlane.xlu0 %3100
        %3102 = vadd.xlane.f32.xlu0 %v3079
        %v3103 = vpop.xlane.xlu0 %3102
        %3104 = vadd.xlane.f32.xlu0 %v3080
        %v3105 = vpop.xlane.xlu0 %3104
        %3106 = vadd.xlane.f32.xlu0 %v3081
        %v3107 = vpop.xlane.xlu0 %3106
        %3108 = vadd.xlane.f32.xlu0 %v3082
        %v3109 = vpop.xlane.xlu0 %3108
        %3110 = vadd.xlane.f32.xlu0 %v3083
        %v3111 = vpop.xlane.xlu0 %3110
        %3112 = vadd.xlane.f32.xlu0 %v3084
        %v3113 = vpop.xlane.xlu0 %3112
        %3114 = vadd.xlane.f32.xlu0 %v3085
        %v3115 = vpop.xlane.xlu0 %3114
        %3116 = vadd.xlane.f32.xlu0 %v3086
        %v3117 = vpop.xlane.xlu0 %3116
        %3118 = vadd.xlane.f32.xlu0 %v3087
        %v3119 = vpop.xlane.xlu0 %3118
        %v3120 = vmul.f32 %v3089, %v2237
        %v3121 = vmul.f32 %v3091, %v2237
        %v3122 = vmul.f32 %v3093, %v2237
        %v3123 = vmul.f32 %v3095, %v2237
        %v3124 = vmul.f32 %v3097, %v2237
        %v3125 = vmul.f32 %v3099, %v2237
        %v3126 = vmul.f32 %v3101, %v2237
        %v3127 = vmul.f32 %v3103, %v2237
        %v3128 = vmul.f32 %v3105, %v2237
        %v3129 = vmul.f32 %v3107, %v2237
        %v3130 = vmul.f32 %v3109, %v2237
        %v3131 = vmul.f32 %v3111, %v2237
        %v3132 = vmul.f32 %v3113, %v2237
        %v3133 = vmul.f32 %v3115, %v2237
        %v3134 = vmul.f32 %v3117, %v2237
        %v3135 = vmul.f32 %v3119, %v2237
        %v3136 = vadd.f32 %v3120, 1e-05
        %v3137 = vadd.f32 %v3121, 1e-05
        %v3138 = vadd.f32 %v3122, 1e-05
        %v3139 = vadd.f32 %v3123, 1e-05
        %v3140 = vadd.f32 %v3124, 1e-05
        %v3141 = vadd.f32 %v3125, 1e-05
        %v3142 = vadd.f32 %v3126, 1e-05
        %v3143 = vadd.f32 %v3127, 1e-05
        %v3144 = vadd.f32 %v3128, 1e-05
        %v3145 = vadd.f32 %v3129, 1e-05
        %v3146 = vadd.f32 %v3130, 1e-05
        %v3147 = vadd.f32 %v3131, 1e-05
        %v3148 = vadd.f32 %v3132, 1e-05
        %v3149 = vadd.f32 %v3133, 1e-05
        %v3150 = vadd.f32 %v3134, 1e-05
        %v3151 = vadd.f32 %v3135, 1e-05
        %v3152 = vrsqrt.pop %v3136
        %v3153 = vrsqrt.pop %v3137
        %v3154 = vrsqrt.pop %v3138
        %v3155 = vrsqrt.pop %v3139
        %v3156 = vrsqrt.pop %v3140
        %v3157 = vrsqrt.pop %v3141
        %v3158 = vrsqrt.pop %v3142
        %v3159 = vrsqrt.pop %v3143
        %v3160 = vrsqrt.pop %v3144
        %v3161 = vrsqrt.pop %v3145
        %v3162 = vrsqrt.pop %v3146
        %v3163 = vrsqrt.pop %v3147
        %v3164 = vrsqrt.pop %v3148
        %v3165 = vrsqrt.pop %v3149
        %v3166 = vrsqrt.pop %v3150
        %v3167 = vrsqrt.pop %v3151
        %v3168 = vmul.f32 %v3152, 0.088388346
        %v3169 = vmul.f32 %v3153, 0.088388346
        %v3170 = vmul.f32 %v3154, 0.088388346
        %v3171 = vmul.f32 %v3155, 0.088388346
        %v3172 = vmul.f32 %v3156, 0.088388346
        %v3173 = vmul.f32 %v3157, 0.088388346
        %v3174 = vmul.f32 %v3158, 0.088388346
        %v3175 = vmul.f32 %v3159, 0.088388346
        %v3176 = vmul.f32 %v3160, 0.088388346
        %v3177 = vmul.f32 %v3161, 0.088388346
        %v3178 = vmul.f32 %v3162, 0.088388346
        %v3179 = vmul.f32 %v3163, 0.088388346
        %v3180 = vmul.f32 %v3164, 0.088388346
        %v3181 = vmul.f32 %v3165, 0.088388346
        %v3182 = vmul.f32 %v3166, 0.088388346
        %v3183 = vmul.f32 %v3167, 0.088388346
        %v3184 = vmul.f32 %v3056, %v3168
        %v3185 = vmul.f32 %v3057, %v3169
        %v3186 = vmul.f32 %v3058, %v3170
        %v3187 = vmul.f32 %v3059, %v3171
        %v3188 = vmul.f32 %v3060, %v3172
        %v3189 = vmul.f32 %v3061, %v3173
        %v3190 = vmul.f32 %v3062, %v3174
        %v3191 = vmul.f32 %v3063, %v3175
        %v3192 = vmul.f32 %v3064, %v3176
        %v3193 = vmul.f32 %v3065, %v3177
        %v3194 = vmul.f32 %v3066, %v3178
        %v3195 = vmul.f32 %v3067, %v3179
        %v3196 = vmul.f32 %v3068, %v3180
        %v3197 = vmul.f32 %v3069, %v3181
        %v3198 = vmul.f32 %v3070, %v3182
        %v3199 = vmul.f32 %v3071, %v3183
        %v3200 = vpack.c.bf16 %v3185, %v3184
        %v3201 = vpack.c.bf16 %v3187, %v3186
        %v3202 = vpack.c.bf16 %v3189, %v3188
        %v3203 = vpack.c.bf16 %v3191, %v3190
        %v3204 = vpack.c.bf16 %v3193, %v3192
        %v3205 = vpack.c.bf16 %v3195, %v3194
        %v3206 = vpack.c.bf16 %v3197, %v3196
        %v3207 = vpack.c.bf16 %v3199, %v3198
        %v3208 = vld [vmem:[#allocation2 + $0x18] sm:$0xff]
        %v3209 = vld [vmem:[#allocation2 + $0x48] sm:$0xff]
        %v3210 = vld [vmem:[#allocation2 + $0x78] sm:$0xff]
        %v3211 = vld [vmem:[#allocation2 + $0xa8] sm:$0xff]
        %v3212 = vld [vmem:[#allocation2 + $0xd8] sm:$0xff]
        %v3213 = vld [vmem:[#allocation2 + $0x108] sm:$0xff]
        %v3214 = vld [vmem:[#allocation2 + $0x138] sm:$0xff]
        %v3215 = vld [vmem:[#allocation2 + $0x168] sm:$0xff]
        %v3216 = vld [vmem:[#allocation2 + $0x198] sm:$0xff]
        %v3217 = vld [vmem:[#allocation2 + $0x1c8] sm:$0xff]
        %v3218 = vld [vmem:[#allocation2 + $0x1f8] sm:$0xff]
        %v3219 = vld [vmem:[#allocation2 + $0x228] sm:$0xff]
        %v3220 = vld [vmem:[#allocation2 + $0x258] sm:$0xff]
        %v3221 = vld [vmem:[#allocation2 + $0x288] sm:$0xff]
        %v3222 = vld [vmem:[#allocation2 + $0x2b8] sm:$0xff]
        %v3223 = vld [vmem:[#allocation2 + $0x2e8] sm:$0xff]
        %3224 = vadd.xlane.f32.xlu0 %v3208
        %v3225 = vpop.xlane.xlu0 %3224
        %3226 = vadd.xlane.f32.xlu0 %v3209
        %v3227 = vpop.xlane.xlu0 %3226
        %3228 = vadd.xlane.f32.xlu0 %v3210
        %v3229 = vpop.xlane.xlu0 %3228
        %3230 = vadd.xlane.f32.xlu0 %v3211
        %v3231 = vpop.xlane.xlu0 %3230
        %3232 = vadd.xlane.f32.xlu0 %v3212
        %v3233 = vpop.xlane.xlu0 %3232
        %3234 = vadd.xlane.f32.xlu0 %v3213
        %v3235 = vpop.xlane.xlu0 %3234
        %3236 = vadd.xlane.f32.xlu0 %v3214
        %v3237 = vpop.xlane.xlu0 %3236
        %3238 = vadd.xlane.f32.xlu0 %v3215
        %v3239 = vpop.xlane.xlu0 %3238
        %3240 = vadd.xlane.f32.xlu0 %v3216
        %v3241 = vpop.xlane.xlu0 %3240
        %3242 = vadd.xlane.f32.xlu0 %v3217
        %v3243 = vpop.xlane.xlu0 %3242
        %3244 = vadd.xlane.f32.xlu0 %v3218
        %v3245 = vpop.xlane.xlu0 %3244
        %3246 = vadd.xlane.f32.xlu0 %v3219
        %v3247 = vpop.xlane.xlu0 %3246
        %3248 = vadd.xlane.f32.xlu0 %v3220
        %v3249 = vpop.xlane.xlu0 %3248
        %3250 = vadd.xlane.f32.xlu0 %v3221
        %v3251 = vpop.xlane.xlu0 %3250
        %3252 = vadd.xlane.f32.xlu0 %v3222
        %v3253 = vpop.xlane.xlu0 %3252
        %3254 = vadd.xlane.f32.xlu0 %v3223
        %v3255 = vpop.xlane.xlu0 %3254
        %v3256 = vmul.f32 %v3225, %v2237
        %v3257 = vmul.f32 %v3227, %v2237
        %v3258 = vmul.f32 %v3229, %v2237
        %v3259 = vmul.f32 %v3231, %v2237
        %v3260 = vmul.f32 %v3233, %v2237
        %v3261 = vmul.f32 %v3235, %v2237
        %v3262 = vmul.f32 %v3237, %v2237
        %v3263 = vmul.f32 %v3239, %v2237
        %v3264 = vmul.f32 %v3241, %v2237
        %v3265 = vmul.f32 %v3243, %v2237
        %v3266 = vmul.f32 %v3245, %v2237
        %v3267 = vmul.f32 %v3247, %v2237
        %v3268 = vmul.f32 %v3249, %v2237
        %v3269 = vmul.f32 %v3251, %v2237
        %v3270 = vmul.f32 %v3253, %v2237
        %v3271 = vmul.f32 %v3255, %v2237
        %v3272 = vsub.f32 %v3208, %v3256
        %v3273 = vsub.f32 %v3209, %v3257
        %v3274 = vsub.f32 %v3210, %v3258
        %v3275 = vsub.f32 %v3211, %v3259
        %v3276 = vsub.f32 %v3212, %v3260
        %v3277 = vsub.f32 %v3213, %v3261
        %v3278 = vsub.f32 %v3214, %v3262
        %v3279 = vsub.f32 %v3215, %v3263
        %v3280 = vsub.f32 %v3216, %v3264
        %v3281 = vsub.f32 %v3217, %v3265
        %v3282 = vsub.f32 %v3218, %v3266
        %v3283 = vsub.f32 %v3219, %v3267
        %v3284 = vsub.f32 %v3220, %v3268
        %v3285 = vsub.f32 %v3221, %v3269
        %v3286 = vsub.f32 %v3222, %v3270
        %v3287 = vsub.f32 %v3223, %v3271
        %v3288 = vmul.f32 %v3272, %v3272
        %v3289 = vmul.f32 %v3273, %v3273
        %v3290 = vmul.f32 %v3274, %v3274
        %v3291 = vmul.f32 %v3275, %v3275
        %v3292 = vmul.f32 %v3276, %v3276
        %v3293 = vmul.f32 %v3277, %v3277
        %v3294 = vmul.f32 %v3278, %v3278
        %v3295 = vmul.f32 %v3279, %v3279
        %v3296 = vmul.f32 %v3280, %v3280
        %v3297 = vmul.f32 %v3281, %v3281
        %v3298 = vmul.f32 %v3282, %v3282
        %v3299 = vmul.f32 %v3283, %v3283
        %v3300 = vmul.f32 %v3284, %v3284
        %v3301 = vmul.f32 %v3285, %v3285
        %v3302 = vmul.f32 %v3286, %v3286
        %v3303 = vmul.f32 %v3287, %v3287
        %3304 = vadd.xlane.f32.xlu0 %v3288
        %v3305 = vpop.xlane.xlu0 %3304
        %3306 = vadd.xlane.f32.xlu0 %v3289
        %v3307 = vpop.xlane.xlu0 %3306
        %3308 = vadd.xlane.f32.xlu0 %v3290
        %v3309 = vpop.xlane.xlu0 %3308
        %3310 = vadd.xlane.f32.xlu0 %v3291
        %v3311 = vpop.xlane.xlu0 %3310
        %3312 = vadd.xlane.f32.xlu0 %v3292
        %v3313 = vpop.xlane.xlu0 %3312
        %3314 = vadd.xlane.f32.xlu0 %v3293
        %v3315 = vpop.xlane.xlu0 %3314
        %3316 = vadd.xlane.f32.xlu0 %v3294
        %v3317 = vpop.xlane.xlu0 %3316
        %3318 = vadd.xlane.f32.xlu0 %v3295
        %v3319 = vpop.xlane.xlu0 %3318
        %3320 = vadd.xlane.f32.xlu0 %v3296
        %v3321 = vpop.xlane.xlu0 %3320
        %3322 = vadd.xlane.f32.xlu0 %v3297
        %v3323 = vpop.xlane.xlu0 %3322
        %3324 = vadd.xlane.f32.xlu0 %v3298
        %v3325 = vpop.xlane.xlu0 %3324
        %3326 = vadd.xlane.f32.xlu0 %v3299
        %v3327 = vpop.xlane.xlu0 %3326
        %3328 = vadd.xlane.f32.xlu0 %v3300
        %v3329 = vpop.xlane.xlu0 %3328
        %3330 = vadd.xlane.f32.xlu0 %v3301
        %v3331 = vpop.xlane.xlu0 %3330
        %3332 = vadd.xlane.f32.xlu0 %v3302
        %v3333 = vpop.xlane.xlu0 %3332
        %3334 = vadd.xlane.f32.xlu0 %v3303
        %v3335 = vpop.xlane.xlu0 %3334
        %v3336 = vmul.f32 %v3305, %v2237
        %v3337 = vmul.f32 %v3307, %v2237
        %v3338 = vmul.f32 %v3309, %v2237
        %v3339 = vmul.f32 %v3311, %v2237
        %v3340 = vmul.f32 %v3313, %v2237
        %v3341 = vmul.f32 %v3315, %v2237
        %v3342 = vmul.f32 %v3317, %v2237
        %v3343 = vmul.f32 %v3319, %v2237
        %v3344 = vmul.f32 %v3321, %v2237
        %v3345 = vmul.f32 %v3323, %v2237
        %v3346 = vmul.f32 %v3325, %v2237
        %v3347 = vmul.f32 %v3327, %v2237
        %v3348 = vmul.f32 %v3329, %v2237
        %v3349 = vmul.f32 %v3331, %v2237
        %v3350 = vmul.f32 %v3333, %v2237
        %v3351 = vmul.f32 %v3335, %v2237
        %v3352 = vadd.f32 %v3336, 1e-05
        %v3353 = vadd.f32 %v3337, 1e-05
        %v3354 = vadd.f32 %v3338, 1e-05
        %v3355 = vadd.f32 %v3339, 1e-05
        %v3356 = vadd.f32 %v3340, 1e-05
        %v3357 = vadd.f32 %v3341, 1e-05
        %v3358 = vadd.f32 %v3342, 1e-05
        %v3359 = vadd.f32 %v3343, 1e-05
        %v3360 = vadd.f32 %v3344, 1e-05
        %v3361 = vadd.f32 %v3345, 1e-05
        %v3362 = vadd.f32 %v3346, 1e-05
        %v3363 = vadd.f32 %v3347, 1e-05
        %v3364 = vadd.f32 %v3348, 1e-05
        %v3365 = vadd.f32 %v3349, 1e-05
        %v3366 = vadd.f32 %v3350, 1e-05
        %v3367 = vadd.f32 %v3351, 1e-05
        %v3368 = vrsqrt.pop %v3352
        %v3369 = vrsqrt.pop %v3353
        %v3370 = vrsqrt.pop %v3354
        %v3371 = vrsqrt.pop %v3355
        %v3372 = vrsqrt.pop %v3356
        %v3373 = vrsqrt.pop %v3357
        %v3374 = vrsqrt.pop %v3358
        %v3375 = vrsqrt.pop %v3359
        %v3376 = vrsqrt.pop %v3360
        %v3377 = vrsqrt.pop %v3361
        %v3378 = vrsqrt.pop %v3362
        %v3379 = vrsqrt.pop %v3363
        %v3380 = vrsqrt.pop %v3364
        %v3381 = vrsqrt.pop %v3365
        %v3382 = vrsqrt.pop %v3366
        %v3383 = vrsqrt.pop %v3367
        %v3384 = vmul.f32 %v3272, %v3368
        %v3385 = vmul.f32 %v3273, %v3369
        %v3386 = vmul.f32 %v3274, %v3370
        %v3387 = vmul.f32 %v3275, %v3371
        %v3388 = vmul.f32 %v3276, %v3372
        %v3389 = vmul.f32 %v3277, %v3373
        %v3390 = vmul.f32 %v3278, %v3374
        %v3391 = vmul.f32 %v3279, %v3375
        %v3392 = vmul.f32 %v3280, %v3376
        %v3393 = vmul.f32 %v3281, %v3377
        %v3394 = vmul.f32 %v3282, %v3378
        %v3395 = vmul.f32 %v3283, %v3379
        %v3396 = vmul.f32 %v3284, %v3380
        %v3397 = vmul.f32 %v3285, %v3381
        %v3398 = vmul.f32 %v3286, %v3382
        %v3399 = vmul.f32 %v3287, %v3383
        %v3400 = vpack.c.bf16 %v3385, %v3384
        %v3401 = vpack.c.bf16 %v3387, %v3386
        %v3402 = vpack.c.bf16 %v3389, %v3388
        %v3403 = vpack.c.bf16 %v3391, %v3390
        %v3404 = vpack.c.bf16 %v3393, %v3392
        %v3405 = vpack.c.bf16 %v3395, %v3394
        %v3406 = vpack.c.bf16 %v3397, %v3396
        %v3407 = vpack.c.bf16 %v3399, %v3398
        %v3408 = vld [vmem:[#allocation2 + $0x28] sm:$0xff]
        %v3409 = vld [vmem:[#allocation2 + $0x58] sm:$0xff]
        %v3410 = vld [vmem:[#allocation2 + $0x88] sm:$0xff]
        %v3411 = vld [vmem:[#allocation2 + $0xb8] sm:$0xff]
        %v3412 = vld [vmem:[#allocation2 + $0xe8] sm:$0xff]
        %v3413 = vld [vmem:[#allocation2 + $0x118] sm:$0xff]
        %v3414 = vld [vmem:[#allocation2 + $0x148] sm:$0xff]
        %v3415 = vld [vmem:[#allocation2 + $0x178] sm:$0xff]
        %v3416 = vld [vmem:[#allocation2 + $0x1a8] sm:$0xff]
        %v3417 = vld [vmem:[#allocation2 + $0x1d8] sm:$0xff]
        %v3418 = vld [vmem:[#allocation2 + $0x208] sm:$0xff]
        %v3419 = vld [vmem:[#allocation2 + $0x238] sm:$0xff]
        %v3420 = vld [vmem:[#allocation2 + $0x268] sm:$0xff]
        %v3421 = vld [vmem:[#allocation2 + $0x298] sm:$0xff]
        %v3422 = vld [vmem:[#allocation2 + $0x2c8] sm:$0xff]
        %v3423 = vld [vmem:[#allocation2 + $0x2f8] sm:$0xff]
        %v3424 = vpack.c.bf16 %v3409, %v3408
        %v3425 = vpack.c.bf16 %v3411, %v3410
        %v3426 = vpack.c.bf16 %v3413, %v3412
        %v3427 = vpack.c.bf16 %v3415, %v3414
        %v3428 = vpack.c.bf16 %v3417, %v3416
        %v3429 = vpack.c.bf16 %v3419, %v3418
        %v3430 = vpack.c.bf16 %v3421, %v3420
        %v3431 = vpack.c.bf16 %v3423, %v3422
        %3432 = vmatprep.subr.bf16.mxu0 0
        %3433 = vmatpush1.bf16.xpose.msra.mxu0 %v3400
        %3434 = vmatprep.subr.bf16.mxu0 0
        %3435 = vmatpush1.bf16.xpose.msra.mxu0 %v3401
        %3436 = vmatprep.subr.bf16.mxu0 0
        %3437 = vmatpush1.bf16.xpose.msra.mxu0 %v3402
        %3438 = vmatprep.subr.bf16.mxu0 0
        %3439 = vmatpush1.bf16.xpose.msra.mxu0 %v3403
        %3440 = vmatprep.subr.bf16.mxu0 0
        %3441 = vmatpush1.bf16.xpose.msra.mxu0 %v3404
        %3442 = vmatprep.subr.bf16.mxu0 0
        %3443 = vmatpush1.bf16.xpose.msra.mxu0 %v3405
        %3444 = vmatprep.subr.bf16.mxu0 0
        %3445 = vmatpush1.bf16.xpose.msra.mxu0 %v3406
        %3446 = vmatprep.subr.bf16.mxu0 0
        %3447 = vmatpush1.bf16.xpose.msra.mxu0 %v3407
        %3448 = vmatprep.subr.bf16.mxu0 0
        %3449 = vmatpush1.bf16.xpose.msra.mxu0 0
        %3450 = vmatprep.subr.bf16.mxu0 0
        %3451 = vmatpush1.bf16.xpose.msra.mxu0 0
        %3452 = vmatprep.subr.bf16.mxu0 0
        %3453 = vmatpush1.bf16.xpose.msra.mxu0 0
        %3454 = vmatprep.subr.bf16.mxu0 0
        %3455 = vmatpush1.bf16.xpose.msra.mxu0 0
        %3456 = vmatprep.subr.bf16.mxu0 0
        %3457 = vmatpush1.bf16.xpose.msra.mxu0 0
        %3458 = vmatprep.subr.bf16.mxu0 0
        %3459 = vmatpush1.bf16.xpose.msra.mxu0 0
        %3460 = vmatprep.subr.bf16.mxu0 0
        %3461 = vmatpush1.bf16.xpose.msra.mxu0 0
        %3462 = vmatprep.subr.bf16.mxu0 0
        %3463 = vmatpush1.bf16.xpose.msra.mxu0 0
        %3464 = vmatprep.mubr.bf16.mxu0 0
        %3465 = vmatmul.mubr.bf16.gmra.mrb[0].mxu0 %v3200
        %v3466 = vpop.f32.mrb[0].mxu0
        %v3467 = vadd.f32 0.0, %v3466
        %v3468 = vpop.f32.mrb[0].mxu0
        %v3469 = vpop.f32.mrb[0].mxu0
        %v3470 = vadd.f32 0.0, %v3469
        %v3471 = vpop.f32.mrb[0].mxu0
        %3472 = vmatprep.mubr.bf16.mxu0 0
        %3473 = vmatmul.mubr.bf16.gmra.mrb[0].mxu0 %v3201
        %v3474 = vpop.f32.mrb[0].mxu0
        %v3475 = vadd.f32 0.0, %v3474
        %v3476 = vpop.f32.mrb[0].mxu0
        %v3477 = vpop.f32.mrb[0].mxu0
        %v3478 = vadd.f32 0.0, %v3477
        %v3479 = vpop.f32.mrb[0].mxu0
        %3480 = vmatprep.mubr.bf16.mxu0 0
        %3481 = vmatmul.mubr.bf16.gmra.mrb[0].mxu0 %v3202
        %v3482 = vpop.f32.mrb[0].mxu0
        %v3483 = vadd.f32 0.0, %v3482
        %v3484 = vpop.f32.mrb[0].mxu0
        %v3485 = vpop.f32.mrb[0].mxu0
        %v3486 = vadd.f32 0.0, %v3485
        %v3487 = vpop.f32.mrb[0].mxu0
        %3488 = vmatprep.mubr.bf16.mxu0 0
        %3489 = vmatmul.mubr.bf16.gmra.mrb[0].mxu0 %v3203
        %v3490 = vpop.f32.mrb[0].mxu0
        %v3491 = vadd.f32 0.0, %v3490
        %v3492 = vpop.f32.mrb[0].mxu0
        %v3493 = vpop.f32.mrb[0].mxu0
        %v3494 = vadd.f32 0.0, %v3493
        %v3495 = vpop.f32.mrb[0].mxu0
        %3496 = vmatprep.mubr.bf16.mxu0 0
        %3497 = vmatmul.mubr.bf16.gmra.mrb[0].mxu0 %v3204
        %v3498 = vpop.f32.mrb[0].mxu0
        %v3499 = vadd.f32 0.0, %v3498
        %v3500 = vpop.f32.mrb[0].mxu0
        %v3501 = vpop.f32.mrb[0].mxu0
        %v3502 = vadd.f32 0.0, %v3501
        %v3503 = vpop.f32.mrb[0].mxu0
        %3504 = vmatprep.mubr.bf16.mxu0 0
        %3505 = vmatmul.mubr.bf16.gmra.mrb[0].mxu0 %v3205
        %v3506 = vpop.f32.mrb[0].mxu0
        %v3507 = vadd.f32 0.0, %v3506
        %v3508 = vpop.f32.mrb[0].mxu0
        %v3509 = vpop.f32.mrb[0].mxu0
        %v3510 = vadd.f32 0.0, %v3509
        %v3511 = vpop.f32.mrb[0].mxu0
        %3512 = vmatprep.mubr.bf16.mxu0 0
        %3513 = vmatmul.mubr.bf16.gmra.mrb[0].mxu0 %v3206
        %v3514 = vpop.f32.mrb[0].mxu0
        %v3515 = vadd.f32 0.0, %v3514
        %v3516 = vpop.f32.mrb[0].mxu0
        %v3517 = vpop.f32.mrb[0].mxu0
        %v3518 = vadd.f32 0.0, %v3517
        %v3519 = vpop.f32.mrb[0].mxu0
        %3520 = vmatprep.mubr.bf16.mxu0 0
        %3521 = vmatmul.mubr.bf16.gmra.mrb[0].mxu0 %v3207
        %v3522 = vpop.f32.mrb[0].mxu0
        %v3523 = vadd.f32 0.0, %v3522
        %v3524 = vpop.f32.mrb[0].mxu0
        %v3525 = vpop.f32.mrb[0].mxu0
        %v3526 = vadd.f32 0.0, %v3525
        %v3527 = vpop.f32.mrb[0].mxu0
        %3528 = vdwg.mxu0
        %3529 = vmax.xlane.f32.xlu0 %v3467
        %v3530 = vpop.xlane.xlu0 %3529
        %3531 = vmax.xlane.f32.xlu0 %v3470
        %v3532 = vpop.xlane.xlu0 %3531
        %3533 = vmax.xlane.f32.xlu0 %v3475
        %v3534 = vpop.xlane.xlu0 %3533
        %3535 = vmax.xlane.f32.xlu0 %v3478
        %v3536 = vpop.xlane.xlu0 %3535
        %3537 = vmax.xlane.f32.xlu0 %v3483
        %v3538 = vpop.xlane.xlu0 %3537
        %3539 = vmax.xlane.f32.xlu0 %v3486
        %v3540 = vpop.xlane.xlu0 %3539
        %3541 = vmax.xlane.f32.xlu0 %v3491
        %v3542 = vpop.xlane.xlu0 %3541
        %3543 = vmax.xlane.f32.xlu0 %v3494
        %v3544 = vpop.xlane.xlu0 %3543
        %3545 = vmax.xlane.f32.xlu0 %v3499
        %v3546 = vpop.xlane.xlu0 %3545
        %3547 = vmax.xlane.f32.xlu0 %v3502
        %v3548 = vpop.xlane.xlu0 %3547
        %3549 = vmax.xlane.f32.xlu0 %v3507
        %v3550 = vpop.xlane.xlu0 %3549
        %3551 = vmax.xlane.f32.xlu0 %v3510
        %v3552 = vpop.xlane.xlu0 %3551
        %3553 = vmax.xlane.f32.xlu0 %v3515
        %v3554 = vpop.xlane.xlu0 %3553
        %3555 = vmax.xlane.f32.xlu0 %v3518
        %v3556 = vpop.xlane.xlu0 %3555
        %3557 = vmax.xlane.f32.xlu0 %v3523
        %v3558 = vpop.xlane.xlu0 %3557
        %3559 = vmax.xlane.f32.xlu0 %v3526
        %v3560 = vpop.xlane.xlu0 %3559
        %v3561 = vsub.f32 %v3467, %v3530
        %v3562 = vsub.f32 %v3470, %v3532
        %v3563 = vsub.f32 %v3475, %v3534
        %v3564 = vsub.f32 %v3478, %v3536
        %v3565 = vsub.f32 %v3483, %v3538
        %v3566 = vsub.f32 %v3486, %v3540
        %v3567 = vsub.f32 %v3491, %v3542
        %v3568 = vsub.f32 %v3494, %v3544
        %v3569 = vsub.f32 %v3499, %v3546
        %v3570 = vsub.f32 %v3502, %v3548
        %v3571 = vsub.f32 %v3507, %v3550
        %v3572 = vsub.f32 %v3510, %v3552
        %v3573 = vsub.f32 %v3515, %v3554
        %v3574 = vsub.f32 %v3518, %v3556
        %v3575 = vsub.f32 %v3523, %v3558
        %v3576 = vsub.f32 %v3526, %v3560
        %v3577 = vmul.f32 %v3561, 1.442695
        %v3578 = vpow.pop %v3577
        %v3579 = vmul.f32 %v3562, 1.442695
        %v3580 = vpow.pop %v3579
        %v3581 = vmul.f32 %v3563, 1.442695
        %v3582 = vpow.pop %v3581
        %v3583 = vmul.f32 %v3564, 1.442695
        %v3584 = vpow.pop %v3583
        %v3585 = vmul.f32 %v3565, 1.442695
        %v3586 = vpow.pop %v3585
        %v3587 = vmul.f32 %v3566, 1.442695
        %v3588 = vpow.pop %v3587
        %v3589 = vmul.f32 %v3567, 1.442695
        %v3590 = vpow.pop %v3589
        %v3591 = vmul.f32 %v3568, 1.442695
        %v3592 = vpow.pop %v3591
        %v3593 = vmul.f32 %v3569, 1.442695
        %v3594 = vpow.pop %v3593
        %v3595 = vmul.f32 %v3570, 1.442695
        %v3596 = vpow.pop %v3595
        %v3597 = vmul.f32 %v3571, 1.442695
        %v3598 = vpow.pop %v3597
        %v3599 = vmul.f32 %v3572, 1.442695
        %v3600 = vpow.pop %v3599
        %v3601 = vmul.f32 %v3573, 1.442695
        %v3602 = vpow.pop %v3601
        %v3603 = vmul.f32 %v3574, 1.442695
        %v3604 = vpow.pop %v3603
        %v3605 = vmul.f32 %v3575, 1.442695
        %v3606 = vpow.pop %v3605
        %v3607 = vmul.f32 %v3576, 1.442695
        %v3608 = vpow.pop %v3607
        %3609 = vadd.xlane.f32.xlu0 %v3578
        %v3610 = vpop.xlane.xlu0 %3609
        %3611 = vadd.xlane.f32.xlu0 %v3580
        %v3612 = vpop.xlane.xlu0 %3611
        %3613 = vadd.xlane.f32.xlu0 %v3582
        %v3614 = vpop.xlane.xlu0 %3613
        %3615 = vadd.xlane.f32.xlu0 %v3584
        %v3616 = vpop.xlane.xlu0 %3615
        %3617 = vadd.xlane.f32.xlu0 %v3586
        %v3618 = vpop.xlane.xlu0 %3617
        %3619 = vadd.xlane.f32.xlu0 %v3588
        %v3620 = vpop.xlane.xlu0 %3619
        %3621 = vadd.xlane.f32.xlu0 %v3590
        %v3622 = vpop.xlane.xlu0 %3621
        %3623 = vadd.xlane.f32.xlu0 %v3592
        %v3624 = vpop.xlane.xlu0 %3623
        %3625 = vadd.xlane.f32.xlu0 %v3594
        %v3626 = vpop.xlane.xlu0 %3625
        %3627 = vadd.xlane.f32.xlu0 %v3596
        %v3628 = vpop.xlane.xlu0 %3627
        %3629 = vadd.xlane.f32.xlu0 %v3598
        %v3630 = vpop.xlane.xlu0 %3629
        %3631 = vadd.xlane.f32.xlu0 %v3600
        %v3632 = vpop.xlane.xlu0 %3631
        %3633 = vadd.xlane.f32.xlu0 %v3602
        %v3634 = vpop.xlane.xlu0 %3633
        %3635 = vadd.xlane.f32.xlu0 %v3604
        %v3636 = vpop.xlane.xlu0 %3635
        %3637 = vadd.xlane.f32.xlu0 %v3606
        %v3638 = vpop.xlane.xlu0 %3637
        %3639 = vadd.xlane.f32.xlu0 %v3608
        %v3640 = vpop.xlane.xlu0 %3639
        %v3641 = vrcp.pop %v3610
        %v3642 = vrcp.pop %v3612
        %v3643 = vrcp.pop %v3614
        %v3644 = vrcp.pop %v3616
        %v3645 = vrcp.pop %v3618
        %v3646 = vrcp.pop %v3620
        %v3647 = vrcp.pop %v3622
        %v3648 = vrcp.pop %v3624
        %v3649 = vrcp.pop %v3626
        %v3650 = vrcp.pop %v3628
        %v3651 = vrcp.pop %v3630
        %v3652 = vrcp.pop %v3632
        %v3653 = vrcp.pop %v3634
        %v3654 = vrcp.pop %v3636
        %v3655 = vrcp.pop %v3638
        %v3656 = vrcp.pop %v3640
        %v3657 = vmul.f32 %v3578, %v3641
        %v3658 = vmul.f32 %v3580, %v3642
        %v3659 = vmul.f32 %v3582, %v3643
        %v3660 = vmul.f32 %v3584, %v3644
        %v3661 = vmul.f32 %v3586, %v3645
        %v3662 = vmul.f32 %v3588, %v3646
        %v3663 = vmul.f32 %v3590, %v3647
        %v3664 = vmul.f32 %v3592, %v3648
        %v3665 = vmul.f32 %v3594, %v3649
        %v3666 = vmul.f32 %v3596, %v3650
        %v3667 = vmul.f32 %v3598, %v3651
        %v3668 = vmul.f32 %v3600, %v3652
        %v3669 = vmul.f32 %v3602, %v3653
        %v3670 = vmul.f32 %v3604, %v3654
        %v3671 = vmul.f32 %v3606, %v3655
        %v3672 = vmul.f32 %v3608, %v3656
        %v3673 = vpack.c.bf16 %v3658, %v3657
        %v3674 = vpack.c.bf16 %v3660, %v3659
        %v3675 = vpack.c.bf16 %v3662, %v3661
        %v3676 = vpack.c.bf16 %v3664, %v3663
        %v3677 = vpack.c.bf16 %v3666, %v3665
        %v3678 = vpack.c.bf16 %v3668, %v3667
        %v3679 = vpack.c.bf16 %v3670, %v3669
        %v3680 = vpack.c.bf16 %v3672, %v3671
        %3681 = vmatprep.subr.bf16.mxu0 0
        %3682 = vmatpush1.bf16.msra.mxu0 %v3424
        %3683 = vmatprep.subr.bf16.mxu0 0
        %3684 = vmatpush1.bf16.msra.mxu0 %v3425
        %3685 = vmatprep.subr.bf16.mxu0 0
        %3686 = vmatpush1.bf16.msra.mxu0 %v3426
        %3687 = vmatprep.subr.bf16.mxu0 0
        %3688 = vmatpush1.bf16.msra.mxu0 %v3427
        %3689 = vmatprep.subr.bf16.mxu0 0
        %3690 = vmatpush1.bf16.msra.mxu0 %v3428
        %3691 = vmatprep.subr.bf16.mxu0 0
        %3692 = vmatpush1.bf16.msra.mxu0 %v3429
        %3693 = vmatprep.subr.bf16.mxu0 0
        %3694 = vmatpush1.bf16.msra.mxu0 %v3430
        %3695 = vmatprep.subr.bf16.mxu0 0
        %3696 = vmatpush1.bf16.msra.mxu0 %v3431
        %3697 = vmatprep.subr.bf16.mxu0 0
        %3698 = vmatpush1.bf16.msra.mxu0 0
        %3699 = vmatprep.subr.bf16.mxu0 0
        %3700 = vmatpush1.bf16.msra.mxu0 0
        %3701 = vmatprep.subr.bf16.mxu0 0
        %3702 = vmatpush1.bf16.msra.mxu0 0
        %3703 = vmatprep.subr.bf16.mxu0 0
        %3704 = vmatpush1.bf16.msra.mxu0 0
        %3705 = vmatprep.subr.bf16.mxu0 0
        %3706 = vmatpush1.bf16.msra.mxu0 0
        %3707 = vmatprep.subr.bf16.mxu0 0
        %3708 = vmatpush1.bf16.msra.mxu0 0
        %3709 = vmatprep.subr.bf16.mxu0 0
        %3710 = vmatpush1.bf16.msra.mxu0 0
        %3711 = vmatprep.subr.bf16.mxu0 0
        %3712 = vmatpush1.bf16.msra.mxu0 0
        %3713 = vmatprep.mubr.bf16.mxu0 0
        %3714 = vmatmul.mubr.bf16.gmra.mrb[0].mxu0 %v3673
        %v3715 = vpop.f32.mrb[0].mxu0
        %v3716 = vadd.f32 0.0, %v3715
        %v3717 = vpop.f32.mrb[0].mxu0
        %v3718 = vpop.f32.mrb[0].mxu0
        %v3719 = vadd.f32 0.0, %v3718
        %v3720 = vpop.f32.mrb[0].mxu0
        %3721 = vmatprep.mubr.bf16.mxu0 0
        %3722 = vmatmul.mubr.bf16.gmra.mrb[0].mxu0 %v3674
        %v3723 = vpop.f32.mrb[0].mxu0
        %v3724 = vadd.f32 0.0, %v3723
        %v3725 = vpop.f32.mrb[0].mxu0
        %v3726 = vpop.f32.mrb[0].mxu0
        %v3727 = vadd.f32 0.0, %v3726
        %v3728 = vpop.f32.mrb[0].mxu0
        %3729 = vmatprep.mubr.bf16.mxu0 0
        %3730 = vmatmul.mubr.bf16.gmra.mrb[0].mxu0 %v3675
        %v3731 = vpop.f32.mrb[0].mxu0
        %v3732 = vadd.f32 0.0, %v3731
        %v3733 = vpop.f32.mrb[0].mxu0
        %v3734 = vpop.f32.mrb[0].mxu0
        %v3735 = vadd.f32 0.0, %v3734
        %v3736 = vpop.f32.mrb[0].mxu0
        %3737 = vmatprep.mubr.bf16.mxu0 0
        %3738 = vmatmul.mubr.bf16.gmra.mrb[0].mxu0 %v3676
        %v3739 = vpop.f32.mrb[0].mxu0
        %v3740 = vadd.f32 0.0, %v3739
        %v3741 = vpop.f32.mrb[0].mxu0
        %v3742 = vpop.f32.mrb[0].mxu0
        %v3743 = vadd.f32 0.0, %v3742
        %v3744 = vpop.f32.mrb[0].mxu0
        %3745 = vmatprep.mubr.bf16.mxu0 0
        %3746 = vmatmul.mubr.bf16.gmra.mrb[0].mxu0 %v3677
        %v3747 = vpop.f32.mrb[0].mxu0
        %v3748 = vadd.f32 0.0, %v3747
        %v3749 = vpop.f32.mrb[0].mxu0
        %v3750 = vpop.f32.mrb[0].mxu0
        %v3751 = vadd.f32 0.0, %v3750
        %v3752 = vpop.f32.mrb[0].mxu0
        %3753 = vmatprep.mubr.bf16.mxu0 0
        %3754 = vmatmul.mubr.bf16.gmra.mrb[0].mxu0 %v3678
        %v3755 = vpop.f32.mrb[0].mxu0
        %v3756 = vadd.f32 0.0, %v3755
        %v3757 = vpop.f32.mrb[0].mxu0
        %v3758 = vpop.f32.mrb[0].mxu0
        %v3759 = vadd.f32 0.0, %v3758
        %v3760 = vpop.f32.mrb[0].mxu0
        %3761 = vmatprep.mubr.bf16.mxu0 0
        %3762 = vmatmul.mubr.bf16.gmra.mrb[0].mxu0 %v3679
        %v3763 = vpop.f32.mrb[0].mxu0
        %v3764 = vadd.f32 0.0, %v3763
        %v3765 = vpop.f32.mrb[0].mxu0
        %v3766 = vpop.f32.mrb[0].mxu0
        %v3767 = vadd.f32 0.0, %v3766
        %v3768 = vpop.f32.mrb[0].mxu0
        %3769 = vmatprep.mubr.bf16.mxu0 0
        %3770 = vmatmul.mubr.bf16.gmra.mrb[0].mxu0 %v3680
        %v3771 = vpop.f32.mrb[0].mxu0
        %v3772 = vadd.f32 0.0, %v3771
        %v3773 = vpop.f32.mrb[0].mxu0
        %v3774 = vpop.f32.mrb[0].mxu0
        %v3775 = vadd.f32 0.0, %v3774
        %v3776 = vpop.f32.mrb[0].mxu0
        %3777 = vdwg.mxu0
        %v3778 = vpack.c.bf16 %v3719, %v3716
        %v3779 = vpack.c.bf16 %v3727, %v3724
        %v3780 = vpack.c.bf16 %v3735, %v3732
        %v3781 = vpack.c.bf16 %v3743, %v3740
        %v3782 = vpack.c.bf16 %v3751, %v3748
        %v3783 = vpack.c.bf16 %v3759, %v3756
        %v3784 = vpack.c.bf16 %v3767, %v3764
        %v3785 = vpack.c.bf16 %v3775, %v3772
        %3786 = vst [vmem:[#allocation3 + $0x8] sm:$0xff] %v3778
        %3787 = vst [vmem:[#allocation3 + $0x18] sm:$0xff] %v3779
        %3788 = vst [vmem:[#allocation3 + $0x28] sm:$0xff] %v3780
        %3789 = vst [vmem:[#allocation3 + $0x38] sm:$0xff] %v3781
        %3790 = vst [vmem:[#allocation3 + $0x48] sm:$0xff] %v3782
        %3791 = vst [vmem:[#allocation3 + $0x58] sm:$0xff] %v3783
        %3792 = vst [vmem:[#allocation3 + $0x68] sm:$0xff] %v3784
        %3793 = vst [vmem:[#allocation3 + $0x78] sm:$0xff] %v3785
        %v3794 = vld [vmem:[#allocation3] sm:$0xff]
        %v3795 = vld [vmem:[#allocation3 + $0x8] sm:$0xff]
        %v3796 = vld [vmem:[#allocation3 + $0x10] sm:$0xff]
        %v3797 = vld [vmem:[#allocation3 + $0x18] sm:$0xff]
        %v3798 = vld [vmem:[#allocation3 + $0x20] sm:$0xff]
        %v3799 = vld [vmem:[#allocation3 + $0x28] sm:$0xff]
        %v3800 = vld [vmem:[#allocation3 + $0x30] sm:$0xff]
        %v3801 = vld [vmem:[#allocation3 + $0x38] sm:$0xff]
        %v3802 = vld [vmem:[#allocation3 + $0x40] sm:$0xff]
        %v3803 = vld [vmem:[#allocation3 + $0x48] sm:$0xff]
        %v3804 = vld [vmem:[#allocation3 + $0x50] sm:$0xff]
        %v3805 = vld [vmem:[#allocation3 + $0x58] sm:$0xff]
        %v3806 = vld [vmem:[#allocation3 + $0x60] sm:$0xff]
        %v3807 = vld [vmem:[#allocation3 + $0x68] sm:$0xff]
        %v3808 = vld [vmem:[#allocation3 + $0x70] sm:$0xff]
        %v3809 = vld [vmem:[#allocation3 + $0x78] sm:$0xff]
        %v3810 = vld [vmem:[#allocation12] sm:$0xff]
        %v3811 = vld [vmem:[#allocation12 + $0x8] sm:$0xff]
        %v3812 = vld [vmem:[#allocation12 + $0x10] sm:$0xff]
        %v3813 = vld [vmem:[#allocation12 + $0x18] sm:$0xff]
        %v3814 = vld [vmem:[#allocation12 + $0x20] sm:$0xff]
        %v3815 = vld [vmem:[#allocation12 + $0x28] sm:$0xff]
        %v3816 = vld [vmem:[#allocation12 + $0x30] sm:$0xff]
        %v3817 = vld [vmem:[#allocation12 + $0x38] sm:$0xff]
        %v3818 = vld [vmem:[#allocation12 + $0x40] sm:$0xff]
        %v3819 = vld [vmem:[#allocation12 + $0x48] sm:$0xff]
        %v3820 = vld [vmem:[#allocation12 + $0x50] sm:$0xff]
        %v3821 = vld [vmem:[#allocation12 + $0x58] sm:$0xff]
        %v3822 = vld [vmem:[#allocation12 + $0x60] sm:$0xff]
        %v3823 = vld [vmem:[#allocation12 + $0x68] sm:$0xff]
        %v3824 = vld [vmem:[#allocation12 + $0x70] sm:$0xff]
        %v3825 = vld [vmem:[#allocation12 + $0x78] sm:$0xff]
        %v3826 = vld [vmem:[#allocation12 + $0x80] sm:$0xff]
        %v3827 = vld [vmem:[#allocation12 + $0x88] sm:$0xff]
        %v3828 = vld [vmem:[#allocation12 + $0x90] sm:$0xff]
        %v3829 = vld [vmem:[#allocation12 + $0x98] sm:$0xff]
        %v3830 = vld [vmem:[#allocation12 + $0xa0] sm:$0xff]
        %v3831 = vld [vmem:[#allocation12 + $0xa8] sm:$0xff]
        %v3832 = vld [vmem:[#allocation12 + $0xb0] sm:$0xff]
        %v3833 = vld [vmem:[#allocation12 + $0xb8] sm:$0xff]
        %v3834 = vld [vmem:[#allocation12 + $0xc0] sm:$0xff]
        %v3835 = vld [vmem:[#allocation12 + $0xc8] sm:$0xff]
        %v3836 = vld [vmem:[#allocation12 + $0xd0] sm:$0xff]
        %v3837 = vld [vmem:[#allocation12 + $0xd8] sm:$0xff]
        %v3838 = vld [vmem:[#allocation12 + $0xe0] sm:$0xff]
        %v3839 = vld [vmem:[#allocation12 + $0xe8] sm:$0xff]
        %v3840 = vld [vmem:[#allocation12 + $0xf0] sm:$0xff]
        %v3841 = vld [vmem:[#allocation12 + $0xf8] sm:$0xff]
        %v3874 = vunpack.c.l.b16 %v3810
        %v3875 = vunpack.c.h.b16 %v3810
        %v3876 = vunpack.c.l.b16 %v3811
        %v3877 = vunpack.c.h.b16 %v3811
        %v3878 = vunpack.c.l.b16 %v3812
        %v3879 = vunpack.c.h.b16 %v3812
        %v3880 = vunpack.c.l.b16 %v3813
        %v3881 = vunpack.c.h.b16 %v3813
        %v3882 = vunpack.c.l.b16 %v3814
        %v3883 = vunpack.c.h.b16 %v3814
        %v3884 = vunpack.c.l.b16 %v3815
        %v3885 = vunpack.c.h.b16 %v3815
        %v3886 = vunpack.c.l.b16 %v3816
        %v3887 = vunpack.c.h.b16 %v3816
        %v3888 = vunpack.c.l.b16 %v3817
        %v3889 = vunpack.c.h.b16 %v3817
        %v3890 = vunpack.c.l.b16 %v3818
        %v3891 = vunpack.c.h.b16 %v3818
        %v3892 = vunpack.c.l.b16 %v3819
        %v3893 = vunpack.c.h.b16 %v3819
        %v3894 = vunpack.c.l.b16 %v3820
        %v3895 = vunpack.c.h.b16 %v3820
        %v3896 = vunpack.c.l.b16 %v3821
        %v3897 = vunpack.c.h.b16 %v3821
        %v3898 = vunpack.c.l.b16 %v3822
        %v3899 = vunpack.c.h.b16 %v3822
        %v3900 = vunpack.c.l.b16 %v3823
        %v3901 = vunpack.c.h.b16 %v3823
        %v3902 = vunpack.c.l.b16 %v3824
        %v3903 = vunpack.c.h.b16 %v3824
        %v3904 = vunpack.c.l.b16 %v3825
        %v3905 = vunpack.c.h.b16 %v3825
        %v3906 = vunpack.c.l.b16 %v3826
        %v3907 = vunpack.c.h.b16 %v3826
        %v3908 = vunpack.c.l.b16 %v3827
        %v3909 = vunpack.c.h.b16 %v3827
        %v3910 = vunpack.c.l.b16 %v3828
        %v3911 = vunpack.c.h.b16 %v3828
        %v3912 = vunpack.c.l.b16 %v3829
        %v3913 = vunpack.c.h.b16 %v3829
        %v3914 = vunpack.c.l.b16 %v3830
        %v3915 = vunpack.c.h.b16 %v3830
        %v3916 = vunpack.c.l.b16 %v3831
        %v3917 = vunpack.c.h.b16 %v3831
        %v3918 = vunpack.c.l.b16 %v3832
        %v3919 = vunpack.c.h.b16 %v3832
        %v3920 = vunpack.c.l.b16 %v3833
        %v3921 = vunpack.c.h.b16 %v3833
        %v3922 = vunpack.c.l.b16 %v3834
        %v3923 = vunpack.c.h.b16 %v3834
        %v3924 = vunpack.c.l.b16 %v3835
        %v3925 = vunpack.c.h.b16 %v3835
        %v3926 = vunpack.c.l.b16 %v3836
        %v3927 = vunpack.c.h.b16 %v3836
        %v3928 = vunpack.c.l.b16 %v3837
        %v3929 = vunpack.c.h.b16 %v3837
        %v3930 = vunpack.c.l.b16 %v3838
        %v3931 = vunpack.c.h.b16 %v3838
        %v3932 = vunpack.c.l.b16 %v3839
        %v3933 = vunpack.c.h.b16 %v3839
        %v3934 = vunpack.c.l.b16 %v3840
        %v3935 = vunpack.c.h.b16 %v3840
        %v3936 = vunpack.c.l.b16 %v3841
        %v3937 = vunpack.c.h.b16 %v3841
        %v3938 = vpack.c.b16 %v3876, %v3874
        %v3939 = vpack.c.b16 %v3877, %v3875
        %v3940 = vpack.c.b16 %v3880, %v3878
        %v3941 = vpack.c.b16 %v3881, %v3879
        %v3942 = vpack.c.b16 %v3884, %v3882
        %v3943 = vpack.c.b16 %v3885, %v3883
        %v3944 = vpack.c.b16 %v3888, %v3886
        %v3945 = vpack.c.b16 %v3889, %v3887
        %v3946 = vpack.c.b16 %v3892, %v3890
        %v3947 = vpack.c.b16 %v3893, %v3891
        %v3948 = vpack.c.b16 %v3896, %v3894
        %v3949 = vpack.c.b16 %v3897, %v3895
        %v3950 = vpack.c.b16 %v3900, %v3898
        %v3951 = vpack.c.b16 %v3901, %v3899
        %v3952 = vpack.c.b16 %v3904, %v3902
        %v3953 = vpack.c.b16 %v3905, %v3903
        %v3954 = vpack.c.b16 %v3908, %v3906
        %v3955 = vpack.c.b16 %v3909, %v3907
        %v3956 = vpack.c.b16 %v3912, %v3910
        %v3957 = vpack.c.b16 %v3913, %v3911
        %v3958 = vpack.c.b16 %v3916, %v3914
        %v3959 = vpack.c.b16 %v3917, %v3915
        %v3960 = vpack.c.b16 %v3920, %v3918
        %v3961 = vpack.c.b16 %v3921, %v3919
        %v3962 = vpack.c.b16 %v3924, %v3922
        %v3963 = vpack.c.b16 %v3925, %v3923
        %v3964 = vpack.c.b16 %v3928, %v3926
        %v3965 = vpack.c.b16 %v3929, %v3927
        %v3966 = vpack.c.b16 %v3932, %v3930
        %v3967 = vpack.c.b16 %v3933, %v3931
        %v3968 = vpack.c.b16 %v3936, %v3934
        %v3969 = vpack.c.b16 %v3937, %v3935
        %4002 = vmatprep.subr.bf16.mxu0 %v3939
        %4003 = vmatpush1.bf16.msra.mxu0 %v3938
        %4004 = vmatprep.subr.bf16.mxu0 %v3941
        %4005 = vmatpush1.bf16.msra.mxu0 %v3940
        %4006 = vmatprep.subr.bf16.mxu0 %v3943
        %4007 = vmatpush1.bf16.msra.mxu0 %v3942
        %4008 = vmatprep.subr.bf16.mxu0 %v3945
        %4009 = vmatpush1.bf16.msra.mxu0 %v3944
        %4010 = vmatprep.subr.bf16.mxu0 %v3947
        %4011 = vmatpush1.bf16.msra.mxu0 %v3946
        %4012 = vmatprep.subr.bf16.mxu0 %v3949
        %4013 = vmatpush1.bf16.msra.mxu0 %v3948
        %4014 = vmatprep.subr.bf16.mxu0 %v3951
        %4015 = vmatpush1.bf16.msra.mxu0 %v3950
        %4016 = vmatprep.subr.bf16.mxu0 %v3953
        %4017 = vmatpush1.bf16.msra.mxu0 %v3952
        %4018 = vmatprep.subr.bf16.mxu0 %v3955
        %4019 = vmatpush1.bf16.msra.mxu0 %v3954
        %4020 = vmatprep.subr.bf16.mxu0 %v3957
        %4021 = vmatpush1.bf16.msra.mxu0 %v3956
        %4022 = vmatprep.subr.bf16.mxu0 %v3959
        %4023 = vmatpush1.bf16.msra.mxu0 %v3958
        %4024 = vmatprep.subr.bf16.mxu0 %v3961
        %4025 = vmatpush1.bf16.msra.mxu0 %v3960
        %4026 = vmatprep.subr.bf16.mxu0 %v3963
        %4027 = vmatpush1.bf16.msra.mxu0 %v3962
        %4028 = vmatprep.subr.bf16.mxu0 %v3965
        %4029 = vmatpush1.bf16.msra.mxu0 %v3964
        %4030 = vmatprep.subr.bf16.mxu0 %v3967
        %4031 = vmatpush1.bf16.msra.mxu0 %v3966
        %4032 = vmatprep.subr.bf16.mxu0 %v3969
        %4033 = vmatpush1.bf16.msra.mxu0 %v3968
        %4034 = vmatprep.mubr.bf16.mxu0 %v3795
        %4035 = vmatmul.mubr.bf16.gmra.mrb[0].mxu0 %v3794
        %v4036 = vpop.f32.mrb[0].mxu0
        %v4037 = vadd.f32 0.0, %v4036
        %v4038 = vpop.f32.mrb[0].mxu0
        %v4039 = vadd.f32 0.0, %v4038
        %v4040 = vpop.f32.mrb[0].mxu0
        %v4041 = vadd.f32 0.0, %v4040
        %v4042 = vpop.f32.mrb[0].mxu0
        %v4043 = vadd.f32 0.0, %v4042
        %4044 = vdwg.mxu0
        %4045 = vst [vmem:[%s398] sm:$0xff] %v4037
        %4046 = vst [vmem:[%s398 + $0x8] sm:$0xff] %v4039
        %4047 = vst [vmem:[%s398 + $0x10] sm:$0xff] %v4041
        %4048 = vst [vmem:[%s398 + $0x18] sm:$0xff] %v4043
        %v4049 = vld [vmem:[#allocation13] sm:$0xff]
        %v4050 = vld [vmem:[#allocation13 + $0x8] sm:$0xff]
        %v4051 = vld [vmem:[#allocation13 + $0x10] sm:$0xff]
        %v4052 = vld [vmem:[#allocation13 + $0x18] sm:$0xff]
        %v4053 = vld [vmem:[#allocation13 + $0x20] sm:$0xff]
        %v4054 = vld [vmem:[#allocation13 + $0x28] sm:$0xff]
        %v4055 = vld [vmem:[#allocation13 + $0x30] sm:$0xff]
        %v4056 = vld [vmem:[#allocation13 + $0x38] sm:$0xff]
        %v4057 = vld [vmem:[#allocation13 + $0x40] sm:$0xff]
        %v4058 = vld [vmem:[#allocation13 + $0x48] sm:$0xff]
        %v4059 = vld [vmem:[#allocation13 + $0x50] sm:$0xff]
        %v4060 = vld [vmem:[#allocation13 + $0x58] sm:$0xff]
        %v4061 = vld [vmem:[#allocation13 + $0x60] sm:$0xff]
        %v4062 = vld [vmem:[#allocation13 + $0x68] sm:$0xff]
        %v4063 = vld [vmem:[#allocation13 + $0x70] sm:$0xff]
        %v4064 = vld [vmem:[#allocation13 + $0x78] sm:$0xff]
        %v4065 = vld [vmem:[#allocation13 + $0x80] sm:$0xff]
        %v4066 = vld [vmem:[#allocation13 + $0x88] sm:$0xff]
        %v4067 = vld [vmem:[#allocation13 + $0x90] sm:$0xff]
        %v4068 = vld [vmem:[#allocation13 + $0x98] sm:$0xff]
        %v4069 = vld [vmem:[#allocation13 + $0xa0] sm:$0xff]
        %v4070 = vld [vmem:[#allocation13 + $0xa8] sm:$0xff]
        %v4071 = vld [vmem:[#allocation13 + $0xb0] sm:$0xff]
        %v4072 = vld [vmem:[#allocation13 + $0xb8] sm:$0xff]
        %v4073 = vld [vmem:[#allocation13 + $0xc0] sm:$0xff]
        %v4074 = vld [vmem:[#allocation13 + $0xc8] sm:$0xff]
        %v4075 = vld [vmem:[#allocation13 + $0xd0] sm:$0xff]
        %v4076 = vld [vmem:[#allocation13 + $0xd8] sm:$0xff]
        %v4077 = vld [vmem:[#allocation13 + $0xe0] sm:$0xff]
        %v4078 = vld [vmem:[#allocation13 + $0xe8] sm:$0xff]
        %v4079 = vld [vmem:[#allocation13 + $0xf0] sm:$0xff]
        %v4080 = vld [vmem:[#allocation13 + $0xf8] sm:$0xff]
        %v4113 = vunpack.c.l.b16 %v4049
        %v4114 = vunpack.c.h.b16 %v4049
        %v4115 = vunpack.c.l.b16 %v4050
        %v4116 = vunpack.c.h.b16 %v4050
        %v4117 = vunpack.c.l.b16 %v4051
        %v4118 = vunpack.c.h.b16 %v4051
        %v4119 = vunpack.c.l.b16 %v4052
        %v4120 = vunpack.c.h.b16 %v4052
        %v4121 = vunpack.c.l.b16 %v4053
        %v4122 = vunpack.c.h.b16 %v4053
        %v4123 = vunpack.c.l.b16 %v4054
        %v4124 = vunpack.c.h.b16 %v4054
        %v4125 = vunpack.c.l.b16 %v4055
        %v4126 = vunpack.c.h.b16 %v4055
        %v4127 = vunpack.c.l.b16 %v4056
        %v4128 = vunpack.c.h.b16 %v4056
        %v4129 = vunpack.c.l.b16 %v4057
        %v4130 = vunpack.c.h.b16 %v4057
        %v4131 = vunpack.c.l.b16 %v4058
        %v4132 = vunpack.c.h.b16 %v4058
        %v4133 = vunpack.c.l.b16 %v4059
        %v4134 = vunpack.c.h.b16 %v4059
        %v4135 = vunpack.c.l.b16 %v4060
        %v4136 = vunpack.c.h.b16 %v4060
        %v4137 = vunpack.c.l.b16 %v4061
        %v4138 = vunpack.c.h.b16 %v4061
        %v4139 = vunpack.c.l.b16 %v4062
        %v4140 = vunpack.c.h.b16 %v4062
        %v4141 = vunpack.c.l.b16 %v4063
        %v4142 = vunpack.c.h.b16 %v4063
        %v4143 = vunpack.c.l.b16 %v4064
        %v4144 = vunpack.c.h.b16 %v4064
        %v4145 = vunpack.c.l.b16 %v4065
        %v4146 = vunpack.c.h.b16 %v4065
        %v4147 = vunpack.c.l.b16 %v4066
        %v4148 = vunpack.c.h.b16 %v4066
        %v4149 = vunpack.c.l.b16 %v4067
        %v4150 = vunpack.c.h.b16 %v4067
        %v4151 = vunpack.c.l.b16 %v4068
        %v4152 = vunpack.c.h.b16 %v4068
        %v4153 = vunpack.c.l.b16 %v4069
        %v4154 = vunpack.c.h.b16 %v4069
        %v4155 = vunpack.c.l.b16 %v4070
        %v4156 = vunpack.c.h.b16 %v4070
        %v4157 = vunpack.c.l.b16 %v4071
        %v4158 = vunpack.c.h.b16 %v4071
        %v4159 = vunpack.c.l.b16 %v4072
        %v4160 = vunpack.c.h.b16 %v4072
        %v4161 = vunpack.c.l.b16 %v4073
        %v4162 = vunpack.c.h.b16 %v4073
        %v4163 = vunpack.c.l.b16 %v4074
        %v4164 = vunpack.c.h.b16 %v4074
        %v4165 = vunpack.c.l.b16 %v4075
        %v4166 = vunpack.c.h.b16 %v4075
        %v4167 = vunpack.c.l.b16 %v4076
        %v4168 = vunpack.c.h.b16 %v4076
        %v4169 = vunpack.c.l.b16 %v4077
        %v4170 = vunpack.c.h.b16 %v4077
        %v4171 = vunpack.c.l.b16 %v4078
        %v4172 = vunpack.c.h.b16 %v4078
        %v4173 = vunpack.c.l.b16 %v4079
        %v4174 = vunpack.c.h.b16 %v4079
        %v4175 = vunpack.c.l.b16 %v4080
        %v4176 = vunpack.c.h.b16 %v4080
        %v4177 = vpack.c.b16 %v4115, %v4113
        %v4178 = vpack.c.b16 %v4116, %v4114
        %v4179 = vpack.c.b16 %v4119, %v4117
        %v4180 = vpack.c.b16 %v4120, %v4118
        %v4181 = vpack.c.b16 %v4123, %v4121
        %v4182 = vpack.c.b16 %v4124, %v4122
        %v4183 = vpack.c.b16 %v4127, %v4125
        %v4184 = vpack.c.b16 %v4128, %v4126
        %v4185 = vpack.c.b16 %v4131, %v4129
        %v4186 = vpack.c.b16 %v4132, %v4130
        %v4187 = vpack.c.b16 %v4135, %v4133
        %v4188 = vpack.c.b16 %v4136, %v4134
        %v4189 = vpack.c.b16 %v4139, %v4137
        %v4190 = vpack.c.b16 %v4140, %v4138
        %v4191 = vpack.c.b16 %v4143, %v4141
        %v4192 = vpack.c.b16 %v4144, %v4142
        %v4193 = vpack.c.b16 %v4147, %v4145
        %v4194 = vpack.c.b16 %v4148, %v4146
        %v4195 = vpack.c.b16 %v4151, %v4149
        %v4196 = vpack.c.b16 %v4152, %v4150
        %v4197 = vpack.c.b16 %v4155, %v4153
        %v4198 = vpack.c.b16 %v4156, %v4154
        %v4199 = vpack.c.b16 %v4159, %v4157
        %v4200 = vpack.c.b16 %v4160, %v4158
        %v4201 = vpack.c.b16 %v4163, %v4161
        %v4202 = vpack.c.b16 %v4164, %v4162
        %v4203 = vpack.c.b16 %v4167, %v4165
        %v4204 = vpack.c.b16 %v4168, %v4166
        %v4205 = vpack.c.b16 %v4171, %v4169
        %v4206 = vpack.c.b16 %v4172, %v4170
        %v4207 = vpack.c.b16 %v4175, %v4173
        %v4208 = vpack.c.b16 %v4176, %v4174
        %4241 = vmatprep.subr.bf16.mxu0 %v4178
        %4242 = vmatpush1.bf16.msra.mxu0 %v4177
        %4243 = vmatprep.subr.bf16.mxu0 %v4180
        %4244 = vmatpush1.bf16.msra.mxu0 %v4179
        %4245 = vmatprep.subr.bf16.mxu0 %v4182
        %4246 = vmatpush1.bf16.msra.mxu0 %v4181
        %4247 = vmatprep.subr.bf16.mxu0 %v4184
        %4248 = vmatpush1.bf16.msra.mxu0 %v4183
        %4249 = vmatprep.subr.bf16.mxu0 %v4186
        %4250 = vmatpush1.bf16.msra.mxu0 %v4185
        %4251 = vmatprep.subr.bf16.mxu0 %v4188
        %4252 = vmatpush1.bf16.msra.mxu0 %v4187
        %4253 = vmatprep.subr.bf16.mxu0 %v4190
        %4254 = vmatpush1.bf16.msra.mxu0 %v4189
        %4255 = vmatprep.subr.bf16.mxu0 %v4192
        %4256 = vmatpush1.bf16.msra.mxu0 %v4191
        %4257 = vmatprep.subr.bf16.mxu0 %v4194
        %4258 = vmatpush1.bf16.msra.mxu0 %v4193
        %4259 = vmatprep.subr.bf16.mxu0 %v4196
        %4260 = vmatpush1.bf16.msra.mxu0 %v4195
        %4261 = vmatprep.subr.bf16.mxu0 %v4198
        %4262 = vmatpush1.bf16.msra.mxu0 %v4197
        %4263 = vmatprep.subr.bf16.mxu0 %v4200
        %4264 = vmatpush1.bf16.msra.mxu0 %v4199
        %4265 = vmatprep.subr.bf16.mxu0 %v4202
        %4266 = vmatpush1.bf16.msra.mxu0 %v4201
        %4267 = vmatprep.subr.bf16.mxu0 %v4204
        %4268 = vmatpush1.bf16.msra.mxu0 %v4203
        %4269 = vmatprep.subr.bf16.mxu0 %v4206
        %4270 = vmatpush1.bf16.msra.mxu0 %v4205
        %4271 = vmatprep.subr.bf16.mxu0 %v4208
        %4272 = vmatpush1.bf16.msra.mxu0 %v4207
        %4273 = vmatprep.mubr.bf16.mxu0 %v3797
        %4274 = vmatmul.mubr.bf16.gmra.mrb[0].mxu0 %v3796
        %v4275 = vpop.f32.mrb[0].mxu0
        %v4276 = vadd.f32 0.0, %v4275
        %v4277 = vpop.f32.mrb[0].mxu0
        %v4278 = vadd.f32 0.0, %v4277
        %v4279 = vpop.f32.mrb[0].mxu0
        %v4280 = vadd.f32 0.0, %v4279
        %v4281 = vpop.f32.mrb[0].mxu0
        %v4282 = vadd.f32 0.0, %v4281
        %4283 = vmatprep.mubr.bf16.mxu0 %v3799
        %4284 = vmatmul.mubr.bf16.gmra.mrb[0].mxu0 %v3798
        %v4285 = vpop.f32.mrb[0].mxu0
        %v4286 = vadd.f32 0.0, %v4285
        %v4287 = vpop.f32.mrb[0].mxu0
        %v4288 = vadd.f32 0.0, %v4287
        %v4289 = vpop.f32.mrb[0].mxu0
        %v4290 = vadd.f32 0.0, %v4289
        %v4291 = vpop.f32.mrb[0].mxu0
        %v4292 = vadd.f32 0.0, %v4291
        %4293 = vmatprep.mubr.bf16.mxu0 %v3801
        %4294 = vmatmul.mubr.bf16.gmra.mrb[0].mxu0 %v3800
        %v4295 = vpop.f32.mrb[0].mxu0
        %v4296 = vadd.f32 0.0, %v4295
        %v4297 = vpop.f32.mrb[0].mxu0
        %v4298 = vadd.f32 0.0, %v4297
        %v4299 = vpop.f32.mrb[0].mxu0
        %v4300 = vadd.f32 0.0, %v4299
        %v4301 = vpop.f32.mrb[0].mxu0
        %v4302 = vadd.f32 0.0, %v4301
        %4303 = vmatprep.mubr.bf16.mxu0 %v3803
        %4304 = vmatmul.mubr.bf16.gmra.mrb[0].mxu0 %v3802
        %v4305 = vpop.f32.mrb[0].mxu0
        %v4306 = vadd.f32 0.0, %v4305
        %v4307 = vpop.f32.mrb[0].mxu0
        %v4308 = vadd.f32 0.0, %v4307
        %v4309 = vpop.f32.mrb[0].mxu0
        %v4310 = vadd.f32 0.0, %v4309
        %v4311 = vpop.f32.mrb[0].mxu0
        %v4312 = vadd.f32 0.0, %v4311
        %4313 = vmatprep.mubr.bf16.mxu0 %v3805
        %4314 = vmatmul.mubr.bf16.gmra.mrb[0].mxu0 %v3804
        %v4315 = vpop.f32.mrb[0].mxu0
        %v4316 = vadd.f32 0.0, %v4315
        %v4317 = vpop.f32.mrb[0].mxu0
        %v4318 = vadd.f32 0.0, %v4317
        %v4319 = vpop.f32.mrb[0].mxu0
        %v4320 = vadd.f32 0.0, %v4319
        %v4321 = vpop.f32.mrb[0].mxu0
        %v4322 = vadd.f32 0.0, %v4321
        %4323 = vmatprep.mubr.bf16.mxu0 %v3807
        %4324 = vmatmul.mubr.bf16.gmra.mrb[0].mxu0 %v3806
        %v4325 = vpop.f32.mrb[0].mxu0
        %v4326 = vadd.f32 0.0, %v4325
        %v4327 = vpop.f32.mrb[0].mxu0
        %v4328 = vadd.f32 0.0, %v4327
        %v4329 = vpop.f32.mrb[0].mxu0
        %v4330 = vadd.f32 0.0, %v4329
        %v4331 = vpop.f32.mrb[0].mxu0
        %v4332 = vadd.f32 0.0, %v4331
        %4333 = vmatprep.mubr.bf16.mxu0 %v3809
        %4334 = vmatmul.mubr.bf16.gmra.mrb[0].mxu0 %v3808
        %v4335 = vpop.f32.mrb[0].mxu0
        %v4336 = vadd.f32 0.0, %v4335
        %v4337 = vpop.f32.mrb[0].mxu0
        %v4338 = vadd.f32 0.0, %v4337
        %v4339 = vpop.f32.mrb[0].mxu0
        %v4340 = vadd.f32 0.0, %v4339
        %v4341 = vpop.f32.mrb[0].mxu0
        %v4342 = vadd.f32 0.0, %v4341
        %4343 = vdwg.mxu0
        %4344 = vst [vmem:[%s405] sm:$0xff] %v4276
        %4345 = vst [vmem:[%s405 + $0x8] sm:$0xff] %v4278
        %4346 = vst [vmem:[%s405 + $0x10] sm:$0xff] %v4280
        %4347 = vst [vmem:[%s405 + $0x18] sm:$0xff] %v4282
        %4348 = vst [vmem:[%s405 + $0x20] sm:$0xff] %v4286
        %4349 = vst [vmem:[%s405 + $0x28] sm:$0xff] %v4288
        %4350 = vst [vmem:[%s405 + $0x30] sm:$0xff] %v4290
        %4351 = vst [vmem:[%s405 + $0x38] sm:$0xff] %v4292
        %4352 = vst [vmem:[%s405 + $0x40] sm:$0xff] %v4296
        %4353 = vst [vmem:[%s405 + $0x48] sm:$0xff] %v4298
        %4354 = vst [vmem:[%s405 + $0x50] sm:$0xff] %v4300
        %4355 = vst [vmem:[%s405 + $0x58] sm:$0xff] %v4302
        %4356 = vst [vmem:[%s405 + $0x60] sm:$0xff] %v4306
        %4357 = vst [vmem:[%s405 + $0x68] sm:$0xff] %v4308
        %4358 = vst [vmem:[%s405 + $0x70] sm:$0xff] %v4310
        %4359 = vst [vmem:[%s405 + $0x78] sm:$0xff] %v4312
        %4360 = vst [vmem:[%s405 + $0x80] sm:$0xff] %v4316
        %4361 = vst [vmem:[%s405 + $0x88] sm:$0xff] %v4318
        %4362 = vst [vmem:[%s405 + $0x90] sm:$0xff] %v4320
        %4363 = vst [vmem:[%s405 + $0x98] sm:$0xff] %v4322
        %4364 = vst [vmem:[%s405 + $0xa0] sm:$0xff] %v4326
        %4365 = vst [vmem:[%s405 + $0xa8] sm:$0xff] %v4328
        %4366 = vst [vmem:[%s405 + $0xb0] sm:$0xff] %v4330
        %4367 = vst [vmem:[%s405 + $0xb8] sm:$0xff] %v4332
        %4368 = vst [vmem:[%s405 + $0xc0] sm:$0xff] %v4336
        %4369 = vst [vmem:[%s405 + $0xc8] sm:$0xff] %v4338
        %4370 = vst [vmem:[%s405 + $0xd0] sm:$0xff] %v4340
        %4371 = vst [vmem:[%s405 + $0xd8] sm:$0xff] %v4342
        %s4372 = sand.u32 %s177, 1
        %s4373 = scalar_lea.sflag [#allocation6], %s4372
        %s4374 = sand.u32 %s177, 1
        %s4375 = smul.addr %s4374, 32
        %s4376 = scalar_lea.vmem [#allocation15], %s4375
        %s4377 = sand.u32 %s203, 1
        %s4378 = scalar_lea.sflag [#allocation17], %s4377
        %s4379 = sand.u32 %s203, 1
        %s4380 = smul.addr %s4379, 224
        %s4381 = scalar_lea.vmem [#allocation16], %s4380
        // Predicated region
        $region69: #{tpu_custom_call.1} parent=43 // pred_check
          %p4382 = pneg %p187
        $region70: #{tpu_custom_call.1} parent=43 // pred_check_branch
          %4384 = sbr.rel (%p4382) target = $region72
        $region71: #{tpu_custom_call.1} parent=43 // pred_region
          %s4386 = ssub.s32 512, 512
          %4387 = vsyncadd %s4373, %s4386
          %s4388 = smul.addr %s33, 4
          %s4389 = smul.addr %s4388, 128
          %s4390 = scalar_lea.hbm %s6, %s4389
          %s4391 = sshll.u32 %s4376, 4
          %s4392 = int_to_ptr.vmem [resolvable:$true] %s4391
          %4397 = dma.vmem_to_hbm [thread:$0]  %s4392, 512, %s4390, %s4373, 256, 256, 16
        $region72: #{tpu_custom_call.1} parent=43 // pred_fallthru
          _
        // Predicated region
        $region73: #{tpu_custom_call.1} parent=43 // pred_check
          %p4398 = pneg %p213
        $region74: #{tpu_custom_call.1} parent=43 // pred_check_branch
          %4400 = sbr.rel (%p4398) target = $region76
        $region75: #{tpu_custom_call.1} parent=43 // pred_region
          %s4402 = ssub.s32 3584, 3584
          %4403 = vsyncadd %s4378, %s4402
          %s4404 = smul.addr %s33, 28
          %s4405 = smul.addr %s4404, 128
          %s4406 = scalar_lea.hbm %s7, %s4405
          %s4407 = sshll.u32 %s4381, 4
          %s4408 = int_to_ptr.vmem [resolvable:$true] %s4407
          %4413 = dma.vmem_to_hbm [thread:$0]  %s4408, 3584, %s4406, %s4378, 256, 256, 16
        $region76: #{tpu_custom_call.1} parent=43 // pred_fallthru
          _
      $region44: #{tpu_custom_call.1} parent=5 // pred_fallthru
        _
      %p4414 = scmp.le.s32.totalorder 2, %s28
      // Predicated region
      $region77: #{tpu_custom_call.1} parent=5 // pred_check
        %p4415 = pneg %p4414
      $region78: #{tpu_custom_call.1} parent=5 // pred_check_branch
        %4417 = sbr.rel (%p4415) target = $region80
      $region79: #{tpu_custom_call.1} parent=5 // pred_region
        %s4418 = ssub.s32 %s28, 2
        // Predicated region
        $region81: #{tpu_custom_call.1} parent=79 // pred_check
          %p4419 = pneg %p193
        $region82: #{tpu_custom_call.1} parent=79 // pred_check_branch
          %4421 = sbr.rel (%p4419) target = $region84
        $region83: #{tpu_custom_call.1} parent=79 // pred_region
          %s4422 = sand.u32 %s178, 1
          %s4423 = scalar_lea.sflag [#allocation6], %s4422
          %s4424 = sand.u32 %s178, 1
          %s4425 = smul.addr %s4424, 32
          %s4426 = scalar_lea.vmem [#allocation15], %s4425
          %4427 = dma.done %s4423, 512
        $region84: #{tpu_custom_call.1} parent=79 // pred_fallthru
          _
        // Predicated region
        $region85: #{tpu_custom_call.1} parent=79 // pred_check
          %p4428 = pneg %p219
        $region86: #{tpu_custom_call.1} parent=79 // pred_check_branch
          %4430 = sbr.rel (%p4428) target = $region88
        $region87: #{tpu_custom_call.1} parent=79 // pred_region
          %s4431 = sand.u32 %s204, 1
          %s4432 = scalar_lea.sflag [#allocation17], %s4431
          %s4433 = sand.u32 %s204, 1
          %s4434 = smul.addr %s4433, 224
          %s4435 = scalar_lea.vmem [#allocation16], %s4434
          %4436 = dma.done %s4432, 3584
        $region88: #{tpu_custom_call.1} parent=79 // pred_fallthru
          _
      $region80: #{tpu_custom_call.1} parent=5 // pred_fallthru
        _
    $region6: #{tpu_custom_call.1} parent=1 // loop_footer
      %s32 = sadd.s32 1, %s28
    $region7: #{tpu_custom_call.1} parent=1 // loop_footer_branch
      %27 = sbr.rel target = $region3
    $region8: #{tpu_custom_call.1} parent=1 // loop_exit
      _
    %4437 = vsyncpa [#allocation5], 1
    %s4438 = scalar_lea.sflag [#allocation5], 1
    %4439 = vsyncpa %s4438, 1
    %4440 = vsyncpa [#allocation8], 1
    %s4441 = scalar_lea.sflag [#allocation8], 1
    %4442 = vsyncpa %s4441, 1
    %4443 = vsyncpa [#allocation11], 1
    %4444 = vsyncpa [#allocation14], 1
    %4445 = vsyncpa [#allocation6], 1
    %s4446 = scalar_lea.sflag [#allocation6], 1
    %4447 = vsyncpa %s4446, 1
    %4448 = vsyncpa [#allocation17], 1
    %s4449 = scalar_lea.sflag [#allocation17], 1
    %4450 = vsyncpa %s4449, 1

</llo_original>
